<compile_context>
chip_gen: v7x
topology: tpu7x:2x2x1
jax: 0.10.0
libtpu: 0.0.40
codegen_flags: <defaults>
</compile_context>

<pallas_src>
import functools

import numpy as np
import jax
import jax.numpy as jnp
from jax import lax
from jax.experimental import pallas as pl
from jax.experimental.pallas import tpu as pltpu


# ----------------------------------------------------------------------------
# Host-side weight preparation (done once, outside the forward pass).
# ----------------------------------------------------------------------------
def build_conv_pool_weight(w_oihw, w_in):
    """Block-Toeplitz conv weights with the horizontal-pool column parity folded in.

    Returns big[(2*kh + parity), p*Cin + ci, j*Cout + co] = w[co, ci, kh, kw]
    with kw = p - (2*j + parity) (zero outside the 5-tap window), so that
        x_rows[2i+q+kh, :] @ big[2*kh+parity]  ->  conv(row 2i+q, col 2j+parity, co)
    summed over kh.  w_in is the spatial width of this layer's input.
    """
    w = np.asarray(w_oihw, np.float32)                 # (Cout, Cin, KH, KW)
    Cout, Cin, KH, KW = w.shape
    Wo = w_in - KW + 1
    Wp = Wo // 2
    big = np.zeros((2 * KH, w_in * Cin, Wp * Cout), np.float32)
    for kh in range(KH):
        for parity in range(2):
            for j in range(Wp):
                for kw in range(KW):
                    p = 2 * j + parity + kw            # input spatial column
                    big[2 * kh + parity,
                        p * Cin:(p + 1) * Cin,
                        j * Cout:(j + 1) * Cout] = w[:, :, kh, kw].T
    return jnp.asarray(big)


def build_fc1_weight(fc1_w, cout2, hp2, wp2):
    """Permute fc1 rows so the kernel's (row i of pooled2: [j*Cout2+co]) layout feeds
    fc1 with torch's NCHW .view() flatten order (f = co*Hp2*Wp2 + i*Wp2 + j)."""
    w = np.asarray(fc1_w, np.float32)                  # (fc1_out, Cout2*Hp2*Wp2)
    fc1_out = w.shape[0]
    out = np.zeros((hp2, wp2 * cout2, fc1_out), np.float32)
    for i in range(hp2):
        for j in range(wp2):
            for co in range(cout2):
                f = co * hp2 * wp2 + i * wp2 + j
                out[i, j * cout2 + co, :] = w[:, f]
    return jnp.asarray(out)


def prepare_params(p, input_size):
    cout1, cin, kh, kw = p["conv1_w"].shape
    cout2 = p["conv2_w"].shape[0]
    H1 = W1 = input_size
    Hp1 = Wp1 = (H1 - kh + 1) // 2          # after conv1 + pool
    H2 = W2 = Hp1
    Hp2 = Wp2 = (H2 - kh + 1) // 2          # after conv2 + pool

    def tile_bias(b, reps):
        return jnp.asarray(np.tile(np.asarray(b, np.float32), reps)[None, :])

    return dict(
        wc1=build_conv_pool_weight(p["conv1_w"], W1),          # (10, W1*Cin, Wp1*Cout1)
        bw1=tile_bias(p["conv1_b"], Wp1),                      # (1, Wp1*Cout1)
        wc2=build_conv_pool_weight(p["conv2_w"], W2),          # (10, W2*Cout1, Wp2*Cout2)
        bw2=tile_bias(p["conv2_b"], Wp2),                      # (1, Wp2*Cout2)
        fc1w=build_fc1_weight(p["fc1_w"], cout2, Hp2, Wp2),    # (Hp2, Wp2*Cout2, fc1_out)
        fc1b=jnp.asarray(p["fc1_b"], jnp.float32)[None, :],
        fc2w=jnp.asarray(p["fc2_w"], jnp.float32).T,
        fc2b=jnp.asarray(p["fc2_b"], jnp.float32)[None, :],
        fc3w=jnp.asarray(p["fc3_w"], jnp.float32).T,
        fc3b=jnp.asarray(p["fc3_b"], jnp.float32)[None, :],
        dims=dict(H1=H1, W1=W1, Cin=cin, Hp1=Hp1, Wp1=Wp1, Cout1=cout1),
    )


# ----------------------------------------------------------------------------
# The fused kernel: conv1+relu+pool -> conv2+relu+pool -> fc1+relu -> fc2+relu -> fc3
# ----------------------------------------------------------------------------
def fused_cnn_kernel(x_ref, wc1_ref, bw1_ref, wc2_ref, bw2_ref,
                     fc1w_ref, fc1b_ref, fc2w_ref, fc2b_ref, fc3w_ref, fc3b_ref,
                     o_ref, ximg_ref, s1_ref):
    NB = o_ref.shape[1]            # images per grid step
    Hp1 = s1_ref.shape[0]          # pooled rows after layer 1
    Hp2 = fc1w_ref.shape[0]        # pooled rows after layer 2

    def conv_relu_pool(src_ref, wc_ref, bwide, Hp):
        """Fused valid-conv(5x5) + bias + ReLU + 2x2 max-pool.

        src_ref: (H, W*Cin) VMEM ref.  wc_ref: (2*KH, W*Cin, Wp*Cout).
        Row parity (even/odd output rows) -> stride-2 sublane loads of src;
        column parity -> the two weight matrices per kh.  The 4 accumulators are
        max-combined (== max-pool, since bias-add and ReLU are monotone).
        """
        KH = wc_ref.shape[0] // 2
        P = wc_ref.shape[2]
        acc = [jnp.zeros((Hp, P), jnp.float32) for _ in range(4)]
        for kh in range(KH):
            w_even = wc_ref[2 * kh]          # even output columns
            w_odd = wc_ref[2 * kh + 1]       # odd output columns
            for q in range(2):               # even / odd output rows
                lhs = src_ref[pl.ds(kh + q, Hp, stride=2), :]       # (Hp, W*Cin)
                acc[2 * q] = acc[2 * q] + jnp.dot(
                    lhs, w_even, preferred_element_type=jnp.float32)
                acc[2 * q + 1] = acc[2 * q + 1] + jnp.dot(
                    lhs, w_odd, preferred_element_type=jnp.float32)
        m = jnp.maximum(jnp.maximum(acc[0], acc[1]),
                        jnp.maximum(acc[2], acc[3]))                # 2x2 max-pool
        return jnp.maximum(m + bwide, 0.0)                          # bias + ReLU

    for img in range(NB):
        # stage this image's rows (H1, W1*Cin) in VMEM scratch
        ximg_ref[...] = x_ref[img]

        # layer 1: conv + relu + pool  -> (Hp1, Wp1*Cout1)
        s1_ref[...] = conv_relu_pool(ximg_ref, wc1_ref, bw1_ref[...], Hp1)

        # layer 2: conv + relu + pool  -> (Hp2, Wp2*Cout2)
        p2 = conv_relu_pool(s1_ref, wc2_ref, bw2_ref[...], Hp2)

        # MLP head.  fc1 consumes pooled2 row by row (flatten order folded into fc1w).
        h = jnp.dot(p2[0:1, :], fc1w_ref[0], preferred_element_type=jnp.float32)
        for i in range(1, Hp2):
            h = h + jnp.dot(p2[i:i + 1, :], fc1w_ref[i],
                            preferred_element_type=jnp.float32)
        h = jnp.maximum(h + fc1b_ref[...], 0.0)
        h = jnp.maximum(
            jnp.dot(h, fc2w_ref[...], preferred_element_type=jnp.float32)
            + fc2b_ref[...], 0.0)
        logits = (jnp.dot(h, fc3w_ref[...], preferred_element_type=jnp.float32)
                  + fc3b_ref[...])                                   # (1, num_classes)
        o_ref[0, pl.ds(img, 1), :] = logits


def cnn_dynamic_forward(x_nchw, pp):
    d = pp["dims"]
    N = x_nchw.shape[0]
    H1, W1, Cin = d["H1"], d["W1"], d["Cin"]

    # NCHW -> per-row NHWC layout (N, H, W*Cin), channel fastest within a row.
    x_rows = jnp.transpose(x_nchw, (0, 2, 3, 1)).reshape(N, H1, W1 * Cin)

    # >= 2 "parallel" grid steps so both v7x TensorCores get work; each step
    # processes NB images inside the kernel (sequential loop on v5e/v6e).
    G = 2 if (N >= 2 and N % 2 == 0) else 1
    NB = N // G
    nc = pp["fc3b"].shape[1]

    consts = (pp["wc1"], pp["bw1"], pp["wc2"], pp["bw2"],
              pp["fc1w"], pp["fc1b"], pp["fc2w"], pp["fc2b"],
              pp["fc3w"], pp["fc3b"])
    const_specs = [pl.BlockSpec(c.shape, lambda g, _n=c.ndim: (0,) * _n)
                   for c in consts]

    out = pl.pallas_call(
        fused_cnn_kernel,
        out_shape=jax.ShapeDtypeStruct((G, NB, nc), jnp.float32),
        grid=(G,),
        in_specs=[pl.BlockSpec((NB, H1, W1 * Cin), lambda g: (g, 0, 0))] + const_specs,
        out_specs=pl.BlockSpec((1, NB, nc), lambda g: (g, 0, 0)),
        scratch_shapes=[
            pltpu.VMEM((H1, W1 * Cin), jnp.float32),                 # staged image
            pltpu.VMEM((d["Hp1"], d["Wp1"] * d["Cout1"]), jnp.float32),  # pooled layer-1
        ],
        compiler_params=pltpu.CompilerParams(dimension_semantics=("parallel",)),
    )(x_rows, *consts)
    return out.reshape(N, nc)


# ----------------------------------------------------------------------------
# Parameter init + pure-JAX reference (correctness check only).
# ----------------------------------------------------------------------------
def init_params(key, num_classes, input_size, in_ch, conv1_out, conv2_out,
                fc1_out, fc2_out):
    s1 = (input_size - 4) // 2
    s2 = (s1 - 4) // 2
    flat = conv2_out * s2 * s2
    ks = jax.random.split(key, 10)

    def w(k, shape, scale=0.1):
        return (scale * jax.random.normal(k, shape)).astype(jnp.float32)

    return dict(
        conv1_w=w(ks[0], (conv1_out, in_ch, 5, 5)),
        conv1_b=w(ks[1], (conv1_out,)),
        conv2_w=w(ks[2], (conv2_out, conv1_out, 5, 5)),
        conv2_b=w(ks[3], (conv2_out,)),
        fc1_w=w(ks[4], (fc1_out, flat)),
        fc1_b=w(ks[5], (fc1_out,)),
        fc2_w=w(ks[6], (fc2_out, fc1_out)),
        fc2_b=w(ks[7], (fc2_out,)),
        fc3_w=w(ks[8], (num_classes, fc2_out)),
        fc3_b=w(ks[9], (num_classes,)),
    )


def ref_forward(x_nchw, p):
    def conv(x, w, b):
        y = lax.conv_general_dilated(
            x, w, (1, 1), "VALID",
            dimension_numbers=("NCHW", "OIHW", "NCHW"),
            precision=lax.Precision.HIGHEST)
        return y + b[None, :, None, None]

    def pool(x):
        return lax.reduce_window(x, -jnp.inf, lax.max,
                                 (1, 1, 2, 2), (1, 1, 2, 2), "VALID")

    x = pool(jnp.maximum(conv(x_nchw, p["conv1_w"], p["conv1_b"]), 0.0))
    x = pool(jnp.maximum(conv(x, p["conv2_w"], p["conv2_b"]), 0.0))
    x = x.reshape(x.shape[0], -1)
    x = jnp.maximum(x @ p["fc1_w"].T + p["fc1_b"], 0.0)
    x = jnp.maximum(x @ p["fc2_w"].T + p["fc2_b"], 0.0)
    return x @ p["fc3_w"].T + p["fc3_b"]


if __name__ == "__main__":
    key = jax.random.PRNGKey(0)
    kp, kx = jax.random.split(key)

    num_classes, input_size, in_ch = 10, 20, 4
    conv1_out, conv2_out, fc1_out, fc2_out = 8, 16, 32, 16

    params = init_params(kp, num_classes, input_size, in_ch,
                         conv1_out, conv2_out, fc1_out, fc2_out)
    prepped = prepare_params(params, input_size)
    x = jax.random.normal(kx, (2, in_ch, input_size, input_size),
                          dtype=jnp.float32)

    fwd = jax.jit(functools.partial(cnn_dynamic_forward, pp=prepped))
    out = jax.block_until_ready(fwd(x))
    ref = jax.block_until_ready(ref_forward(x, params))

    assert out.shape == (2, num_classes), out.shape
    if not jnp.allclose(out, ref, atol=2e-2, rtol=2e-2):
        raise AssertionError("Pallas kernel output does not match JAX reference")
    print("KERNEL_OK")
</pallas_src>

<mosaic_0001>
module attributes {stable_mosaic.version = 11 : i64} {
  func.func @fused_cnn_kernel(%arg0: i32, %arg1: memref<1x20x80xf32, #tpu.memory_space<vmem>>, %arg2: memref<10x80x64xf32, #tpu.memory_space<vmem>>, %arg3: memref<1x64xf32, #tpu.memory_space<vmem>>, %arg4: memref<10x64x32xf32, #tpu.memory_space<vmem>>, %arg5: memref<1x32xf32, #tpu.memory_space<vmem>>, %arg6: memref<2x32x32xf32, #tpu.memory_space<vmem>>, %arg7: memref<1x32xf32, #tpu.memory_space<vmem>>, %arg8: memref<32x16xf32, #tpu.memory_space<vmem>>, %arg9: memref<1x16xf32, #tpu.memory_space<vmem>>, %arg10: memref<16x10xf32, #tpu.memory_space<vmem>>, %arg11: memref<1x10xf32, #tpu.memory_space<vmem>>, %arg12: memref<1x1x10xf32, #tpu.memory_space<vmem>>, %arg13: memref<20x80xf32, #tpu.memory_space<vmem>>, %arg14: memref<8x64xf32, #tpu.memory_space<vmem>>) attributes {dimension_semantics = [#tpu.dimension_semantics<parallel>], iteration_bounds = array<i64: 2>, scalar_prefetch = 0 : i64, scratch_operands = 2 : i64, tpu.core_type = #tpu.core_type<tc>, window_params = [{transform_indices = @transform_0, window_bounds = array<i64: 1, 20, 80>}, {pipeline_mode = #tpu.pipeline_mode<synchronous>, transform_indices = @transform_1, window_bounds = array<i64: 10, 80, 64>}, {pipeline_mode = #tpu.pipeline_mode<synchronous>, transform_indices = @transform_2, window_bounds = array<i64: 1, 64>}, {pipeline_mode = #tpu.pipeline_mode<synchronous>, transform_indices = @transform_3, window_bounds = array<i64: 10, 64, 32>}, {pipeline_mode = #tpu.pipeline_mode<synchronous>, transform_indices = @transform_4, window_bounds = array<i64: 1, 32>}, {pipeline_mode = #tpu.pipeline_mode<synchronous>, transform_indices = @transform_5, window_bounds = array<i64: 2, 32, 32>}, {pipeline_mode = #tpu.pipeline_mode<synchronous>, transform_indices = @transform_6, window_bounds = array<i64: 1, 32>}, {pipeline_mode = #tpu.pipeline_mode<synchronous>, transform_indices = @transform_7, window_bounds = array<i64: 32, 16>}, {pipeline_mode = #tpu.pipeline_mode<synchronous>, transform_indices = @transform_8, window_bounds = array<i64: 1, 16>}, {pipeline_mode = #tpu.pipeline_mode<synchronous>, transform_indices = @transform_9, window_bounds = array<i64: 16, 10>}, {pipeline_mode = #tpu.pipeline_mode<synchronous>, transform_indices = @transform_10, window_bounds = array<i64: 1, 10>}, {transform_indices = @transform_11, window_bounds = array<i64: 1, 1, 10>}]} {
    %c0 = arith.constant 0 : index
    %c0_0 = arith.constant 0 : index
    %c0_1 = arith.constant 0 : index
    %0 = vector.load %arg1[%c0, %c0_0, %c0_1] : memref<1x20x80xf32, #tpu.memory_space<vmem>>, vector<1x20x80xf32>
    %1 = vector.shape_cast %0 : vector<1x20x80xf32> to vector<20x80xf32>
    %c0_2 = arith.constant 0 : index
    %c0_3 = arith.constant 0 : index
    %2 = vector.load %arg13[%c0_2, %c0_3] : memref<20x80xf32, #tpu.memory_space<vmem>>, vector<20x80xf32>
    tpu.vector_store %arg13[%c0_2, %c0_3], %1 {strides = array<i32>} : memref<20x80xf32, #tpu.memory_space<vmem>>, vector<20x80xf32>,
    %c0_4 = arith.constant 0 : index
    %c0_5 = arith.constant 0 : index
    %3 = vector.load %arg3[%c0_4, %c0_5] : memref<1x64xf32, #tpu.memory_space<vmem>>, vector<1x64xf32>
    %cst = arith.constant 0.000000e+00 : f32
    %4 = vector.broadcast %cst : f32 to vector<8x64xf32>
    %cst_6 = arith.constant 0.000000e+00 : f32
    %5 = vector.broadcast %cst_6 : f32 to vector<8x64xf32>
    %cst_7 = arith.constant 0.000000e+00 : f32
    %6 = vector.broadcast %cst_7 : f32 to vector<8x64xf32>
    %cst_8 = arith.constant 0.000000e+00 : f32
    %7 = vector.broadcast %cst_8 : f32 to vector<8x64xf32>
    %c0_9 = arith.constant 0 : index
    %c0_10 = arith.constant 0 : index
    %c0_11 = arith.constant 0 : index
    %8 = vector.load %arg2[%c0_9, %c0_10, %c0_11] : memref<10x80x64xf32, #tpu.memory_space<vmem>>, vector<1x80x64xf32>
    %9 = vector.shape_cast %8 : vector<1x80x64xf32> to vector<80x64xf32>
    %c1 = arith.constant 1 : index
    %c0_12 = arith.constant 0 : index
    %c0_13 = arith.constant 0 : index
    %10 = vector.load %arg2[%c1, %c0_12, %c0_13] : memref<10x80x64xf32, #tpu.memory_space<vmem>>, vector<1x80x64xf32>
    %11 = vector.shape_cast %10 : vector<1x80x64xf32> to vector<80x64xf32>
    %c0_14 = arith.constant 0 : index
    %c0_15 = arith.constant 0 : index
    %12 = tpu.strided_load %arg13[%c0_14, %c0_15] {strides = array<i32: 2, 1>} : memref<20x80xf32, #tpu.memory_space<vmem>>, vector<8x80xf32>
    %cst_16 = arith.constant dense<0.000000e+00> : vector<8x64xf32>
    %13 = tpu.matmul %12, %9, %cst_16 {dimension_numbers = #tpu.dot_dimension_numbers<[1], [0], [0], [1], [0, 0, 1, 1], [], []>} : vector<8x80xf32>, vector<80x64xf32>, vector<8x64xf32> -> vector<8x64xf32>
    %14 = arith.addf %4, %13 : vector<8x64xf32>
    %cst_17 = arith.constant dense<0.000000e+00> : vector<8x64xf32>
    %15 = tpu.matmul %12, %11, %cst_17 {dimension_numbers = #tpu.dot_dimension_numbers<[1], [0], [0], [1], [0, 0, 1, 1], [], []>} : vector<8x80xf32>, vector<80x64xf32>, vector<8x64xf32> -> vector<8x64xf32>
    %16 = arith.addf %5, %15 : vector<8x64xf32>
    %c1_18 = arith.constant 1 : index
    %c0_19 = arith.constant 0 : index
    %17 = tpu.strided_load %arg13[%c1_18, %c0_19] {strides = array<i32: 2, 1>} : memref<20x80xf32, #tpu.memory_space<vmem>>, vector<8x80xf32>
    %cst_20 = arith.constant dense<0.000000e+00> : vector<8x64xf32>
    %18 = tpu.matmul %17, %9, %cst_20 {dimension_numbers = #tpu.dot_dimension_numbers<[1], [0], [0], [1], [0, 0, 1, 1], [], []>} : vector<8x80xf32>, vector<80x64xf32>, vector<8x64xf32> -> vector<8x64xf32>
    %19 = arith.addf %6, %18 : vector<8x64xf32>
    %cst_21 = arith.constant dense<0.000000e+00> : vector<8x64xf32>
    %20 = tpu.matmul %17, %11, %cst_21 {dimension_numbers = #tpu.dot_dimension_numbers<[1], [0], [0], [1], [0, 0, 1, 1], [], []>} : vector<8x80xf32>, vector<80x64xf32>, vector<8x64xf32> -> vector<8x64xf32>
    %21 = arith.addf %7, %20 : vector<8x64xf32>
    %c2 = arith.constant 2 : index
    %c0_22 = arith.constant 0 : index
    %c0_23 = arith.constant 0 : index
    %22 = vector.load %arg2[%c2, %c0_22, %c0_23] : memref<10x80x64xf32, #tpu.memory_space<vmem>>, vector<1x80x64xf32>
    %23 = vector.shape_cast %22 : vector<1x80x64xf32> to vector<80x64xf32>
    %c3 = arith.constant 3 : index
    %c0_24 = arith.constant 0 : index
    %c0_25 = arith.constant 0 : index
    %24 = vector.load %arg2[%c3, %c0_24, %c0_25] : memref<10x80x64xf32, #tpu.memory_space<vmem>>, vector<1x80x64xf32>
    %25 = vector.shape_cast %24 : vector<1x80x64xf32> to vector<80x64xf32>
    %c1_26 = arith.constant 1 : index
    %c0_27 = arith.constant 0 : index
    %26 = tpu.strided_load %arg13[%c1_26, %c0_27] {strides = array<i32: 2, 1>} : memref<20x80xf32, #tpu.memory_space<vmem>>, vector<8x80xf32>
    %cst_28 = arith.constant dense<0.000000e+00> : vector<8x64xf32>
    %27 = tpu.matmul %26, %23, %cst_28 {dimension_numbers = #tpu.dot_dimension_numbers<[1], [0], [0], [1], [0, 0, 1, 1], [], []>} : vector<8x80xf32>, vector<80x64xf32>, vector<8x64xf32> -> vector<8x64xf32>
    %28 = arith.addf %14, %27 : vector<8x64xf32>
    %cst_29 = arith.constant dense<0.000000e+00> : vector<8x64xf32>
    %29 = tpu.matmul %26, %25, %cst_29 {dimension_numbers = #tpu.dot_dimension_numbers<[1], [0], [0], [1], [0, 0, 1, 1], [], []>} : vector<8x80xf32>, vector<80x64xf32>, vector<8x64xf32> -> vector<8x64xf32>
    %30 = arith.addf %16, %29 : vector<8x64xf32>
    %c2_30 = arith.constant 2 : index
    %c0_31 = arith.constant 0 : index
    %31 = tpu.strided_load %arg13[%c2_30, %c0_31] {strides = array<i32: 2, 1>} : memref<20x80xf32, #tpu.memory_space<vmem>>, vector<8x80xf32>
    %cst_32 = arith.constant dense<0.000000e+00> : vector<8x64xf32>
    %32 = tpu.matmul %31, %23, %cst_32 {dimension_numbers = #tpu.dot_dimension_numbers<[1], [0], [0], [1], [0, 0, 1, 1], [], []>} : vector<8x80xf32>, vector<80x64xf32>, vector<8x64xf32> -> vector<8x64xf32>
    %33 = arith.addf %19, %32 : vector<8x64xf32>
    %cst_33 = arith.constant dense<0.000000e+00> : vector<8x64xf32>
    %34 = tpu.matmul %31, %25, %cst_33 {dimension_numbers = #tpu.dot_dimension_numbers<[1], [0], [0], [1], [0, 0, 1, 1], [], []>} : vector<8x80xf32>, vector<80x64xf32>, vector<8x64xf32> -> vector<8x64xf32>
    %35 = arith.addf %21, %34 : vector<8x64xf32>
    %c4 = arith.constant 4 : index
    %c0_34 = arith.constant 0 : index
    %c0_35 = arith.constant 0 : index
    %36 = vector.load %arg2[%c4, %c0_34, %c0_35] : memref<10x80x64xf32, #tpu.memory_space<vmem>>, vector<1x80x64xf32>
    %37 = vector.shape_cast %36 : vector<1x80x64xf32> to vector<80x64xf32>
    %c5 = arith.constant 5 : index
    %c0_36 = arith.constant 0 : index
    %c0_37 = arith.constant 0 : index
    %38 = vector.load %arg2[%c5, %c0_36, %c0_37] : memref<10x80x64xf32, #tpu.memory_space<vmem>>, vector<1x80x64xf32>
    %39 = vector.shape_cast %38 : vector<1x80x64xf32> to vector<80x64xf32>
    %c2_38 = arith.constant 2 : index
    %c0_39 = arith.constant 0 : index
    %40 = tpu.strided_load %arg13[%c2_38, %c0_39] {strides = array<i32: 2, 1>} : memref<20x80xf32, #tpu.memory_space<vmem>>, vector<8x80xf32>
    %cst_40 = arith.constant dense<0.000000e+00> : vector<8x64xf32>
    %41 = tpu.matmul %40, %37, %cst_40 {dimension_numbers = #tpu.dot_dimension_numbers<[1], [0], [0], [1], [0, 0, 1, 1], [], []>} : vector<8x80xf32>, vector<80x64xf32>, vector<8x64xf32> -> vector<8x64xf32>
    %42 = arith.addf %28, %41 : vector<8x64xf32>
    %cst_41 = arith.constant dense<0.000000e+00> : vector<8x64xf32>
    %43 = tpu.matmul %40, %39, %cst_41 {dimension_numbers = #tpu.dot_dimension_numbers<[1], [0], [0], [1], [0, 0, 1, 1], [], []>} : vector<8x80xf32>, vector<80x64xf32>, vector<8x64xf32> -> vector<8x64xf32>
    %44 = arith.addf %30, %43 : vector<8x64xf32>
    %c3_42 = arith.constant 3 : index
    %c0_43 = arith.constant 0 : index
    %45 = tpu.strided_load %arg13[%c3_42, %c0_43] {strides = array<i32: 2, 1>} : memref<20x80xf32, #tpu.memory_space<vmem>>, vector<8x80xf32>
    %cst_44 = arith.constant dense<0.000000e+00> : vector<8x64xf32>
    %46 = tpu.matmul %45, %37, %cst_44 {dimension_numbers = #tpu.dot_dimension_numbers<[1], [0], [0], [1], [0, 0, 1, 1], [], []>} : vector<8x80xf32>, vector<80x64xf32>, vector<8x64xf32> -> vector<8x64xf32>
    %47 = arith.addf %33, %46 : vector<8x64xf32>
    %cst_45 = arith.constant dense<0.000000e+00> : vector<8x64xf32>
    %48 = tpu.matmul %45, %39, %cst_45 {dimension_numbers = #tpu.dot_dimension_numbers<[1], [0], [0], [1], [0, 0, 1, 1], [], []>} : vector<8x80xf32>, vector<80x64xf32>, vector<8x64xf32> -> vector<8x64xf32>
    %49 = arith.addf %35, %48 : vector<8x64xf32>
    %c6 = arith.constant 6 : index
    %c0_46 = arith.constant 0 : index
    %c0_47 = arith.constant 0 : index
    %50 = vector.load %arg2[%c6, %c0_46, %c0_47] : memref<10x80x64xf32, #tpu.memory_space<vmem>>, vector<1x80x64xf32>
    %51 = vector.shape_cast %50 : vector<1x80x64xf32> to vector<80x64xf32>
    %c7 = arith.constant 7 : index
    %c0_48 = arith.constant 0 : index
    %c0_49 = arith.constant 0 : index
    %52 = vector.load %arg2[%c7, %c0_48, %c0_49] : memref<10x80x64xf32, #tpu.memory_space<vmem>>, vector<1x80x64xf32>
    %53 = vector.shape_cast %52 : vector<1x80x64xf32> to vector<80x64xf32>
    %c3_50 = arith.constant 3 : index
    %c0_51 = arith.constant 0 : index
    %54 = tpu.strided_load %arg13[%c3_50, %c0_51] {strides = array<i32: 2, 1>} : memref<20x80xf32, #tpu.memory_space<vmem>>, vector<8x80xf32>
    %cst_52 = arith.constant dense<0.000000e+00> : vector<8x64xf32>
    %55 = tpu.matmul %54, %51, %cst_52 {dimension_numbers = #tpu.dot_dimension_numbers<[1], [0], [0], [1], [0, 0, 1, 1], [], []>} : vector<8x80xf32>, vector<80x64xf32>, vector<8x64xf32> -> vector<8x64xf32>
    %56 = arith.addf %42, %55 : vector<8x64xf32>
    %cst_53 = arith.constant dense<0.000000e+00> : vector<8x64xf32>
    %57 = tpu.matmul %54, %53, %cst_53 {dimension_numbers = #tpu.dot_dimension_numbers<[1], [0], [0], [1], [0, 0, 1, 1], [], []>} : vector<8x80xf32>, vector<80x64xf32>, vector<8x64xf32> -> vector<8x64xf32>
    %58 = arith.addf %44, %57 : vector<8x64xf32>
    %c4_54 = arith.constant 4 : index
    %c0_55 = arith.constant 0 : index
    %59 = tpu.strided_load %arg13[%c4_54, %c0_55] {strides = array<i32: 2, 1>} : memref<20x80xf32, #tpu.memory_space<vmem>>, vector<8x80xf32>
    %cst_56 = arith.constant dense<0.000000e+00> : vector<8x64xf32>
    %60 = tpu.matmul %59, %51, %cst_56 {dimension_numbers = #tpu.dot_dimension_numbers<[1], [0], [0], [1], [0, 0, 1, 1], [], []>} : vector<8x80xf32>, vector<80x64xf32>, vector<8x64xf32> -> vector<8x64xf32>
    %61 = arith.addf %47, %60 : vector<8x64xf32>
    %cst_57 = arith.constant dense<0.000000e+00> : vector<8x64xf32>
    %62 = tpu.matmul %59, %53, %cst_57 {dimension_numbers = #tpu.dot_dimension_numbers<[1], [0], [0], [1], [0, 0, 1, 1], [], []>} : vector<8x80xf32>, vector<80x64xf32>, vector<8x64xf32> -> vector<8x64xf32>
    %63 = arith.addf %49, %62 : vector<8x64xf32>
    %c8 = arith.constant 8 : index
    %c0_58 = arith.constant 0 : index
    %c0_59 = arith.constant 0 : index
    %64 = vector.load %arg2[%c8, %c0_58, %c0_59] : memref<10x80x64xf32, #tpu.memory_space<vmem>>, vector<1x80x64xf32>
    %65 = vector.shape_cast %64 : vector<1x80x64xf32> to vector<80x64xf32>
    %c9 = arith.constant 9 : index
    %c0_60 = arith.constant 0 : index
    %c0_61 = arith.constant 0 : index
    %66 = vector.load %arg2[%c9, %c0_60, %c0_61] : memref<10x80x64xf32, #tpu.memory_space<vmem>>, vector<1x80x64xf32>
    %67 = vector.shape_cast %66 : vector<1x80x64xf32> to vector<80x64xf32>
    %c4_62 = arith.constant 4 : index
    %c0_63 = arith.constant 0 : index
    %68 = tpu.strided_load %arg13[%c4_62, %c0_63] {strides = array<i32: 2, 1>} : memref<20x80xf32, #tpu.memory_space<vmem>>, vector<8x80xf32>
    %cst_64 = arith.constant dense<0.000000e+00> : vector<8x64xf32>
    %69 = tpu.matmul %68, %65, %cst_64 {dimension_numbers = #tpu.dot_dimension_numbers<[1], [0], [0], [1], [0, 0, 1, 1], [], []>} : vector<8x80xf32>, vector<80x64xf32>, vector<8x64xf32> -> vector<8x64xf32>
    %70 = arith.addf %56, %69 : vector<8x64xf32>
    %cst_65 = arith.constant dense<0.000000e+00> : vector<8x64xf32>
    %71 = tpu.matmul %68, %67, %cst_65 {dimension_numbers = #tpu.dot_dimension_numbers<[1], [0], [0], [1], [0, 0, 1, 1], [], []>} : vector<8x80xf32>, vector<80x64xf32>, vector<8x64xf32> -> vector<8x64xf32>
    %72 = arith.addf %58, %71 : vector<8x64xf32>
    %c5_66 = arith.constant 5 : index
    %c0_67 = arith.constant 0 : index
    %73 = tpu.strided_load %arg13[%c5_66, %c0_67] {strides = array<i32: 2, 1>} : memref<20x80xf32, #tpu.memory_space<vmem>>, vector<8x80xf32>
    %cst_68 = arith.constant dense<0.000000e+00> : vector<8x64xf32>
    %74 = tpu.matmul %73, %65, %cst_68 {dimension_numbers = #tpu.dot_dimension_numbers<[1], [0], [0], [1], [0, 0, 1, 1], [], []>} : vector<8x80xf32>, vector<80x64xf32>, vector<8x64xf32> -> vector<8x64xf32>
    %75 = arith.addf %61, %74 : vector<8x64xf32>
    %cst_69 = arith.constant dense<0.000000e+00> : vector<8x64xf32>
    %76 = tpu.matmul %73, %67, %cst_69 {dimension_numbers = #tpu.dot_dimension_numbers<[1], [0], [0], [1], [0, 0, 1, 1], [], []>} : vector<8x80xf32>, vector<80x64xf32>, vector<8x64xf32> -> vector<8x64xf32>
    %77 = arith.addf %63, %76 : vector<8x64xf32>
    %78 = arith.maximumf %70, %72 : vector<8x64xf32>
    %79 = arith.maximumf %75, %77 : vector<8x64xf32>
    %80 = arith.maximumf %78, %79 : vector<8x64xf32>
    %81 = vector.broadcast %3 : vector<1x64xf32> to vector<8x64xf32>
    %82 = arith.addf %80, %81 : vector<8x64xf32>
    %cst_70 = arith.constant 0.000000e+00 : f32
    %83 = vector.broadcast %cst_70 : f32 to vector<8x64xf32>
    %84 = arith.maximumf %82, %83 : vector<8x64xf32>
    %c0_71 = arith.constant 0 : index
    %c0_72 = arith.constant 0 : index
    %85 = vector.load %arg14[%c0_71, %c0_72] : memref<8x64xf32, #tpu.memory_space<vmem>>, vector<8x64xf32>
    tpu.vector_store %arg14[%c0_71, %c0_72], %84 {strides = array<i32>} : memref<8x64xf32, #tpu.memory_space<vmem>>, vector<8x64xf32>,
    %c0_73 = arith.constant 0 : index
    %c0_74 = arith.constant 0 : index
    %86 = vector.load %arg5[%c0_73, %c0_74] : memref<1x32xf32, #tpu.memory_space<vmem>>, vector<1x32xf32>
    %cst_75 = arith.constant 0.000000e+00 : f32
    %87 = vector.broadcast %cst_75 : f32 to vector<2x32xf32>
    %cst_76 = arith.constant 0.000000e+00 : f32
    %88 = vector.broadcast %cst_76 : f32 to vector<2x32xf32>
    %cst_77 = arith.constant 0.000000e+00 : f32
    %89 = vector.broadcast %cst_77 : f32 to vector<2x32xf32>
    %cst_78 = arith.constant 0.000000e+00 : f32
    %90 = vector.broadcast %cst_78 : f32 to vector<2x32xf32>
    %c0_79 = arith.constant 0 : index
    %c0_80 = arith.constant 0 : index
    %c0_81 = arith.constant 0 : index
    %91 = vector.load %arg4[%c0_79, %c0_80, %c0_81] : memref<10x64x32xf32, #tpu.memory_space<vmem>>, vector<1x64x32xf32>
    %92 = vector.shape_cast %91 : vector<1x64x32xf32> to vector<64x32xf32>
    %c1_82 = arith.constant 1 : index
    %c0_83 = arith.constant 0 : index
    %c0_84 = arith.constant 0 : index
    %93 = vector.load %arg4[%c1_82, %c0_83, %c0_84] : memref<10x64x32xf32, #tpu.memory_space<vmem>>, vector<1x64x32xf32>
    %94 = vector.shape_cast %93 : vector<1x64x32xf32> to vector<64x32xf32>
    %c0_85 = arith.constant 0 : index
    %c0_86 = arith.constant 0 : index
    %95 = tpu.strided_load %arg14[%c0_85, %c0_86] {strides = array<i32: 2, 1>} : memref<8x64xf32, #tpu.memory_space<vmem>>, vector<2x64xf32>
    %cst_87 = arith.constant dense<0.000000e+00> : vector<2x32xf32>
    %96 = tpu.matmul %95, %92, %cst_87 {dimension_numbers = #tpu.dot_dimension_numbers<[1], [0], [0], [1], [0, 0, 1, 1], [], []>} : vector<2x64xf32>, vector<64x32xf32>, vector<2x32xf32> -> vector<2x32xf32>
    %97 = arith.addf %87, %96 : vector<2x32xf32>
    %cst_88 = arith.constant dense<0.000000e+00> : vector<2x32xf32>
    %98 = tpu.matmul %95, %94, %cst_88 {dimension_numbers = #tpu.dot_dimension_numbers<[1], [0], [0], [1], [0, 0, 1, 1], [], []>} : vector<2x64xf32>, vector<64x32xf32>, vector<2x32xf32> -> vector<2x32xf32>
    %99 = arith.addf %88, %98 : vector<2x32xf32>
    %c1_89 = arith.constant 1 : index
    %c0_90 = arith.constant 0 : index
    %100 = tpu.strided_load %arg14[%c1_89, %c0_90] {strides = array<i32: 2, 1>} : memref<8x64xf32, #tpu.memory_space<vmem>>, vector<2x64xf32>
    %cst_91 = arith.constant dense<0.000000e+00> : vector<2x32xf32>
    %101 = tpu.matmul %100, %92, %cst_91 {dimension_numbers = #tpu.dot_dimension_numbers<[1], [0], [0], [1], [0, 0, 1, 1], [], []>} : vector<2x64xf32>, vector<64x32xf32>, vector<2x32xf32> -> vector<2x32xf32>
    %102 = arith.addf %89, %101 : vector<2x32xf32>
    %cst_92 = arith.constant dense<0.000000e+00> : vector<2x32xf32>
    %103 = tpu.matmul %100, %94, %cst_92 {dimension_numbers = #tpu.dot_dimension_numbers<[1], [0], [0], [1], [0, 0, 1, 1], [], []>} : vector<2x64xf32>, vector<64x32xf32>, vector<2x32xf32> -> vector<2x32xf32>
    %104 = arith.addf %90, %103 : vector<2x32xf32>
    %c2_93 = arith.constant 2 : index
    %c0_94 = arith.constant 0 : index
    %c0_95 = arith.constant 0 : index
    %105 = vector.load %arg4[%c2_93, %c0_94, %c0_95] : memref<10x64x32xf32, #tpu.memory_space<vmem>>, vector<1x64x32xf32>
    %106 = vector.shape_cast %105 : vector<1x64x32xf32> to vector<64x32xf32>
    %c3_96 = arith.constant 3 : index
    %c0_97 = arith.constant 0 : index
    %c0_98 = arith.constant 0 : index
    %107 = vector.load %arg4[%c3_96, %c0_97, %c0_98] : memref<10x64x32xf32, #tpu.memory_space<vmem>>, vector<1x64x32xf32>
    %108 = vector.shape_cast %107 : vector<1x64x32xf32> to vector<64x32xf32>
    %c1_99 = arith.constant 1 : index
    %c0_100 = arith.constant 0 : index
    %109 = tpu.strided_load %arg14[%c1_99, %c0_100] {strides = array<i32: 2, 1>} : memref<8x64xf32, #tpu.memory_space<vmem>>, vector<2x64xf32>
    %cst_101 = arith.constant dense<0.000000e+00> : vector<2x32xf32>
    %110 = tpu.matmul %109, %106, %cst_101 {dimension_numbers = #tpu.dot_dimension_numbers<[1], [0], [0], [1], [0, 0, 1, 1], [], []>} : vector<2x64xf32>, vector<64x32xf32>, vector<2x32xf32> -> vector<2x32xf32>
    %111 = arith.addf %97, %110 : vector<2x32xf32>
    %cst_102 = arith.constant dense<0.000000e+00> : vector<2x32xf32>
    %112 = tpu.matmul %109, %108, %cst_102 {dimension_numbers = #tpu.dot_dimension_numbers<[1], [0], [0], [1], [0, 0, 1, 1], [], []>} : vector<2x64xf32>, vector<64x32xf32>, vector<2x32xf32> -> vector<2x32xf32>
    %113 = arith.addf %99, %112 : vector<2x32xf32>
    %c2_103 = arith.constant 2 : index
    %c0_104 = arith.constant 0 : index
    %114 = tpu.strided_load %arg14[%c2_103, %c0_104] {strides = array<i32: 2, 1>} : memref<8x64xf32, #tpu.memory_space<vmem>>, vector<2x64xf32>
    %cst_105 = arith.constant dense<0.000000e+00> : vector<2x32xf32>
    %115 = tpu.matmul %114, %106, %cst_105 {dimension_numbers = #tpu.dot_dimension_numbers<[1], [0], [0], [1], [0, 0, 1, 1], [], []>} : vector<2x64xf32>, vector<64x32xf32>, vector<2x32xf32> -> vector<2x32xf32>
    %116 = arith.addf %102, %115 : vector<2x32xf32>
    %cst_106 = arith.constant dense<0.000000e+00> : vector<2x32xf32>
    %117 = tpu.matmul %114, %108, %cst_106 {dimension_numbers = #tpu.dot_dimension_numbers<[1], [0], [0], [1], [0, 0, 1, 1], [], []>} : vector<2x64xf32>, vector<64x32xf32>, vector<2x32xf32> -> vector<2x32xf32>
    %118 = arith.addf %104, %117 : vector<2x32xf32>
    %c4_107 = arith.constant 4 : index
    %c0_108 = arith.constant 0 : index
    %c0_109 = arith.constant 0 : index
    %119 = vector.load %arg4[%c4_107, %c0_108, %c0_109] : memref<10x64x32xf32, #tpu.memory_space<vmem>>, vector<1x64x32xf32>
    %120 = vector.shape_cast %119 : vector<1x64x32xf32> to vector<64x32xf32>
    %c5_110 = arith.constant 5 : index
    %c0_111 = arith.constant 0 : index
    %c0_112 = arith.constant 0 : index
    %121 = vector.load %arg4[%c5_110, %c0_111, %c0_112] : memref<10x64x32xf32, #tpu.memory_space<vmem>>, vector<1x64x32xf32>
    %122 = vector.shape_cast %121 : vector<1x64x32xf32> to vector<64x32xf32>
    %c2_113 = arith.constant 2 : index
    %c0_114 = arith.constant 0 : index
    %123 = tpu.strided_load %arg14[%c2_113, %c0_114] {strides = array<i32: 2, 1>} : memref<8x64xf32, #tpu.memory_space<vmem>>, vector<2x64xf32>
    %cst_115 = arith.constant dense<0.000000e+00> : vector<2x32xf32>
    %124 = tpu.matmul %123, %120, %cst_115 {dimension_numbers = #tpu.dot_dimension_numbers<[1], [0], [0], [1], [0, 0, 1, 1], [], []>} : vector<2x64xf32>, vector<64x32xf32>, vector<2x32xf32> -> vector<2x32xf32>
    %125 = arith.addf %111, %124 : vector<2x32xf32>
    %cst_116 = arith.constant dense<0.000000e+00> : vector<2x32xf32>
    %126 = tpu.matmul %123, %122, %cst_116 {dimension_numbers = #tpu.dot_dimension_numbers<[1], [0], [0], [1], [0, 0, 1, 1], [], []>} : vector<2x64xf32>, vector<64x32xf32>, vector<2x32xf32> -> vector<2x32xf32>
    %127 = arith.addf %113, %126 : vector<2x32xf32>
    %c3_117 = arith.constant 3 : index
    %c0_118 = arith.constant 0 : index
    %128 = tpu.strided_load %arg14[%c3_117, %c0_118] {strides = array<i32: 2, 1>} : memref<8x64xf32, #tpu.memory_space<vmem>>, vector<2x64xf32>
    %cst_119 = arith.constant dense<0.000000e+00> : vector<2x32xf32>
    %129 = tpu.matmul %128, %120, %cst_119 {dimension_numbers = #tpu.dot_dimension_numbers<[1], [0], [0], [1], [0, 0, 1, 1], [], []>} : vector<2x64xf32>, vector<64x32xf32>, vector<2x32xf32> -> vector<2x32xf32>
    %130 = arith.addf %116, %129 : vector<2x32xf32>
    %cst_120 = arith.constant dense<0.000000e+00> : vector<2x32xf32>
    %131 = tpu.matmul %128, %122, %cst_120 {dimension_numbers = #tpu.dot_dimension_numbers<[1], [0], [0], [1], [0, 0, 1, 1], [], []>} : vector<2x64xf32>, vector<64x32xf32>, vector<2x32xf32> -> vector<2x32xf32>
    %132 = arith.addf %118, %131 : vector<2x32xf32>
    %c6_121 = arith.constant 6 : index
    %c0_122 = arith.constant 0 : index
    %c0_123 = arith.constant 0 : index
    %133 = vector.load %arg4[%c6_121, %c0_122, %c0_123] : memref<10x64x32xf32, #tpu.memory_space<vmem>>, vector<1x64x32xf32>
    %134 = vector.shape_cast %133 : vector<1x64x32xf32> to vector<64x32xf32>
    %c7_124 = arith.constant 7 : index
    %c0_125 = arith.constant 0 : index
    %c0_126 = arith.constant 0 : index
    %135 = vector.load %arg4[%c7_124, %c0_125, %c0_126] : memref<10x64x32xf32, #tpu.memory_space<vmem>>, vector<1x64x32xf32>
    %136 = vector.shape_cast %135 : vector<1x64x32xf32> to vector<64x32xf32>
    %c3_127 = arith.constant 3 : index
    %c0_128 = arith.constant 0 : index
    %137 = tpu.strided_load %arg14[%c3_127, %c0_128] {strides = array<i32: 2, 1>} : memref<8x64xf32, #tpu.memory_space<vmem>>, vector<2x64xf32>
    %cst_129 = arith.constant dense<0.000000e+00> : vector<2x32xf32>
    %138 = tpu.matmul %137, %134, %cst_129 {dimension_numbers = #tpu.dot_dimension_numbers<[1], [0], [0], [1], [0, 0, 1, 1], [], []>} : vector<2x64xf32>, vector<64x32xf32>, vector<2x32xf32> -> vector<2x32xf32>
    %139 = arith.addf %125, %138 : vector<2x32xf32>
    %cst_130 = arith.constant dense<0.000000e+00> : vector<2x32xf32>
    %140 = tpu.matmul %137, %136, %cst_130 {dimension_numbers = #tpu.dot_dimension_numbers<[1], [0], [0], [1], [0, 0, 1, 1], [], []>} : vector<2x64xf32>, vector<64x32xf32>, vector<2x32xf32> -> vector<2x32xf32>
    %141 = arith.addf %127, %140 : vector<2x32xf32>
    %c4_131 = arith.constant 4 : index
    %c0_132 = arith.constant 0 : index
    %142 = tpu.strided_load %arg14[%c4_131, %c0_132] {strides = array<i32: 2, 1>} : memref<8x64xf32, #tpu.memory_space<vmem>>, vector<2x64xf32>
    %cst_133 = arith.constant dense<0.000000e+00> : vector<2x32xf32>
    %143 = tpu.matmul %142, %134, %cst_133 {dimension_numbers = #tpu.dot_dimension_numbers<[1], [0], [0], [1], [0, 0, 1, 1], [], []>} : vector<2x64xf32>, vector<64x32xf32>, vector<2x32xf32> -> vector<2x32xf32>
    %144 = arith.addf %130, %143 : vector<2x32xf32>
    %cst_134 = arith.constant dense<0.000000e+00> : vector<2x32xf32>
    %145 = tpu.matmul %142, %136, %cst_134 {dimension_numbers = #tpu.dot_dimension_numbers<[1], [0], [0], [1], [0, 0, 1, 1], [], []>} : vector<2x64xf32>, vector<64x32xf32>, vector<2x32xf32> -> vector<2x32xf32>
    %146 = arith.addf %132, %145 : vector<2x32xf32>
    %c8_135 = arith.constant 8 : index
    %c0_136 = arith.constant 0 : index
    %c0_137 = arith.constant 0 : index
    %147 = vector.load %arg4[%c8_135, %c0_136, %c0_137] : memref<10x64x32xf32, #tpu.memory_space<vmem>>, vector<1x64x32xf32>
    %148 = vector.shape_cast %147 : vector<1x64x32xf32> to vector<64x32xf32>
    %c9_138 = arith.constant 9 : index
    %c0_139 = arith.constant 0 : index
    %c0_140 = arith.constant 0 : index
    %149 = vector.load %arg4[%c9_138, %c0_139, %c0_140] : memref<10x64x32xf32, #tpu.memory_space<vmem>>, vector<1x64x32xf32>
    %150 = vector.shape_cast %149 : vector<1x64x32xf32> to vector<64x32xf32>
    %c4_141 = arith.constant 4 : index
    %c0_142 = arith.constant 0 : index
    %151 = tpu.strided_load %arg14[%c4_141, %c0_142] {strides = array<i32: 2, 1>} : memref<8x64xf32, #tpu.memory_space<vmem>>, vector<2x64xf32>
    %cst_143 = arith.constant dense<0.000000e+00> : vector<2x32xf32>
    %152 = tpu.matmul %151, %148, %cst_143 {dimension_numbers = #tpu.dot_dimension_numbers<[1], [0], [0], [1], [0, 0, 1, 1], [], []>} : vector<2x64xf32>, vector<64x32xf32>, vector<2x32xf32> -> vector<2x32xf32>
    %153 = arith.addf %139, %152 : vector<2x32xf32>
    %cst_144 = arith.constant dense<0.000000e+00> : vector<2x32xf32>
    %154 = tpu.matmul %151, %150, %cst_144 {dimension_numbers = #tpu.dot_dimension_numbers<[1], [0], [0], [1], [0, 0, 1, 1], [], []>} : vector<2x64xf32>, vector<64x32xf32>, vector<2x32xf32> -> vector<2x32xf32>
    %155 = arith.addf %141, %154 : vector<2x32xf32>
    %c5_145 = arith.constant 5 : index
    %c0_146 = arith.constant 0 : index
    %156 = tpu.strided_load %arg14[%c5_145, %c0_146] {strides = array<i32: 2, 1>} : memref<8x64xf32, #tpu.memory_space<vmem>>, vector<2x64xf32>
    %cst_147 = arith.constant dense<0.000000e+00> : vector<2x32xf32>
    %157 = tpu.matmul %156, %148, %cst_147 {dimension_numbers = #tpu.dot_dimension_numbers<[1], [0], [0], [1], [0, 0, 1, 1], [], []>} : vector<2x64xf32>, vector<64x32xf32>, vector<2x32xf32> -> vector<2x32xf32>
    %158 = arith.addf %144, %157 : vector<2x32xf32>
    %cst_148 = arith.constant dense<0.000000e+00> : vector<2x32xf32>
    %159 = tpu.matmul %156, %150, %cst_148 {dimension_numbers = #tpu.dot_dimension_numbers<[1], [0], [0], [1], [0, 0, 1, 1], [], []>} : vector<2x64xf32>, vector<64x32xf32>, vector<2x32xf32> -> vector<2x32xf32>
    %160 = arith.addf %146, %159 : vector<2x32xf32>
    %161 = arith.maximumf %153, %155 : vector<2x32xf32>
    %162 = arith.maximumf %158, %160 : vector<2x32xf32>
    %163 = arith.maximumf %161, %162 : vector<2x32xf32>
    %164 = vector.broadcast %86 : vector<1x32xf32> to vector<2x32xf32>
    %165 = arith.addf %163, %164 : vector<2x32xf32>
    %cst_149 = arith.constant 0.000000e+00 : f32
    %166 = vector.broadcast %cst_149 : f32 to vector<2x32xf32>
    %167 = arith.maximumf %165, %166 : vector<2x32xf32>
    %168 = vector.extract_strided_slice %167 {offsets = [0, 0], sizes = [1, 32], strides = [1, 1]} : vector<2x32xf32> to vector<1x32xf32>
    %c0_150 = arith.constant 0 : index
    %c0_151 = arith.constant 0 : index
    %c0_152 = arith.constant 0 : index
    %169 = vector.load %arg6[%c0_150, %c0_151, %c0_152] : memref<2x32x32xf32, #tpu.memory_space<vmem>>, vector<1x32x32xf32>
    %170 = vector.shape_cast %169 : vector<1x32x32xf32> to vector<32x32xf32>
    %cst_153 = arith.constant dense<0.000000e+00> : vector<1x32xf32>
    %171 = tpu.matmul %168, %170, %cst_153 {dimension_numbers = #tpu.dot_dimension_numbers<[1], [0], [0], [1], [0, 0, 1, 1], [], []>} : vector<1x32xf32>, vector<32x32xf32>, vector<1x32xf32> -> vector<1x32xf32>
    %172 = vector.extract_strided_slice %167 {offsets = [1, 0], sizes = [1, 32], strides = [1, 1]} : vector<2x32xf32> to vector<1x32xf32>
    %c1_154 = arith.constant 1 : index
    %c0_155 = arith.constant 0 : index
    %c0_156 = arith.constant 0 : index
    %173 = vector.load %arg6[%c1_154, %c0_155, %c0_156] : memref<2x32x32xf32, #tpu.memory_space<vmem>>, vector<1x32x32xf32>
    %174 = vector.shape_cast %173 : vector<1x32x32xf32> to vector<32x32xf32>
    %cst_157 = arith.constant dense<0.000000e+00> : vector<1x32xf32>
    %175 = tpu.matmul %172, %174, %cst_157 {dimension_numbers = #tpu.dot_dimension_numbers<[1], [0], [0], [1], [0, 0, 1, 1], [], []>} : vector<1x32xf32>, vector<32x32xf32>, vector<1x32xf32> -> vector<1x32xf32>
    %176 = arith.addf %171, %175 : vector<1x32xf32>
    %c0_158 = arith.constant 0 : index
    %c0_159 = arith.constant 0 : index
    %177 = vector.load %arg7[%c0_158, %c0_159] : memref<1x32xf32, #tpu.memory_space<vmem>>, vector<1x32xf32>
    %178 = arith.addf %176, %177 : vector<1x32xf32>
    %cst_160 = arith.constant 0.000000e+00 : f32
    %179 = vector.broadcast %cst_160 : f32 to vector<1x32xf32>
    %180 = arith.maximumf %178, %179 : vector<1x32xf32>
    %c0_161 = arith.constant 0 : index
    %c0_162 = arith.constant 0 : index
    %181 = vector.load %arg8[%c0_161, %c0_162] : memref<32x16xf32, #tpu.memory_space<vmem>>, vector<32x16xf32>
    %cst_163 = arith.constant dense<0.000000e+00> : vector<1x16xf32>
    %182 = tpu.matmul %180, %181, %cst_163 {dimension_numbers = #tpu.dot_dimension_numbers<[1], [0], [0], [1], [0, 0, 1, 1], [], []>} : vector<1x32xf32>, vector<32x16xf32>, vector<1x16xf32> -> vector<1x16xf32>
    %c0_164 = arith.constant 0 : index
    %c0_165 = arith.constant 0 : index
    %183 = vector.load %arg9[%c0_164, %c0_165] : memref<1x16xf32, #tpu.memory_space<vmem>>, vector<1x16xf32>
    %184 = arith.addf %182, %183 : vector<1x16xf32>
    %cst_166 = arith.constant 0.000000e+00 : f32
    %185 = vector.broadcast %cst_166 : f32 to vector<1x16xf32>
    %186 = arith.maximumf %184, %185 : vector<1x16xf32>
    %c0_167 = arith.constant 0 : index
    %c0_168 = arith.constant 0 : index
    %187 = vector.load %arg10[%c0_167, %c0_168] : memref<16x10xf32, #tpu.memory_space<vmem>>, vector<16x10xf32>
    %cst_169 = arith.constant dense<0.000000e+00> : vector<1x10xf32>
    %188 = tpu.matmul %186, %187, %cst_169 {dimension_numbers = #tpu.dot_dimension_numbers<[1], [0], [0], [1], [0, 0, 1, 1], [], []>} : vector<1x16xf32>, vector<16x10xf32>, vector<1x10xf32> -> vector<1x10xf32>
    %c0_170 = arith.constant 0 : index
    %c0_171 = arith.constant 0 : index
    %189 = vector.load %arg11[%c0_170, %c0_171] : memref<1x10xf32, #tpu.memory_space<vmem>>, vector<1x10xf32>
    %190 = arith.addf %188, %189 : vector<1x10xf32>
    %c0_172 = arith.constant 0 : index
    %c0_173 = arith.constant 0 : index
    %c0_174 = arith.constant 0 : index
    %191 = vector.load %arg12[%c0_172, %c0_173, %c0_174] : memref<1x1x10xf32, #tpu.memory_space<vmem>>, vector<1x1x10xf32>
    %192 = vector.shape_cast %191 : vector<1x1x10xf32> to vector<1x10xf32>
    %193 = vector.shape_cast %190 : vector<1x10xf32> to vector<1x1x10xf32>
    tpu.vector_store %arg12[%c0_172, %c0_173, %c0_174], %193 {strides = array<i32>} : memref<1x1x10xf32, #tpu.memory_space<vmem>>, vector<1x1x10xf32>,
    return
  }
  func.func @transform_0(%arg0: i32) -> (i32, i32, i32) {
    %c0_i32 = arith.constant 0 : i32
    %c0_i32_0 = arith.constant 0 : i32
    %c0_i32_1 = arith.constant 0 : i32
    return %arg0, %c0_i32, %c0_i32_0 : i32, i32, i32
  }
  func.func @transform_1(%arg0: i32) -> (i32, i32, i32) {
    %c0_i32 = arith.constant 0 : i32
    %c0_i32_0 = arith.constant 0 : i32
    %c0_i32_1 = arith.constant 0 : i32
    %c0_i32_2 = arith.constant 0 : i32
    return %c0_i32, %c0_i32_0, %c0_i32_1 : i32, i32, i32
  }
  func.func @transform_2(%arg0: i32) -> (i32, i32) {
    %c0_i32 = arith.constant 0 : i32
    %c0_i32_0 = arith.constant 0 : i32
    %c0_i32_1 = arith.constant 0 : i32
    return %c0_i32, %c0_i32_0 : i32, i32
  }
  func.func @transform_3(%arg0: i32) -> (i32, i32, i32) {
    %c0_i32 = arith.constant 0 : i32
    %c0_i32_0 = arith.constant 0 : i32
    %c0_i32_1 = arith.constant 0 : i32
    %c0_i32_2 = arith.constant 0 : i32
    return %c0_i32, %c0_i32_0, %c0_i32_1 : i32, i32, i32
  }
  func.func @transform_4(%arg0: i32) -> (i32, i32) {
    %c0_i32 = arith.constant 0 : i32
    %c0_i32_0 = arith.constant 0 : i32
    %c0_i32_1 = arith.constant 0 : i32
    return %c0_i32, %c0_i32_0 : i32, i32
  }
  func.func @transform_5(%arg0: i32) -> (i32, i32, i32) {
    %c0_i32 = arith.constant 0 : i32
    %c0_i32_0 = arith.constant 0 : i32
    %c0_i32_1 = arith.constant 0 : i32
    %c0_i32_2 = arith.constant 0 : i32
    return %c0_i32, %c0_i32_0, %c0_i32_1 : i32, i32, i32
  }
  func.func @transform_6(%arg0: i32) -> (i32, i32) {
    %c0_i32 = arith.constant 0 : i32
    %c0_i32_0 = arith.constant 0 : i32
    %c0_i32_1 = arith.constant 0 : i32
    return %c0_i32, %c0_i32_0 : i32, i32
  }
  func.func @transform_7(%arg0: i32) -> (i32, i32) {
    %c0_i32 = arith.constant 0 : i32
    %c0_i32_0 = arith.constant 0 : i32
    %c0_i32_1 = arith.constant 0 : i32
    return %c0_i32, %c0_i32_0 : i32, i32
  }
  func.func @transform_8(%arg0: i32) -> (i32, i32) {
    %c0_i32 = arith.constant 0 : i32
    %c0_i32_0 = arith.constant 0 : i32
    %c0_i32_1 = arith.constant 0 : i32
    return %c0_i32, %c0_i32_0 : i32, i32
  }
  func.func @transform_9(%arg0: i32) -> (i32, i32) {
    %c0_i32 = arith.constant 0 : i32
    %c0_i32_0 = arith.constant 0 : i32
    %c0_i32_1 = arith.constant 0 : i32
    return %c0_i32, %c0_i32_0 : i32, i32
  }
  func.func @transform_10(%arg0: i32) -> (i32, i32) {
    %c0_i32 = arith.constant 0 : i32
    %c0_i32_0 = arith.constant 0 : i32
    %c0_i32_1 = arith.constant 0 : i32
    return %c0_i32, %c0_i32_0 : i32, i32
  }
  func.func @transform_11(%arg0: i32) -> (i32, i32, i32) {
    %c0_i32 = arith.constant 0 : i32
    %c0_i32_0 = arith.constant 0 : i32
    %c0_i32_1 = arith.constant 0 : i32
    return %arg0, %c0_i32, %c0_i32_0 : i32, i32, i32
  }
}

</mosaic_0001>

<llo_original>
// kernel: cnn_dynamic_forward.1
$region0: #{cnn_dynamic_forward.1}
  #allocation0 [shape = 'u32[]', space=smem, size = 0x4, offset = 0x4, fixed_abs, tag = 'smem constant byte address 0x4 - core index']
  #allocation1 [shape = 'u32[144,128]{1,0:T(1,128)}', space=vmem, size = 0x12000, scoped, tag = 'internal scratch']
  #allocation2 [shape = 'f32[20,80]{1,0:T(8,128)}', space=vmem, size = 0x3000, scoped, tag = 'scratch operand']
  #allocation3 [shape = 'f32[8,64]{1,0:T(8,128)}', space=vmem, size = 0x1000, scoped, tag = 'scratch operand']
  %s0 = inlined_call_operand.vmem [shape: f32[2,20,80], index: 0, kind: input, shape index: {}]
  %s1 = inlined_call_operand.hbm [shape: f32[10,80,64], index: 1, kind: input, shape index: {}]
  %s2 = inlined_call_operand.vmem [shape: f32[1,64], index: 2, kind: input, shape index: {}]
  %s3 = inlined_call_operand.hbm [shape: f32[10,64,32], index: 3, kind: input, shape index: {}]
  %s4 = inlined_call_operand.vmem [shape: f32[1,32], index: 4, kind: input, shape index: {}]
  %s5 = inlined_call_operand.vmem [shape: f32[2,32,32], index: 5, kind: input, shape index: {}]
  %s6 = inlined_call_operand.vmem [shape: f32[1,32], index: 6, kind: input, shape index: {}]
  %s7 = inlined_call_operand.vmem [shape: f32[32,16], index: 7, kind: input, shape index: {}]
  %s8 = inlined_call_operand.vmem [shape: f32[1,16], index: 8, kind: input, shape index: {}]
  %s9 = inlined_call_operand.vmem [shape: f32[16,10], index: 9, kind: input, shape index: {}]
  %s10 = inlined_call_operand.vmem [shape: f32[1,10], index: 10, kind: input, shape index: {}]
  %s11 = inlined_call_operand.hbm [shape: f32[2,1,10], index: 11, kind: output, shape index: {}]
  %s12 = sld [smem:[#allocation0]]
  $region85: #{cnn_dynamic_forward.1} parent=0
    _
  %s14 = ssub.s32 1, %s12
  %s15 = scalar_select 0, %s14, %s12
  $region1: #{cnn_dynamic_forward.1} parent=0
    #allocation4 [shape = 'u8[409600]{0}', space=vmem, size = 0x64000, scoped, tag = 'input window, operand 1, single buffered']
    #allocation5 [shape = 's32[2]{0}', space=sflag, size = 0x8, scoped, tag = 'scoped memory for cnn_dynamic_forward.1']
    #allocation6 [shape = 's32[2]{0}', space=sflag, size = 0x8, scoped, tag = 'scoped memory for cnn_dynamic_forward.1']
    #allocation7 [shape = 'u8[327680]{0}', space=vmem, size = 0x50000, scoped, tag = 'input window, operand 3, single buffered']
    #allocation8 [shape = 's32[1]{0}', space=sflag, size = 0x4, scoped, tag = 'scoped memory for cnn_dynamic_forward.1']
    #allocation9 [shape = 'u8[1024]{0}', space=vmem, size = 0x400, scoped, tag = 'output window, operand 0']
    %16 = vsyncpa [#allocation5], 0
    %17 = vsyncpa [#allocation8], 0
    %18 = vsyncpa [#allocation6], 0
    %s19 = scalar_lea.sflag [#allocation6], 1
    %20 = vsyncpa %s19, 0
    loop: start=0, step=1, limit=4
    $region2: #{cnn_dynamic_forward.1} parent=1 // loop_pre_header
      _
    $region3: #{cnn_dynamic_forward.1} parent=1 // loop_header
      %s22 = sphi 0, %s26
      %p23 = scmp.ge.s32.totalorder %s22, 4
      %s32 = sphi 0, %s34
      %s35 = sphi 0, %s32
      %s36 = sphi 0, %s35
      %s52 = sphi 0, %s36
      %s56 = sphi 0, %s56
      %s58 = sphi 0, %s56
      %s59 = sphi 0, %s58
      %s73 = sphi 0, %s59
      %s77 = sphi 0, %s77
      %s79 = sphi 0, %s77
      %s80 = sphi 0, %s79
      %s94 = sphi 0, %s80
      %s98 = sphi 0, %s98
      %s100 = sphi 0, %s98
      %s101 = sphi 0, %s100
      %s115 = sphi 0, %s101
      %s119 = sphi 0, %s119
      %s121 = sphi 0, %s119
      %s122 = sphi 0, %s121
      %s136 = sphi 0, %s122
      %s140 = sphi 0, %s140
      %s142 = sphi 0, %s140
      %s143 = sphi 0, %s142
      %s157 = sphi 0, %s143
      %s161 = sphi 0, %s161
      %s163 = sphi 0, %s161
      %s164 = sphi 0, %s163
      %s178 = sphi 0, %s164
      %s182 = sphi 0, %s182
      %s184 = sphi 0, %s182
      %s185 = sphi 0, %s184
      %s199 = sphi 0, %s185
      %s203 = sphi 0, %s203
      %s205 = sphi 0, %s203
      %s206 = sphi 0, %s205
      %s220 = sphi 0, %s206
      %s224 = sphi 0, %s224
      %s226 = sphi 0, %s224
      %s227 = sphi 0, %s226
      %s241 = sphi 0, %s227
      %s245 = sphi 0, %s245
      %s247 = sphi 0, %s245
      %s248 = sphi 0, %s247
      %s262 = sphi 0, %s248
      %s268 = sphi 0, %s270
      %s271 = sphi 0, %s268
      %s272 = sphi 0, %s271
      %s288 = sphi 0, %s272
    $region4: #{cnn_dynamic_forward.1} parent=1 // loop_header_branch
      %25 = sbr.rel (%p23) target = $region8
    $region5: #{cnn_dynamic_forward.1} parent=1 // loop_body
      %s27 = ssub.s32 %s22, 1
      %s28 = ssub.s32 %s22, 2
      %s29 = sadd.s32 %s22, 1
      %s30 = ssub.s32 %s22, %s29
      %p31 = scmp.eq.s32.totalorder %s30, 0
      %s33 = sadd.s32 %s32, 1
      %s34 = scalar_select %p31, %s32, %s33
      %p37 = pneg %p31
      %p38 = scmp.eq.s32.totalorder %s22, 1
      %p39 = por %p37, %p38
      %p40 = scmp.ne.s32.totalorder %s32, %s35
      %p41 = scmp.eq.s32.totalorder %s22, 0
      %p42 = por %p40, %p41
      %p43 = scmp.ne.s32.totalorder %s32, %s35
      %p44 = scmp.eq.s32.totalorder %s27, 1
      %p45 = por %p43, %p44
      %p46 = scmp.ne.s32.totalorder %s35, %s36
      %p47 = scmp.eq.s32.totalorder %s27, 0
      %p48 = por %p46, %p47
      %p49 = scmp.ne.s32.totalorder %s35, %s36
      %p50 = scmp.eq.s32.totalorder %s28, 1
      %p51 = por %p49, %p50
      %p53 = scmp.ne.s32.totalorder %s36, %s52
      %p54 = scmp.eq.s32.totalorder %s28, 0
      %p55 = por %p53, %p54
      %s57 = sadd.s32 %s56, 1
      %p60 = scmp.eq.s32.totalorder %s22, 1
      %p61 = scmp.ne.s32.totalorder %s56, %s58
      %p62 = scmp.eq.s32.totalorder %s22, 0
      %p63 = por %p61, %p62
      %p64 = scmp.ne.s32.totalorder %s56, %s58
      %p65 = scmp.eq.s32.totalorder %s27, 1
      %p66 = por %p64, %p65
      %p67 = scmp.ne.s32.totalorder %s58, %s59
      %p68 = scmp.eq.s32.totalorder %s27, 0
      %p69 = por %p67, %p68
      %p70 = scmp.ne.s32.totalorder %s58, %s59
      %p71 = scmp.eq.s32.totalorder %s28, 1
      %p72 = por %p70, %p71
      %p74 = scmp.ne.s32.totalorder %s59, %s73
      %p75 = scmp.eq.s32.totalorder %s28, 0
      %p76 = por %p74, %p75
      %s78 = sadd.s32 %s77, 1
      %p81 = scmp.eq.s32.totalorder %s22, 1
      %p82 = scmp.ne.s32.totalorder %s77, %s79
      %p83 = scmp.eq.s32.totalorder %s22, 0
      %p84 = por %p82, %p83
      %p85 = scmp.ne.s32.totalorder %s77, %s79
      %p86 = scmp.eq.s32.totalorder %s27, 1
      %p87 = por %p85, %p86
      %p88 = scmp.ne.s32.totalorder %s79, %s80
      %p89 = scmp.eq.s32.totalorder %s27, 0
      %p90 = por %p88, %p89
      %p91 = scmp.ne.s32.totalorder %s79, %s80
      %p92 = scmp.eq.s32.totalorder %s28, 1
      %p93 = por %p91, %p92
      %p95 = scmp.ne.s32.totalorder %s80, %s94
      %p96 = scmp.eq.s32.totalorder %s28, 0
      %p97 = por %p95, %p96
      %s99 = sadd.s32 %s98, 1
      %p102 = scmp.eq.s32.totalorder %s22, 1
      %p103 = scmp.ne.s32.totalorder %s98, %s100
      %p104 = scmp.eq.s32.totalorder %s22, 0
      %p105 = por %p103, %p104
      %p106 = scmp.ne.s32.totalorder %s98, %s100
      %p107 = scmp.eq.s32.totalorder %s27, 1
      %p108 = por %p106, %p107
      %p109 = scmp.ne.s32.totalorder %s100, %s101
      %p110 = scmp.eq.s32.totalorder %s27, 0
      %p111 = por %p109, %p110
      %p112 = scmp.ne.s32.totalorder %s100, %s101
      %p113 = scmp.eq.s32.totalorder %s28, 1
      %p114 = por %p112, %p113
      %p116 = scmp.ne.s32.totalorder %s101, %s115
      %p117 = scmp.eq.s32.totalorder %s28, 0
      %p118 = por %p116, %p117
      %s120 = sadd.s32 %s119, 1
      %p123 = scmp.eq.s32.totalorder %s22, 1
      %p124 = scmp.ne.s32.totalorder %s119, %s121
      %p125 = scmp.eq.s32.totalorder %s22, 0
      %p126 = por %p124, %p125
      %p127 = scmp.ne.s32.totalorder %s119, %s121
      %p128 = scmp.eq.s32.totalorder %s27, 1
      %p129 = por %p127, %p128
      %p130 = scmp.ne.s32.totalorder %s121, %s122
      %p131 = scmp.eq.s32.totalorder %s27, 0
      %p132 = por %p130, %p131
      %p133 = scmp.ne.s32.totalorder %s121, %s122
      %p134 = scmp.eq.s32.totalorder %s28, 1
      %p135 = por %p133, %p134
      %p137 = scmp.ne.s32.totalorder %s122, %s136
      %p138 = scmp.eq.s32.totalorder %s28, 0
      %p139 = por %p137, %p138
      %s141 = sadd.s32 %s140, 1
      %p144 = scmp.eq.s32.totalorder %s22, 1
      %p145 = scmp.ne.s32.totalorder %s140, %s142
      %p146 = scmp.eq.s32.totalorder %s22, 0
      %p147 = por %p145, %p146
      %p148 = scmp.ne.s32.totalorder %s140, %s142
      %p149 = scmp.eq.s32.totalorder %s27, 1
      %p150 = por %p148, %p149
      %p151 = scmp.ne.s32.totalorder %s142, %s143
      %p152 = scmp.eq.s32.totalorder %s27, 0
      %p153 = por %p151, %p152
      %p154 = scmp.ne.s32.totalorder %s142, %s143
      %p155 = scmp.eq.s32.totalorder %s28, 1
      %p156 = por %p154, %p155
      %p158 = scmp.ne.s32.totalorder %s143, %s157
      %p159 = scmp.eq.s32.totalorder %s28, 0
      %p160 = por %p158, %p159
      %s162 = sadd.s32 %s161, 1
      %p165 = scmp.eq.s32.totalorder %s22, 1
      %p166 = scmp.ne.s32.totalorder %s161, %s163
      %p167 = scmp.eq.s32.totalorder %s22, 0
      %p168 = por %p166, %p167
      %p169 = scmp.ne.s32.totalorder %s161, %s163
      %p170 = scmp.eq.s32.totalorder %s27, 1
      %p171 = por %p169, %p170
      %p172 = scmp.ne.s32.totalorder %s163, %s164
      %p173 = scmp.eq.s32.totalorder %s27, 0
      %p174 = por %p172, %p173
      %p175 = scmp.ne.s32.totalorder %s163, %s164
      %p176 = scmp.eq.s32.totalorder %s28, 1
      %p177 = por %p175, %p176
      %p179 = scmp.ne.s32.totalorder %s164, %s178
      %p180 = scmp.eq.s32.totalorder %s28, 0
      %p181 = por %p179, %p180
      %s183 = sadd.s32 %s182, 1
      %p186 = scmp.eq.s32.totalorder %s22, 1
      %p187 = scmp.ne.s32.totalorder %s182, %s184
      %p188 = scmp.eq.s32.totalorder %s22, 0
      %p189 = por %p187, %p188
      %p190 = scmp.ne.s32.totalorder %s182, %s184
      %p191 = scmp.eq.s32.totalorder %s27, 1
      %p192 = por %p190, %p191
      %p193 = scmp.ne.s32.totalorder %s184, %s185
      %p194 = scmp.eq.s32.totalorder %s27, 0
      %p195 = por %p193, %p194
      %p196 = scmp.ne.s32.totalorder %s184, %s185
      %p197 = scmp.eq.s32.totalorder %s28, 1
      %p198 = por %p196, %p197
      %p200 = scmp.ne.s32.totalorder %s185, %s199
      %p201 = scmp.eq.s32.totalorder %s28, 0
      %p202 = por %p200, %p201
      %s204 = sadd.s32 %s203, 1
      %p207 = scmp.eq.s32.totalorder %s22, 1
      %p208 = scmp.ne.s32.totalorder %s203, %s205
      %p209 = scmp.eq.s32.totalorder %s22, 0
      %p210 = por %p208, %p209
      %p211 = scmp.ne.s32.totalorder %s203, %s205
      %p212 = scmp.eq.s32.totalorder %s27, 1
      %p213 = por %p211, %p212
      %p214 = scmp.ne.s32.totalorder %s205, %s206
      %p215 = scmp.eq.s32.totalorder %s27, 0
      %p216 = por %p214, %p215
      %p217 = scmp.ne.s32.totalorder %s205, %s206
      %p218 = scmp.eq.s32.totalorder %s28, 1
      %p219 = por %p217, %p218
      %p221 = scmp.ne.s32.totalorder %s206, %s220
      %p222 = scmp.eq.s32.totalorder %s28, 0
      %p223 = por %p221, %p222
      %s225 = sadd.s32 %s224, 1
      %p228 = scmp.eq.s32.totalorder %s22, 1
      %p229 = scmp.ne.s32.totalorder %s224, %s226
      %p230 = scmp.eq.s32.totalorder %s22, 0
      %p231 = por %p229, %p230
      %p232 = scmp.ne.s32.totalorder %s224, %s226
      %p233 = scmp.eq.s32.totalorder %s27, 1
      %p234 = por %p232, %p233
      %p235 = scmp.ne.s32.totalorder %s226, %s227
      %p236 = scmp.eq.s32.totalorder %s27, 0
      %p237 = por %p235, %p236
      %p238 = scmp.ne.s32.totalorder %s226, %s227
      %p239 = scmp.eq.s32.totalorder %s28, 1
      %p240 = por %p238, %p239
      %p242 = scmp.ne.s32.totalorder %s227, %s241
      %p243 = scmp.eq.s32.totalorder %s28, 0
      %p244 = por %p242, %p243
      %s246 = sadd.s32 %s245, 1
      %p249 = scmp.eq.s32.totalorder %s22, 1
      %p250 = scmp.ne.s32.totalorder %s245, %s247
      %p251 = scmp.eq.s32.totalorder %s22, 0
      %p252 = por %p250, %p251
      %p253 = scmp.ne.s32.totalorder %s245, %s247
      %p254 = scmp.eq.s32.totalorder %s27, 1
      %p255 = por %p253, %p254
      %p256 = scmp.ne.s32.totalorder %s247, %s248
      %p257 = scmp.eq.s32.totalorder %s27, 0
      %p258 = por %p256, %p257
      %p259 = scmp.ne.s32.totalorder %s247, %s248
      %p260 = scmp.eq.s32.totalorder %s28, 1
      %p261 = por %p259, %p260
      %p263 = scmp.ne.s32.totalorder %s248, %s262
      %p264 = scmp.eq.s32.totalorder %s28, 0
      %p265 = por %p263, %p264
      %s266 = ssub.s32 %s22, %s29
      %p267 = scmp.eq.s32.totalorder %s266, 0
      %s269 = sadd.s32 %s268, 1
      %s270 = scalar_select %p267, %s268, %s269
      %p273 = pneg %p267
      %p274 = scmp.eq.s32.totalorder %s22, 1
      %p275 = por %p273, %p274
      %p276 = scmp.ne.s32.totalorder %s268, %s271
      %p277 = scmp.eq.s32.totalorder %s22, 0
      %p278 = por %p276, %p277
      %p279 = scmp.ne.s32.totalorder %s268, %s271
      %p280 = scmp.eq.s32.totalorder %s27, 1
      %p281 = por %p279, %p280
      %p282 = scmp.ne.s32.totalorder %s271, %s272
      %p283 = scmp.eq.s32.totalorder %s27, 0
      %p284 = por %p282, %p283
      %p285 = scmp.ne.s32.totalorder %s271, %s272
      %p286 = scmp.eq.s32.totalorder %s28, 1
      %p287 = por %p285, %p286
      %p289 = scmp.ne.s32.totalorder %s272, %s288
      %p290 = scmp.eq.s32.totalorder %s28, 0
      %p291 = por %p289, %p290
      %p292 = scmp.le.s32.totalorder 1, %s22
      %p293 = scmp.lt.s32.totalorder %s22, 3
      %p294 = pnand %p292, %p293
      %p295 = pneg %p294
      // Predicated region
      $region9: #{cnn_dynamic_forward.1} parent=5 // pred_check
        _
      $region10: #{cnn_dynamic_forward.1} parent=5 // pred_check_branch
        %297 = sbr.rel (%p294) target = $region12
      $region11: #{cnn_dynamic_forward.1} parent=5 // pred_region
        %s298 = ssub.s32 %s22, 1
        // Predicated region
        $region13: #{cnn_dynamic_forward.1} parent=11 // pred_check
          %p299 = pneg %p69
        $region14: #{cnn_dynamic_forward.1} parent=11 // pred_check_branch
          %301 = sbr.rel (%p299) target = $region16
        $region15: #{cnn_dynamic_forward.1} parent=11 // pred_region
          %s303 = ssub.s32 12800, 12800
          %304 = vsyncadd [#allocation5], %s303
          %s305 = sshll.u32 [#allocation4], 4
          %s306 = int_to_ptr.vmem [resolvable:$true] %s305
          %311 = dma.hbm_to_vmem [thread:$0]  %s1, 12800, %s306, [#allocation5], 128, 128, 8
        $region16: #{cnn_dynamic_forward.1} parent=11 // pred_fallthru
          _
        // Predicated region
        $region17: #{cnn_dynamic_forward.1} parent=11 // pred_check
          %p312 = pneg %p90
        $region18: #{cnn_dynamic_forward.1} parent=11 // pred_check_branch
          %314 = sbr.rel (%p312) target = $region20
        $region19: #{cnn_dynamic_forward.1} parent=11 // pred_region
          _
        $region20: #{cnn_dynamic_forward.1} parent=11 // pred_fallthru
          _
        // Predicated region
        $region21: #{cnn_dynamic_forward.1} parent=11 // pred_check
          %p315 = pneg %p111
        $region22: #{cnn_dynamic_forward.1} parent=11 // pred_check_branch
          %317 = sbr.rel (%p315) target = $region24
        $region23: #{cnn_dynamic_forward.1} parent=11 // pred_region
          %s319 = ssub.s32 10240, 10240
          %320 = vsyncadd [#allocation8], %s319
          %s321 = sshll.u32 [#allocation7], 4
          %s322 = int_to_ptr.vmem [resolvable:$true] %s321
          %327 = dma.hbm_to_vmem [thread:$0]  %s3, 10240, %s322, [#allocation8], 128, 128, 8
        $region24: #{cnn_dynamic_forward.1} parent=11 // pred_fallthru
          _
        // Predicated region
        $region25: #{cnn_dynamic_forward.1} parent=11 // pred_check
          %p328 = pneg %p132
        $region26: #{cnn_dynamic_forward.1} parent=11 // pred_check_branch
          %330 = sbr.rel (%p328) target = $region28
        $region27: #{cnn_dynamic_forward.1} parent=11 // pred_region
          _
        $region28: #{cnn_dynamic_forward.1} parent=11 // pred_fallthru
          _
        // Predicated region
        $region29: #{cnn_dynamic_forward.1} parent=11 // pred_check
          %p331 = pneg %p153
        $region30: #{cnn_dynamic_forward.1} parent=11 // pred_check_branch
          %333 = sbr.rel (%p331) target = $region32
        $region31: #{cnn_dynamic_forward.1} parent=11 // pred_region
          _
        $region32: #{cnn_dynamic_forward.1} parent=11 // pred_fallthru
          _
        // Predicated region
        $region33: #{cnn_dynamic_forward.1} parent=11 // pred_check
          %p334 = pneg %p174
        $region34: #{cnn_dynamic_forward.1} parent=11 // pred_check_branch
          %336 = sbr.rel (%p334) target = $region36
        $region35: #{cnn_dynamic_forward.1} parent=11 // pred_region
          _
        $region36: #{cnn_dynamic_forward.1} parent=11 // pred_fallthru
          _
        // Predicated region
        $region37: #{cnn_dynamic_forward.1} parent=11 // pred_check
          %p337 = pneg %p195
        $region38: #{cnn_dynamic_forward.1} parent=11 // pred_check_branch
          %339 = sbr.rel (%p337) target = $region40
        $region39: #{cnn_dynamic_forward.1} parent=11 // pred_region
          _
        $region40: #{cnn_dynamic_forward.1} parent=11 // pred_fallthru
          _
        // Predicated region
        $region41: #{cnn_dynamic_forward.1} parent=11 // pred_check
          %p340 = pneg %p216
        $region42: #{cnn_dynamic_forward.1} parent=11 // pred_check_branch
          %342 = sbr.rel (%p340) target = $region44
        $region43: #{cnn_dynamic_forward.1} parent=11 // pred_region
          _
        $region44: #{cnn_dynamic_forward.1} parent=11 // pred_fallthru
          _
        // Predicated region
        $region45: #{cnn_dynamic_forward.1} parent=11 // pred_check
          %p343 = pneg %p237
        $region46: #{cnn_dynamic_forward.1} parent=11 // pred_check_branch
          %345 = sbr.rel (%p343) target = $region48
        $region47: #{cnn_dynamic_forward.1} parent=11 // pred_region
          _
        $region48: #{cnn_dynamic_forward.1} parent=11 // pred_fallthru
          _
        // Predicated region
        $region49: #{cnn_dynamic_forward.1} parent=11 // pred_check
          %p346 = pneg %p258
        $region50: #{cnn_dynamic_forward.1} parent=11 // pred_check_branch
          %348 = sbr.rel (%p346) target = $region52
        $region51: #{cnn_dynamic_forward.1} parent=11 // pred_region
          _
        $region52: #{cnn_dynamic_forward.1} parent=11 // pred_fallthru
          _
      $region12: #{cnn_dynamic_forward.1} parent=5 // pred_fallthru
        _
      %p349 = scmp.lt.s32.totalorder %s22, 2
      // Predicated region
      $region53: #{cnn_dynamic_forward.1} parent=5 // pred_check
        %p350 = pneg %p349
      $region54: #{cnn_dynamic_forward.1} parent=5 // pred_check_branch
        %352 = sbr.rel (%p350) target = $region56
      $region55: #{cnn_dynamic_forward.1} parent=5 // pred_region
        // Predicated region
        $region57: #{cnn_dynamic_forward.1} parent=55 // pred_check
          %p353 = pneg %p42
        $region58: #{cnn_dynamic_forward.1} parent=55 // pred_check_branch
          %355 = sbr.rel (%p353) target = $region60
        $region59: #{cnn_dynamic_forward.1} parent=55 // pred_region
          %p356 = scmp.lt.s32.totalorder %s22, 1
          %s357 = scalar_select %p356, %s22, 1
          %s358 = smul.addr %s357, 3
          %s359 = smul.addr %s358, 8
          %s360 = scalar_lea.vmem %s0, %s359
        $region60: #{cnn_dynamic_forward.1} parent=55 // pred_fallthru
          _
      $region56: #{cnn_dynamic_forward.1} parent=5 // pred_fallthru
        _
      %p361 = scmp.le.s32.totalorder 1, %s22
      %p362 = scmp.lt.s32.totalorder %s22, 3
      %p363 = pnand %p361, %p362
      %p364 = pneg %p363
      // Predicated region
      $region61: #{cnn_dynamic_forward.1} parent=5 // pred_check
        _
      $region62: #{cnn_dynamic_forward.1} parent=5 // pred_check_branch
        %366 = sbr.rel (%p363) target = $region64
      $region63: #{cnn_dynamic_forward.1} parent=5 // pred_region
        %s367 = ssub.s32 %s22, 1
        // Predicated region
        $region65: #{cnn_dynamic_forward.1} parent=63 // pred_check
          %p368 = pneg %p69
        $region66: #{cnn_dynamic_forward.1} parent=63 // pred_check_branch
          %370 = sbr.rel (%p368) target = $region68
        $region67: #{cnn_dynamic_forward.1} parent=63 // pred_region
          %371 = dma.done [#allocation5], 12800
        $region68: #{cnn_dynamic_forward.1} parent=63 // pred_fallthru
          _
        // Predicated region
        $region69: #{cnn_dynamic_forward.1} parent=63 // pred_check
          %p372 = pneg %p111
        $region70: #{cnn_dynamic_forward.1} parent=63 // pred_check_branch
          %374 = sbr.rel (%p372) target = $region72
        $region71: #{cnn_dynamic_forward.1} parent=63 // pred_region
          %375 = dma.done [#allocation8], 10240
        $region72: #{cnn_dynamic_forward.1} parent=63 // pred_fallthru
          _
        %p376 = scmp.lt.s32.totalorder %s27, 1
        %s377 = scalar_select %p376, %s27, 1
        %s378 = smul.addr %s377, 3
        %s379 = smul.addr %s378, 8
        %s380 = scalar_lea.vmem %s0, %s379
        %p381 = pneg %p48
        %p382 = pneg %p45
        %p383 = pneg %p69
        %p384 = pneg %p66
        %p385 = pneg %p90
        %p386 = pneg %p87
        %p387 = pneg %p111
        %p388 = pneg %p108
        %p389 = pneg %p132
        %p390 = pneg %p129
        %p391 = pneg %p153
        %p392 = pneg %p150
        %p393 = pneg %p174
        %p394 = pneg %p171
        %p395 = pneg %p195
        %p396 = pneg %p192
        %p397 = pneg %p216
        %p398 = pneg %p213
        %p399 = pneg %p237
        %p400 = pneg %p234
        %p401 = pneg %p258
        %p402 = pneg %p255
        %p403 = pneg %p284
        %p404 = pneg %p281
        %s405 = sand.u32 %s271, 1
        %s406 = scalar_lea.sflag [#allocation6], %s405
        %s407 = sand.u32 %s271, 1
        %s408 = scalar_lea.vmem [#allocation9], %s407
        %p409 = scmp.lt.s32.totalorder %s27, 1
        %s410 = scalar_select %p409, %s27, 1
        %s411 = smul.addr %s410, 3
        %s412 = smul.addr %s411, 8
        %s413 = scalar_lea.vmem %s0, %s412
        %v414 = vld [vmem:[%s413] sm:$0xff]
        %v415 = vld [vmem:[%s413 + $0x8] sm:$0xff]
        %v416 = vld [vmem:[%s413 + $0x10] sm:$0xf]
        %vm417 = vcmask 654336
        %418 = vst.msk [vmem:[#allocation2] sm:$0xff] %vm417, %v414
        %419 = vst.msk [vmem:[#allocation2 + $0x8] sm:$0xff] %vm417, %v415
        %vm420 = vcmask 650240
        %421 = vst.msk [vmem:[#allocation2 + $0x10] sm:$0xf] %vm420, %v416
        %v422 = vld [vmem:[%s2] sm:$0x1]
        %v423 = vld [vmem:[#allocation4] sm:$0xff]
        %v424 = vld [vmem:[#allocation4 + $0x8] sm:$0xff]
        %v425 = vld [vmem:[#allocation4 + $0x10] sm:$0xff]
        %v426 = vld [vmem:[#allocation4 + $0x18] sm:$0xff]
        %v427 = vld [vmem:[#allocation4 + $0x20] sm:$0xff]
        %v428 = vld [vmem:[#allocation4 + $0x28] sm:$0xff]
        %v429 = vld [vmem:[#allocation4 + $0x30] sm:$0xff]
        %v430 = vld [vmem:[#allocation4 + $0x38] sm:$0xff]
        %v431 = vld [vmem:[#allocation4 + $0x40] sm:$0xff]
        %v432 = vld [vmem:[#allocation4 + $0x48] sm:$0xff]
        %s433 = scalar_lea.vmem [#allocation4], 80
        %v434 = vld [vmem:[%s433] sm:$0xff]
        %v435 = vld [vmem:[%s433 + $0x8] sm:$0xff]
        %v436 = vld [vmem:[%s433 + $0x10] sm:$0xff]
        %v437 = vld [vmem:[%s433 + $0x18] sm:$0xff]
        %v438 = vld [vmem:[%s433 + $0x20] sm:$0xff]
        %v439 = vld [vmem:[%s433 + $0x28] sm:$0xff]
        %v440 = vld [vmem:[%s433 + $0x30] sm:$0xff]
        %v441 = vld [vmem:[%s433 + $0x38] sm:$0xff]
        %v442 = vld [vmem:[%s433 + $0x40] sm:$0xff]
        %v443 = vld [vmem:[%s433 + $0x48] sm:$0xff]
        %v444 = vld [vmem:[#allocation2] ss:$2 sm:$0xff]
        %s445 = scalar_lea.vmem [#allocation2], 1
        %v446 = vld [vmem:[%s445] ss:$2 sm:$0xff]
        %s447 = scalar_lea.vmem [#allocation4], 160
        %v448 = vld [vmem:[%s447] sm:$0xff]
        %v449 = vld [vmem:[%s447 + $0x8] sm:$0xff]
        %v450 = vld [vmem:[%s447 + $0x10] sm:$0xff]
        %v451 = vld [vmem:[%s447 + $0x18] sm:$0xff]
        %v452 = vld [vmem:[%s447 + $0x20] sm:$0xff]
        %v453 = vld [vmem:[%s447 + $0x28] sm:$0xff]
        %v454 = vld [vmem:[%s447 + $0x30] sm:$0xff]
        %v455 = vld [vmem:[%s447 + $0x38] sm:$0xff]
        %v456 = vld [vmem:[%s447 + $0x40] sm:$0xff]
        %v457 = vld [vmem:[%s447 + $0x48] sm:$0xff]
        %s458 = scalar_lea.vmem [#allocation4], 240
        %v459 = vld [vmem:[%s458] sm:$0xff]
        %v460 = vld [vmem:[%s458 + $0x8] sm:$0xff]
        %v461 = vld [vmem:[%s458 + $0x10] sm:$0xff]
        %v462 = vld [vmem:[%s458 + $0x18] sm:$0xff]
        %v463 = vld [vmem:[%s458 + $0x20] sm:$0xff]
        %v464 = vld [vmem:[%s458 + $0x28] sm:$0xff]
        %v465 = vld [vmem:[%s458 + $0x30] sm:$0xff]
        %v466 = vld [vmem:[%s458 + $0x38] sm:$0xff]
        %v467 = vld [vmem:[%s458 + $0x40] sm:$0xff]
        %v468 = vld [vmem:[%s458 + $0x48] sm:$0xff]
        %v470 = vsel %vm417, %v446, 0
        %472 = vmatprep.subr.mxu0 0.0
        %473 = vmatpush1.msra.mxu0 %v448
        %474 = vmatprep.subr.mxu0 0.0
        %475 = vmatpush1.msra.mxu0 %v449
        %476 = vmatprep.subr.mxu0 0.0
        %477 = vmatpush1.msra.mxu0 %v450
        %478 = vmatprep.subr.mxu0 0.0
        %479 = vmatpush1.msra.mxu0 %v451
        %480 = vmatprep.subr.mxu0 0.0
        %481 = vmatpush1.msra.mxu0 %v452
        %482 = vmatprep.subr.mxu0 0.0
        %483 = vmatpush1.msra.mxu0 %v453
        %484 = vmatprep.subr.mxu0 0.0
        %485 = vmatpush1.msra.mxu0 %v454
        %486 = vmatprep.subr.mxu0 0.0
        %487 = vmatpush1.msra.mxu0 %v455
        %488 = vmatprep.subr.mxu0 0.0
        %489 = vmatpush1.msra.mxu0 %v456
        %490 = vmatprep.subr.mxu0 0.0
        %491 = vmatpush1.msra.mxu0 %v457
        %492 = vmatprep.subr.mxu0 0.0
        %493 = vmatpush1.msra.mxu0 0.0
        %494 = vmatprep.subr.mxu0 0.0
        %495 = vmatpush1.msra.mxu0 0.0
        %496 = vmatprep.subr.mxu0 0.0
        %497 = vmatpush1.msra.mxu0 0.0
        %498 = vmatprep.subr.mxu0 0.0
        %499 = vmatpush1.msra.mxu0 0.0
        %500 = vmatprep.subr.mxu0 0.0
        %501 = vmatpush1.msra.mxu0 0.0
        %502 = vmatprep.subr.mxu0 0.0
        %503 = vmatpush1.msra.mxu0 0.0
        %504 = vmatprep.subr.mxu0 0.0
        %505 = vmatpush1.msra.mxu0 0.0
        %506 = vmatprep.subr.mxu0 0.0
        %507 = vmatpush1.msra.mxu0 0.0
        %508 = vmatprep.subr.mxu0 0.0
        %509 = vmatpush1.msra.mxu0 0.0
        %510 = vmatprep.subr.mxu0 0.0
        %511 = vmatpush1.msra.mxu0 0.0
        %512 = vmatprep.subr.mxu0 0.0
        %513 = vmatpush1.msra.mxu0 0.0
        %514 = vmatprep.subr.mxu0 0.0
        %515 = vmatpush1.msra.mxu0 0.0
        %516 = vmatprep.subr.mxu0 0.0
        %517 = vmatpush1.msra.mxu0 0.0
        %518 = vmatprep.subr.mxu0 0.0
        %519 = vmatpush1.msra.mxu0 0.0
        %520 = vmatprep.subr.mxu0 0.0
        %521 = vmatpush1.msra.mxu0 0.0
        %522 = vmatprep.subr.mxu0 0.0
        %523 = vmatpush1.msra.mxu0 0.0
        %524 = vmatprep.subr.mxu0 0.0
        %525 = vmatpush1.msra.mxu0 0.0
        %526 = vmatprep.subr.mxu0 0.0
        %527 = vmatpush1.msra.mxu0 0.0
        %528 = vmatprep.subr.mxu0 0.0
        %529 = vmatpush1.msra.mxu0 0.0
        %530 = vmatprep.subr.mxu0 0.0
        %531 = vmatpush1.msra.mxu0 0.0
        %532 = vmatprep.subr.mxu0 0.0
        %533 = vmatpush1.msra.mxu0 0.0
        %534 = vmatprep.subr.mxu0 0.0
        %535 = vmatpush1.msra.mxu0 0.0
        %536 = vmatprep.mubr.f32.mxu0 0.0
        %537 = vmatmul.mubr.f32.gmra.mrb[0].mxu0 %v470
        %v538 = vpop.f32.mrb[0].mxu0
        %v539 = vadd.f32 0.0, %v538
        %v540 = vpop.f32.mrb[0].mxu0
        %541 = vdwg.mxu0
        %v543 = vsel %vm417, %v444, 0
        %545 = vmatprep.subr.mxu0 0.0
        %546 = vmatpush1.msra.mxu0 %v423
        %547 = vmatprep.subr.mxu0 0.0
        %548 = vmatpush1.msra.mxu0 %v424
        %549 = vmatprep.subr.mxu0 0.0
        %550 = vmatpush1.msra.mxu0 %v425
        %551 = vmatprep.subr.mxu0 0.0
        %552 = vmatpush1.msra.mxu0 %v426
        %553 = vmatprep.subr.mxu0 0.0
        %554 = vmatpush1.msra.mxu0 %v427
        %555 = vmatprep.subr.mxu0 0.0
        %556 = vmatpush1.msra.mxu0 %v428
        %557 = vmatprep.subr.mxu0 0.0
        %558 = vmatpush1.msra.mxu0 %v429
        %559 = vmatprep.subr.mxu0 0.0
        %560 = vmatpush1.msra.mxu0 %v430
        %561 = vmatprep.subr.mxu0 0.0
        %562 = vmatpush1.msra.mxu0 %v431
        %563 = vmatprep.subr.mxu0 0.0
        %564 = vmatpush1.msra.mxu0 %v432
        %565 = vmatprep.subr.mxu0 0.0
        %566 = vmatpush1.msra.mxu0 0.0
        %567 = vmatprep.subr.mxu0 0.0
        %568 = vmatpush1.msra.mxu0 0.0
        %569 = vmatprep.subr.mxu0 0.0
        %570 = vmatpush1.msra.mxu0 0.0
        %571 = vmatprep.subr.mxu0 0.0
        %572 = vmatpush1.msra.mxu0 0.0
        %573 = vmatprep.subr.mxu0 0.0
        %574 = vmatpush1.msra.mxu0 0.0
        %575 = vmatprep.subr.mxu0 0.0
        %576 = vmatpush1.msra.mxu0 0.0
        %577 = vmatprep.subr.mxu0 0.0
        %578 = vmatpush1.msra.mxu0 0.0
        %579 = vmatprep.subr.mxu0 0.0
        %580 = vmatpush1.msra.mxu0 0.0
        %581 = vmatprep.subr.mxu0 0.0
        %582 = vmatpush1.msra.mxu0 0.0
        %583 = vmatprep.subr.mxu0 0.0
        %584 = vmatpush1.msra.mxu0 0.0
        %585 = vmatprep.subr.mxu0 0.0
        %586 = vmatpush1.msra.mxu0 0.0
        %587 = vmatprep.subr.mxu0 0.0
        %588 = vmatpush1.msra.mxu0 0.0
        %589 = vmatprep.subr.mxu0 0.0
        %590 = vmatpush1.msra.mxu0 0.0
        %591 = vmatprep.subr.mxu0 0.0
        %592 = vmatpush1.msra.mxu0 0.0
        %593 = vmatprep.subr.mxu0 0.0
        %594 = vmatpush1.msra.mxu0 0.0
        %595 = vmatprep.subr.mxu0 0.0
        %596 = vmatpush1.msra.mxu0 0.0
        %597 = vmatprep.subr.mxu0 0.0
        %598 = vmatpush1.msra.mxu0 0.0
        %599 = vmatprep.subr.mxu0 0.0
        %600 = vmatpush1.msra.mxu0 0.0
        %601 = vmatprep.subr.mxu0 0.0
        %602 = vmatpush1.msra.mxu0 0.0
        %603 = vmatprep.subr.mxu0 0.0
        %604 = vmatpush1.msra.mxu0 0.0
        %605 = vmatprep.subr.mxu0 0.0
        %606 = vmatpush1.msra.mxu0 0.0
        %607 = vmatprep.subr.mxu0 0.0
        %608 = vmatpush1.msra.mxu0 0.0
        %609 = vmatprep.mubr.f32.mxu0 0.0
        %610 = vmatmul.mubr.f32.gmra.mrb[0].mxu0 %v543
        %v611 = vpop.f32.mrb[0].mxu0
        %v612 = vadd.f32 %v539, %v611
        %v613 = vpop.f32.mrb[0].mxu0
        %614 = vdwg.mxu0
        %615 = vmatprep.subr.mxu0 0.0
        %616 = vmatpush1.msra.mxu0 %v459
        %617 = vmatprep.subr.mxu0 0.0
        %618 = vmatpush1.msra.mxu0 %v460
        %619 = vmatprep.subr.mxu0 0.0
        %620 = vmatpush1.msra.mxu0 %v461
        %621 = vmatprep.subr.mxu0 0.0
        %622 = vmatpush1.msra.mxu0 %v462
        %623 = vmatprep.subr.mxu0 0.0
        %624 = vmatpush1.msra.mxu0 %v463
        %625 = vmatprep.subr.mxu0 0.0
        %626 = vmatpush1.msra.mxu0 %v464
        %627 = vmatprep.subr.mxu0 0.0
        %628 = vmatpush1.msra.mxu0 %v465
        %629 = vmatprep.subr.mxu0 0.0
        %630 = vmatpush1.msra.mxu0 %v466
        %631 = vmatprep.subr.mxu0 0.0
        %632 = vmatpush1.msra.mxu0 %v467
        %633 = vmatprep.subr.mxu0 0.0
        %634 = vmatpush1.msra.mxu0 %v468
        %635 = vmatprep.subr.mxu0 0.0
        %636 = vmatpush1.msra.mxu0 0.0
        %637 = vmatprep.subr.mxu0 0.0
        %638 = vmatpush1.msra.mxu0 0.0
        %639 = vmatprep.subr.mxu0 0.0
        %640 = vmatpush1.msra.mxu0 0.0
        %641 = vmatprep.subr.mxu0 0.0
        %642 = vmatpush1.msra.mxu0 0.0
        %643 = vmatprep.subr.mxu0 0.0
        %644 = vmatpush1.msra.mxu0 0.0
        %645 = vmatprep.subr.mxu0 0.0
        %646 = vmatpush1.msra.mxu0 0.0
        %647 = vmatprep.subr.mxu0 0.0
        %648 = vmatpush1.msra.mxu0 0.0
        %649 = vmatprep.subr.mxu0 0.0
        %650 = vmatpush1.msra.mxu0 0.0
        %651 = vmatprep.subr.mxu0 0.0
        %652 = vmatpush1.msra.mxu0 0.0
        %653 = vmatprep.subr.mxu0 0.0
        %654 = vmatpush1.msra.mxu0 0.0
        %655 = vmatprep.subr.mxu0 0.0
        %656 = vmatpush1.msra.mxu0 0.0
        %657 = vmatprep.subr.mxu0 0.0
        %658 = vmatpush1.msra.mxu0 0.0
        %659 = vmatprep.subr.mxu0 0.0
        %660 = vmatpush1.msra.mxu0 0.0
        %661 = vmatprep.subr.mxu0 0.0
        %662 = vmatpush1.msra.mxu0 0.0
        %663 = vmatprep.subr.mxu0 0.0
        %664 = vmatpush1.msra.mxu0 0.0
        %665 = vmatprep.subr.mxu0 0.0
        %666 = vmatpush1.msra.mxu0 0.0
        %667 = vmatprep.subr.mxu0 0.0
        %668 = vmatpush1.msra.mxu0 0.0
        %669 = vmatprep.subr.mxu0 0.0
        %670 = vmatpush1.msra.mxu0 0.0
        %671 = vmatprep.subr.mxu0 0.0
        %672 = vmatpush1.msra.mxu0 0.0
        %673 = vmatprep.subr.mxu0 0.0
        %674 = vmatpush1.msra.mxu0 0.0
        %675 = vmatprep.subr.mxu0 0.0
        %676 = vmatpush1.msra.mxu0 0.0
        %677 = vmatprep.subr.mxu0 0.0
        %678 = vmatpush1.msra.mxu0 0.0
        %679 = vmatprep.mubr.f32.mxu0 0.0
        %680 = vmatmul.mubr.f32.gmra.mrb[0].mxu0 %v470
        %v681 = vpop.f32.mrb[0].mxu0
        %v682 = vadd.f32 0.0, %v681
        %v683 = vpop.f32.mrb[0].mxu0
        %684 = vdwg.mxu0
        %685 = vmatprep.subr.mxu0 0.0
        %686 = vmatpush1.msra.mxu0 %v434
        %687 = vmatprep.subr.mxu0 0.0
        %688 = vmatpush1.msra.mxu0 %v435
        %689 = vmatprep.subr.mxu0 0.0
        %690 = vmatpush1.msra.mxu0 %v436
        %691 = vmatprep.subr.mxu0 0.0
        %692 = vmatpush1.msra.mxu0 %v437
        %693 = vmatprep.subr.mxu0 0.0
        %694 = vmatpush1.msra.mxu0 %v438
        %695 = vmatprep.subr.mxu0 0.0
        %696 = vmatpush1.msra.mxu0 %v439
        %697 = vmatprep.subr.mxu0 0.0
        %698 = vmatpush1.msra.mxu0 %v440
        %699 = vmatprep.subr.mxu0 0.0
        %700 = vmatpush1.msra.mxu0 %v441
        %701 = vmatprep.subr.mxu0 0.0
        %702 = vmatpush1.msra.mxu0 %v442
        %703 = vmatprep.subr.mxu0 0.0
        %704 = vmatpush1.msra.mxu0 %v443
        %705 = vmatprep.subr.mxu0 0.0
        %706 = vmatpush1.msra.mxu0 0.0
        %707 = vmatprep.subr.mxu0 0.0
        %708 = vmatpush1.msra.mxu0 0.0
        %709 = vmatprep.subr.mxu0 0.0
        %710 = vmatpush1.msra.mxu0 0.0
        %711 = vmatprep.subr.mxu0 0.0
        %712 = vmatpush1.msra.mxu0 0.0
        %713 = vmatprep.subr.mxu0 0.0
        %714 = vmatpush1.msra.mxu0 0.0
        %715 = vmatprep.subr.mxu0 0.0
        %716 = vmatpush1.msra.mxu0 0.0
        %717 = vmatprep.subr.mxu0 0.0
        %718 = vmatpush1.msra.mxu0 0.0
        %719 = vmatprep.subr.mxu0 0.0
        %720 = vmatpush1.msra.mxu0 0.0
        %721 = vmatprep.subr.mxu0 0.0
        %722 = vmatpush1.msra.mxu0 0.0
        %723 = vmatprep.subr.mxu0 0.0
        %724 = vmatpush1.msra.mxu0 0.0
        %725 = vmatprep.subr.mxu0 0.0
        %726 = vmatpush1.msra.mxu0 0.0
        %727 = vmatprep.subr.mxu0 0.0
        %728 = vmatpush1.msra.mxu0 0.0
        %729 = vmatprep.subr.mxu0 0.0
        %730 = vmatpush1.msra.mxu0 0.0
        %731 = vmatprep.subr.mxu0 0.0
        %732 = vmatpush1.msra.mxu0 0.0
        %733 = vmatprep.subr.mxu0 0.0
        %734 = vmatpush1.msra.mxu0 0.0
        %735 = vmatprep.subr.mxu0 0.0
        %736 = vmatpush1.msra.mxu0 0.0
        %737 = vmatprep.subr.mxu0 0.0
        %738 = vmatpush1.msra.mxu0 0.0
        %739 = vmatprep.subr.mxu0 0.0
        %740 = vmatpush1.msra.mxu0 0.0
        %741 = vmatprep.subr.mxu0 0.0
        %742 = vmatpush1.msra.mxu0 0.0
        %743 = vmatprep.subr.mxu0 0.0
        %744 = vmatpush1.msra.mxu0 0.0
        %745 = vmatprep.subr.mxu0 0.0
        %746 = vmatpush1.msra.mxu0 0.0
        %747 = vmatprep.subr.mxu0 0.0
        %748 = vmatpush1.msra.mxu0 0.0
        %749 = vmatprep.mubr.f32.mxu0 0.0
        %750 = vmatmul.mubr.f32.gmra.mrb[0].mxu0 %v543
        %v751 = vpop.f32.mrb[0].mxu0
        %v752 = vadd.f32 %v682, %v751
        %v753 = vpop.f32.mrb[0].mxu0
        %754 = vdwg.mxu0
        %s755 = scalar_lea.vmem [#allocation2], 2
        %v756 = vld [vmem:[%s755] ss:$2 sm:$0xff]
        %v758 = vsel %vm417, %v756, 0
        %760 = vmatprep.subr.mxu0 0.0
        %761 = vmatpush1.msra.mxu0 %v448
        %762 = vmatprep.subr.mxu0 0.0
        %763 = vmatpush1.msra.mxu0 %v449
        %764 = vmatprep.subr.mxu0 0.0
        %765 = vmatpush1.msra.mxu0 %v450
        %766 = vmatprep.subr.mxu0 0.0
        %767 = vmatpush1.msra.mxu0 %v451
        %768 = vmatprep.subr.mxu0 0.0
        %769 = vmatpush1.msra.mxu0 %v452
        %770 = vmatprep.subr.mxu0 0.0
        %771 = vmatpush1.msra.mxu0 %v453
        %772 = vmatprep.subr.mxu0 0.0
        %773 = vmatpush1.msra.mxu0 %v454
        %774 = vmatprep.subr.mxu0 0.0
        %775 = vmatpush1.msra.mxu0 %v455
        %776 = vmatprep.subr.mxu0 0.0
        %777 = vmatpush1.msra.mxu0 %v456
        %778 = vmatprep.subr.mxu0 0.0
        %779 = vmatpush1.msra.mxu0 %v457
        %780 = vmatprep.subr.mxu0 0.0
        %781 = vmatpush1.msra.mxu0 0.0
        %782 = vmatprep.subr.mxu0 0.0
        %783 = vmatpush1.msra.mxu0 0.0
        %784 = vmatprep.subr.mxu0 0.0
        %785 = vmatpush1.msra.mxu0 0.0
        %786 = vmatprep.subr.mxu0 0.0
        %787 = vmatpush1.msra.mxu0 0.0
        %788 = vmatprep.subr.mxu0 0.0
        %789 = vmatpush1.msra.mxu0 0.0
        %790 = vmatprep.subr.mxu0 0.0
        %791 = vmatpush1.msra.mxu0 0.0
        %792 = vmatprep.subr.mxu0 0.0
        %793 = vmatpush1.msra.mxu0 0.0
        %794 = vmatprep.subr.mxu0 0.0
        %795 = vmatpush1.msra.mxu0 0.0
        %796 = vmatprep.subr.mxu0 0.0
        %797 = vmatpush1.msra.mxu0 0.0
        %798 = vmatprep.subr.mxu0 0.0
        %799 = vmatpush1.msra.mxu0 0.0
        %800 = vmatprep.subr.mxu0 0.0
        %801 = vmatpush1.msra.mxu0 0.0
        %802 = vmatprep.subr.mxu0 0.0
        %803 = vmatpush1.msra.mxu0 0.0
        %804 = vmatprep.subr.mxu0 0.0
        %805 = vmatpush1.msra.mxu0 0.0
        %806 = vmatprep.subr.mxu0 0.0
        %807 = vmatpush1.msra.mxu0 0.0
        %808 = vmatprep.subr.mxu0 0.0
        %809 = vmatpush1.msra.mxu0 0.0
        %810 = vmatprep.subr.mxu0 0.0
        %811 = vmatpush1.msra.mxu0 0.0
        %812 = vmatprep.subr.mxu0 0.0
        %813 = vmatpush1.msra.mxu0 0.0
        %814 = vmatprep.subr.mxu0 0.0
        %815 = vmatpush1.msra.mxu0 0.0
        %816 = vmatprep.subr.mxu0 0.0
        %817 = vmatpush1.msra.mxu0 0.0
        %818 = vmatprep.subr.mxu0 0.0
        %819 = vmatpush1.msra.mxu0 0.0
        %820 = vmatprep.subr.mxu0 0.0
        %821 = vmatpush1.msra.mxu0 0.0
        %822 = vmatprep.subr.mxu0 0.0
        %823 = vmatpush1.msra.mxu0 0.0
        %824 = vmatprep.mubr.f32.mxu0 0.0
        %825 = vmatmul.mubr.f32.gmra.mrb[0].mxu0 %v758
        %v826 = vpop.f32.mrb[0].mxu0
        %v827 = vadd.f32 0.0, %v826
        %v828 = vpop.f32.mrb[0].mxu0
        %829 = vdwg.mxu0
        %830 = vmatprep.subr.mxu0 0.0
        %831 = vmatpush1.msra.mxu0 %v423
        %832 = vmatprep.subr.mxu0 0.0
        %833 = vmatpush1.msra.mxu0 %v424
        %834 = vmatprep.subr.mxu0 0.0
        %835 = vmatpush1.msra.mxu0 %v425
        %836 = vmatprep.subr.mxu0 0.0
        %837 = vmatpush1.msra.mxu0 %v426
        %838 = vmatprep.subr.mxu0 0.0
        %839 = vmatpush1.msra.mxu0 %v427
        %840 = vmatprep.subr.mxu0 0.0
        %841 = vmatpush1.msra.mxu0 %v428
        %842 = vmatprep.subr.mxu0 0.0
        %843 = vmatpush1.msra.mxu0 %v429
        %844 = vmatprep.subr.mxu0 0.0
        %845 = vmatpush1.msra.mxu0 %v430
        %846 = vmatprep.subr.mxu0 0.0
        %847 = vmatpush1.msra.mxu0 %v431
        %848 = vmatprep.subr.mxu0 0.0
        %849 = vmatpush1.msra.mxu0 %v432
        %850 = vmatprep.subr.mxu0 0.0
        %851 = vmatpush1.msra.mxu0 0.0
        %852 = vmatprep.subr.mxu0 0.0
        %853 = vmatpush1.msra.mxu0 0.0
        %854 = vmatprep.subr.mxu0 0.0
        %855 = vmatpush1.msra.mxu0 0.0
        %856 = vmatprep.subr.mxu0 0.0
        %857 = vmatpush1.msra.mxu0 0.0
        %858 = vmatprep.subr.mxu0 0.0
        %859 = vmatpush1.msra.mxu0 0.0
        %860 = vmatprep.subr.mxu0 0.0
        %861 = vmatpush1.msra.mxu0 0.0
        %862 = vmatprep.subr.mxu0 0.0
        %863 = vmatpush1.msra.mxu0 0.0
        %864 = vmatprep.subr.mxu0 0.0
        %865 = vmatpush1.msra.mxu0 0.0
        %866 = vmatprep.subr.mxu0 0.0
        %867 = vmatpush1.msra.mxu0 0.0
        %868 = vmatprep.subr.mxu0 0.0
        %869 = vmatpush1.msra.mxu0 0.0
        %870 = vmatprep.subr.mxu0 0.0
        %871 = vmatpush1.msra.mxu0 0.0
        %872 = vmatprep.subr.mxu0 0.0
        %873 = vmatpush1.msra.mxu0 0.0
        %874 = vmatprep.subr.mxu0 0.0
        %875 = vmatpush1.msra.mxu0 0.0
        %876 = vmatprep.subr.mxu0 0.0
        %877 = vmatpush1.msra.mxu0 0.0
        %878 = vmatprep.subr.mxu0 0.0
        %879 = vmatpush1.msra.mxu0 0.0
        %880 = vmatprep.subr.mxu0 0.0
        %881 = vmatpush1.msra.mxu0 0.0
        %882 = vmatprep.subr.mxu0 0.0
        %883 = vmatpush1.msra.mxu0 0.0
        %884 = vmatprep.subr.mxu0 0.0
        %885 = vmatpush1.msra.mxu0 0.0
        %886 = vmatprep.subr.mxu0 0.0
        %887 = vmatpush1.msra.mxu0 0.0
        %888 = vmatprep.subr.mxu0 0.0
        %889 = vmatpush1.msra.mxu0 0.0
        %890 = vmatprep.subr.mxu0 0.0
        %891 = vmatpush1.msra.mxu0 0.0
        %892 = vmatprep.subr.mxu0 0.0
        %893 = vmatpush1.msra.mxu0 0.0
        %894 = vmatprep.mubr.f32.mxu0 0.0
        %895 = vmatmul.mubr.f32.gmra.mrb[0].mxu0 %v470
        %v896 = vpop.f32.mrb[0].mxu0
        %v897 = vadd.f32 %v827, %v896
        %v898 = vpop.f32.mrb[0].mxu0
        %899 = vdwg.mxu0
        %900 = vmatprep.subr.mxu0 0.0
        %901 = vmatpush1.msra.mxu0 %v459
        %902 = vmatprep.subr.mxu0 0.0
        %903 = vmatpush1.msra.mxu0 %v460
        %904 = vmatprep.subr.mxu0 0.0
        %905 = vmatpush1.msra.mxu0 %v461
        %906 = vmatprep.subr.mxu0 0.0
        %907 = vmatpush1.msra.mxu0 %v462
        %908 = vmatprep.subr.mxu0 0.0
        %909 = vmatpush1.msra.mxu0 %v463
        %910 = vmatprep.subr.mxu0 0.0
        %911 = vmatpush1.msra.mxu0 %v464
        %912 = vmatprep.subr.mxu0 0.0
        %913 = vmatpush1.msra.mxu0 %v465
        %914 = vmatprep.subr.mxu0 0.0
        %915 = vmatpush1.msra.mxu0 %v466
        %916 = vmatprep.subr.mxu0 0.0
        %917 = vmatpush1.msra.mxu0 %v467
        %918 = vmatprep.subr.mxu0 0.0
        %919 = vmatpush1.msra.mxu0 %v468
        %920 = vmatprep.subr.mxu0 0.0
        %921 = vmatpush1.msra.mxu0 0.0
        %922 = vmatprep.subr.mxu0 0.0
        %923 = vmatpush1.msra.mxu0 0.0
        %924 = vmatprep.subr.mxu0 0.0
        %925 = vmatpush1.msra.mxu0 0.0
        %926 = vmatprep.subr.mxu0 0.0
        %927 = vmatpush1.msra.mxu0 0.0
        %928 = vmatprep.subr.mxu0 0.0
        %929 = vmatpush1.msra.mxu0 0.0
        %930 = vmatprep.subr.mxu0 0.0
        %931 = vmatpush1.msra.mxu0 0.0
        %932 = vmatprep.subr.mxu0 0.0
        %933 = vmatpush1.msra.mxu0 0.0
        %934 = vmatprep.subr.mxu0 0.0
        %935 = vmatpush1.msra.mxu0 0.0
        %936 = vmatprep.subr.mxu0 0.0
        %937 = vmatpush1.msra.mxu0 0.0
        %938 = vmatprep.subr.mxu0 0.0
        %939 = vmatpush1.msra.mxu0 0.0
        %940 = vmatprep.subr.mxu0 0.0
        %941 = vmatpush1.msra.mxu0 0.0
        %942 = vmatprep.subr.mxu0 0.0
        %943 = vmatpush1.msra.mxu0 0.0
        %944 = vmatprep.subr.mxu0 0.0
        %945 = vmatpush1.msra.mxu0 0.0
        %946 = vmatprep.subr.mxu0 0.0
        %947 = vmatpush1.msra.mxu0 0.0
        %948 = vmatprep.subr.mxu0 0.0
        %949 = vmatpush1.msra.mxu0 0.0
        %950 = vmatprep.subr.mxu0 0.0
        %951 = vmatpush1.msra.mxu0 0.0
        %952 = vmatprep.subr.mxu0 0.0
        %953 = vmatpush1.msra.mxu0 0.0
        %954 = vmatprep.subr.mxu0 0.0
        %955 = vmatpush1.msra.mxu0 0.0
        %956 = vmatprep.subr.mxu0 0.0
        %957 = vmatpush1.msra.mxu0 0.0
        %958 = vmatprep.subr.mxu0 0.0
        %959 = vmatpush1.msra.mxu0 0.0
        %960 = vmatprep.subr.mxu0 0.0
        %961 = vmatpush1.msra.mxu0 0.0
        %962 = vmatprep.subr.mxu0 0.0
        %963 = vmatpush1.msra.mxu0 0.0
        %964 = vmatprep.mubr.f32.mxu0 0.0
        %965 = vmatmul.mubr.f32.gmra.mrb[0].mxu0 %v758
        %v966 = vpop.f32.mrb[0].mxu0
        %v967 = vadd.f32 0.0, %v966
        %v968 = vpop.f32.mrb[0].mxu0
        %969 = vdwg.mxu0
        %970 = vmatprep.subr.mxu0 0.0
        %971 = vmatpush1.msra.mxu0 %v434
        %972 = vmatprep.subr.mxu0 0.0
        %973 = vmatpush1.msra.mxu0 %v435
        %974 = vmatprep.subr.mxu0 0.0
        %975 = vmatpush1.msra.mxu0 %v436
        %976 = vmatprep.subr.mxu0 0.0
        %977 = vmatpush1.msra.mxu0 %v437
        %978 = vmatprep.subr.mxu0 0.0
        %979 = vmatpush1.msra.mxu0 %v438
        %980 = vmatprep.subr.mxu0 0.0
        %981 = vmatpush1.msra.mxu0 %v439
        %982 = vmatprep.subr.mxu0 0.0
        %983 = vmatpush1.msra.mxu0 %v440
        %984 = vmatprep.subr.mxu0 0.0
        %985 = vmatpush1.msra.mxu0 %v441
        %986 = vmatprep.subr.mxu0 0.0
        %987 = vmatpush1.msra.mxu0 %v442
        %988 = vmatprep.subr.mxu0 0.0
        %989 = vmatpush1.msra.mxu0 %v443
        %990 = vmatprep.subr.mxu0 0.0
        %991 = vmatpush1.msra.mxu0 0.0
        %992 = vmatprep.subr.mxu0 0.0
        %993 = vmatpush1.msra.mxu0 0.0
        %994 = vmatprep.subr.mxu0 0.0
        %995 = vmatpush1.msra.mxu0 0.0
        %996 = vmatprep.subr.mxu0 0.0
        %997 = vmatpush1.msra.mxu0 0.0
        %998 = vmatprep.subr.mxu0 0.0
        %999 = vmatpush1.msra.mxu0 0.0
        %1000 = vmatprep.subr.mxu0 0.0
        %1001 = vmatpush1.msra.mxu0 0.0
        %1002 = vmatprep.subr.mxu0 0.0
        %1003 = vmatpush1.msra.mxu0 0.0
        %1004 = vmatprep.subr.mxu0 0.0
        %1005 = vmatpush1.msra.mxu0 0.0
        %1006 = vmatprep.subr.mxu0 0.0
        %1007 = vmatpush1.msra.mxu0 0.0
        %1008 = vmatprep.subr.mxu0 0.0
        %1009 = vmatpush1.msra.mxu0 0.0
        %1010 = vmatprep.subr.mxu0 0.0
        %1011 = vmatpush1.msra.mxu0 0.0
        %1012 = vmatprep.subr.mxu0 0.0
        %1013 = vmatpush1.msra.mxu0 0.0
        %1014 = vmatprep.subr.mxu0 0.0
        %1015 = vmatpush1.msra.mxu0 0.0
        %1016 = vmatprep.subr.mxu0 0.0
        %1017 = vmatpush1.msra.mxu0 0.0
        %1018 = vmatprep.subr.mxu0 0.0
        %1019 = vmatpush1.msra.mxu0 0.0
        %1020 = vmatprep.subr.mxu0 0.0
        %1021 = vmatpush1.msra.mxu0 0.0
        %1022 = vmatprep.subr.mxu0 0.0
        %1023 = vmatpush1.msra.mxu0 0.0
        %1024 = vmatprep.subr.mxu0 0.0
        %1025 = vmatpush1.msra.mxu0 0.0
        %1026 = vmatprep.subr.mxu0 0.0
        %1027 = vmatpush1.msra.mxu0 0.0
        %1028 = vmatprep.subr.mxu0 0.0
        %1029 = vmatpush1.msra.mxu0 0.0
        %1030 = vmatprep.subr.mxu0 0.0
        %1031 = vmatpush1.msra.mxu0 0.0
        %1032 = vmatprep.subr.mxu0 0.0
        %1033 = vmatpush1.msra.mxu0 0.0
        %1034 = vmatprep.mubr.f32.mxu0 0.0
        %1035 = vmatmul.mubr.f32.gmra.mrb[0].mxu0 %v470
        %v1036 = vpop.f32.mrb[0].mxu0
        %v1037 = vadd.f32 %v967, %v1036
        %v1038 = vpop.f32.mrb[0].mxu0
        %1039 = vdwg.mxu0
        %s1040 = scalar_lea.vmem [#allocation4], 320
        %v1041 = vld [vmem:[%s1040] sm:$0xff]
        %v1042 = vld [vmem:[%s1040 + $0x8] sm:$0xff]
        %v1043 = vld [vmem:[%s1040 + $0x10] sm:$0xff]
        %v1044 = vld [vmem:[%s1040 + $0x18] sm:$0xff]
        %v1045 = vld [vmem:[%s1040 + $0x20] sm:$0xff]
        %v1046 = vld [vmem:[%s1040 + $0x28] sm:$0xff]
        %v1047 = vld [vmem:[%s1040 + $0x30] sm:$0xff]
        %v1048 = vld [vmem:[%s1040 + $0x38] sm:$0xff]
        %v1049 = vld [vmem:[%s1040 + $0x40] sm:$0xff]
        %v1050 = vld [vmem:[%s1040 + $0x48] sm:$0xff]
        %s1051 = scalar_lea.vmem [#allocation4], 400
        %v1052 = vld [vmem:[%s1051] sm:$0xff]
        %v1053 = vld [vmem:[%s1051 + $0x8] sm:$0xff]
        %v1054 = vld [vmem:[%s1051 + $0x10] sm:$0xff]
        %v1055 = vld [vmem:[%s1051 + $0x18] sm:$0xff]
        %v1056 = vld [vmem:[%s1051 + $0x20] sm:$0xff]
        %v1057 = vld [vmem:[%s1051 + $0x28] sm:$0xff]
        %v1058 = vld [vmem:[%s1051 + $0x30] sm:$0xff]
        %v1059 = vld [vmem:[%s1051 + $0x38] sm:$0xff]
        %v1060 = vld [vmem:[%s1051 + $0x40] sm:$0xff]
        %v1061 = vld [vmem:[%s1051 + $0x48] sm:$0xff]
        %1062 = vmatprep.subr.mxu0 0.0
        %1063 = vmatpush1.msra.mxu0 %v1041
        %1064 = vmatprep.subr.mxu0 0.0
        %1065 = vmatpush1.msra.mxu0 %v1042
        %1066 = vmatprep.subr.mxu0 0.0
        %1067 = vmatpush1.msra.mxu0 %v1043
        %1068 = vmatprep.subr.mxu0 0.0
        %1069 = vmatpush1.msra.mxu0 %v1044
        %1070 = vmatprep.subr.mxu0 0.0
        %1071 = vmatpush1.msra.mxu0 %v1045
        %1072 = vmatprep.subr.mxu0 0.0
        %1073 = vmatpush1.msra.mxu0 %v1046
        %1074 = vmatprep.subr.mxu0 0.0
        %1075 = vmatpush1.msra.mxu0 %v1047
        %1076 = vmatprep.subr.mxu0 0.0
        %1077 = vmatpush1.msra.mxu0 %v1048
        %1078 = vmatprep.subr.mxu0 0.0
        %1079 = vmatpush1.msra.mxu0 %v1049
        %1080 = vmatprep.subr.mxu0 0.0
        %1081 = vmatpush1.msra.mxu0 %v1050
        %1082 = vmatprep.subr.mxu0 0.0
        %1083 = vmatpush1.msra.mxu0 0.0
        %1084 = vmatprep.subr.mxu0 0.0
        %1085 = vmatpush1.msra.mxu0 0.0
        %1086 = vmatprep.subr.mxu0 0.0
        %1087 = vmatpush1.msra.mxu0 0.0
        %1088 = vmatprep.subr.mxu0 0.0
        %1089 = vmatpush1.msra.mxu0 0.0
        %1090 = vmatprep.subr.mxu0 0.0
        %1091 = vmatpush1.msra.mxu0 0.0
        %1092 = vmatprep.subr.mxu0 0.0
        %1093 = vmatpush1.msra.mxu0 0.0
        %1094 = vmatprep.subr.mxu0 0.0
        %1095 = vmatpush1.msra.mxu0 0.0
        %1096 = vmatprep.subr.mxu0 0.0
        %1097 = vmatpush1.msra.mxu0 0.0
        %1098 = vmatprep.subr.mxu0 0.0
        %1099 = vmatpush1.msra.mxu0 0.0
        %1100 = vmatprep.subr.mxu0 0.0
        %1101 = vmatpush1.msra.mxu0 0.0
        %1102 = vmatprep.subr.mxu0 0.0
        %1103 = vmatpush1.msra.mxu0 0.0
        %1104 = vmatprep.subr.mxu0 0.0
        %1105 = vmatpush1.msra.mxu0 0.0
        %1106 = vmatprep.subr.mxu0 0.0
        %1107 = vmatpush1.msra.mxu0 0.0
        %1108 = vmatprep.subr.mxu0 0.0
        %1109 = vmatpush1.msra.mxu0 0.0
        %1110 = vmatprep.subr.mxu0 0.0
        %1111 = vmatpush1.msra.mxu0 0.0
        %1112 = vmatprep.subr.mxu0 0.0
        %1113 = vmatpush1.msra.mxu0 0.0
        %1114 = vmatprep.subr.mxu0 0.0
        %1115 = vmatpush1.msra.mxu0 0.0
        %1116 = vmatprep.subr.mxu0 0.0
        %1117 = vmatpush1.msra.mxu0 0.0
        %1118 = vmatprep.subr.mxu0 0.0
        %1119 = vmatpush1.msra.mxu0 0.0
        %1120 = vmatprep.subr.mxu0 0.0
        %1121 = vmatpush1.msra.mxu0 0.0
        %1122 = vmatprep.subr.mxu0 0.0
        %1123 = vmatpush1.msra.mxu0 0.0
        %1124 = vmatprep.subr.mxu0 0.0
        %1125 = vmatpush1.msra.mxu0 0.0
        %1126 = vmatprep.mubr.f32.mxu0 0.0
        %1127 = vmatmul.mubr.f32.gmra.mrb[0].mxu0 %v758
        %v1128 = vpop.f32.mrb[0].mxu0
        %v1129 = vadd.f32 0.0, %v1128
        %v1130 = vpop.f32.mrb[0].mxu0
        %1131 = vdwg.mxu0
        %v1132 = vadd.f32 %v612, %v1129
        %1133 = vmatprep.subr.mxu0 0.0
        %1134 = vmatpush1.msra.mxu0 %v1052
        %1135 = vmatprep.subr.mxu0 0.0
        %1136 = vmatpush1.msra.mxu0 %v1053
        %1137 = vmatprep.subr.mxu0 0.0
        %1138 = vmatpush1.msra.mxu0 %v1054
        %1139 = vmatprep.subr.mxu0 0.0
        %1140 = vmatpush1.msra.mxu0 %v1055
        %1141 = vmatprep.subr.mxu0 0.0
        %1142 = vmatpush1.msra.mxu0 %v1056
        %1143 = vmatprep.subr.mxu0 0.0
        %1144 = vmatpush1.msra.mxu0 %v1057
        %1145 = vmatprep.subr.mxu0 0.0
        %1146 = vmatpush1.msra.mxu0 %v1058
        %1147 = vmatprep.subr.mxu0 0.0
        %1148 = vmatpush1.msra.mxu0 %v1059
        %1149 = vmatprep.subr.mxu0 0.0
        %1150 = vmatpush1.msra.mxu0 %v1060
        %1151 = vmatprep.subr.mxu0 0.0
        %1152 = vmatpush1.msra.mxu0 %v1061
        %1153 = vmatprep.subr.mxu0 0.0
        %1154 = vmatpush1.msra.mxu0 0.0
        %1155 = vmatprep.subr.mxu0 0.0
        %1156 = vmatpush1.msra.mxu0 0.0
        %1157 = vmatprep.subr.mxu0 0.0
        %1158 = vmatpush1.msra.mxu0 0.0
        %1159 = vmatprep.subr.mxu0 0.0
        %1160 = vmatpush1.msra.mxu0 0.0
        %1161 = vmatprep.subr.mxu0 0.0
        %1162 = vmatpush1.msra.mxu0 0.0
        %1163 = vmatprep.subr.mxu0 0.0
        %1164 = vmatpush1.msra.mxu0 0.0
        %1165 = vmatprep.subr.mxu0 0.0
        %1166 = vmatpush1.msra.mxu0 0.0
        %1167 = vmatprep.subr.mxu0 0.0
        %1168 = vmatpush1.msra.mxu0 0.0
        %1169 = vmatprep.subr.mxu0 0.0
        %1170 = vmatpush1.msra.mxu0 0.0
        %1171 = vmatprep.subr.mxu0 0.0
        %1172 = vmatpush1.msra.mxu0 0.0
        %1173 = vmatprep.subr.mxu0 0.0
        %1174 = vmatpush1.msra.mxu0 0.0
        %1175 = vmatprep.subr.mxu0 0.0
        %1176 = vmatpush1.msra.mxu0 0.0
        %1177 = vmatprep.subr.mxu0 0.0
        %1178 = vmatpush1.msra.mxu0 0.0
        %1179 = vmatprep.subr.mxu0 0.0
        %1180 = vmatpush1.msra.mxu0 0.0
        %1181 = vmatprep.subr.mxu0 0.0
        %1182 = vmatpush1.msra.mxu0 0.0
        %1183 = vmatprep.subr.mxu0 0.0
        %1184 = vmatpush1.msra.mxu0 0.0
        %1185 = vmatprep.subr.mxu0 0.0
        %1186 = vmatpush1.msra.mxu0 0.0
        %1187 = vmatprep.subr.mxu0 0.0
        %1188 = vmatpush1.msra.mxu0 0.0
        %1189 = vmatprep.subr.mxu0 0.0
        %1190 = vmatpush1.msra.mxu0 0.0
        %1191 = vmatprep.subr.mxu0 0.0
        %1192 = vmatpush1.msra.mxu0 0.0
        %1193 = vmatprep.subr.mxu0 0.0
        %1194 = vmatpush1.msra.mxu0 0.0
        %1195 = vmatprep.subr.mxu0 0.0
        %1196 = vmatpush1.msra.mxu0 0.0
        %1197 = vmatprep.mubr.f32.mxu0 0.0
        %1198 = vmatmul.mubr.f32.gmra.mrb[0].mxu0 %v758
        %v1199 = vpop.f32.mrb[0].mxu0
        %v1200 = vadd.f32 0.0, %v1199
        %v1201 = vpop.f32.mrb[0].mxu0
        %1202 = vdwg.mxu0
        %v1203 = vadd.f32 %v752, %v1200
        %s1204 = scalar_lea.vmem [#allocation2], 3
        %v1205 = vld [vmem:[%s1204] ss:$2 sm:$0xff]
        %v1207 = vsel %vm417, %v1205, 0
        %1209 = vmatprep.subr.mxu0 0.0
        %1210 = vmatpush1.msra.mxu0 %v1041
        %1211 = vmatprep.subr.mxu0 0.0
        %1212 = vmatpush1.msra.mxu0 %v1042
        %1213 = vmatprep.subr.mxu0 0.0
        %1214 = vmatpush1.msra.mxu0 %v1043
        %1215 = vmatprep.subr.mxu0 0.0
        %1216 = vmatpush1.msra.mxu0 %v1044
        %1217 = vmatprep.subr.mxu0 0.0
        %1218 = vmatpush1.msra.mxu0 %v1045
        %1219 = vmatprep.subr.mxu0 0.0
        %1220 = vmatpush1.msra.mxu0 %v1046
        %1221 = vmatprep.subr.mxu0 0.0
        %1222 = vmatpush1.msra.mxu0 %v1047
        %1223 = vmatprep.subr.mxu0 0.0
        %1224 = vmatpush1.msra.mxu0 %v1048
        %1225 = vmatprep.subr.mxu0 0.0
        %1226 = vmatpush1.msra.mxu0 %v1049
        %1227 = vmatprep.subr.mxu0 0.0
        %1228 = vmatpush1.msra.mxu0 %v1050
        %1229 = vmatprep.subr.mxu0 0.0
        %1230 = vmatpush1.msra.mxu0 0.0
        %1231 = vmatprep.subr.mxu0 0.0
        %1232 = vmatpush1.msra.mxu0 0.0
        %1233 = vmatprep.subr.mxu0 0.0
        %1234 = vmatpush1.msra.mxu0 0.0
        %1235 = vmatprep.subr.mxu0 0.0
        %1236 = vmatpush1.msra.mxu0 0.0
        %1237 = vmatprep.subr.mxu0 0.0
        %1238 = vmatpush1.msra.mxu0 0.0
        %1239 = vmatprep.subr.mxu0 0.0
        %1240 = vmatpush1.msra.mxu0 0.0
        %1241 = vmatprep.subr.mxu0 0.0
        %1242 = vmatpush1.msra.mxu0 0.0
        %1243 = vmatprep.subr.mxu0 0.0
        %1244 = vmatpush1.msra.mxu0 0.0
        %1245 = vmatprep.subr.mxu0 0.0
        %1246 = vmatpush1.msra.mxu0 0.0
        %1247 = vmatprep.subr.mxu0 0.0
        %1248 = vmatpush1.msra.mxu0 0.0
        %1249 = vmatprep.subr.mxu0 0.0
        %1250 = vmatpush1.msra.mxu0 0.0
        %1251 = vmatprep.subr.mxu0 0.0
        %1252 = vmatpush1.msra.mxu0 0.0
        %1253 = vmatprep.subr.mxu0 0.0
        %1254 = vmatpush1.msra.mxu0 0.0
        %1255 = vmatprep.subr.mxu0 0.0
        %1256 = vmatpush1.msra.mxu0 0.0
        %1257 = vmatprep.subr.mxu0 0.0
        %1258 = vmatpush1.msra.mxu0 0.0
        %1259 = vmatprep.subr.mxu0 0.0
        %1260 = vmatpush1.msra.mxu0 0.0
        %1261 = vmatprep.subr.mxu0 0.0
        %1262 = vmatpush1.msra.mxu0 0.0
        %1263 = vmatprep.subr.mxu0 0.0
        %1264 = vmatpush1.msra.mxu0 0.0
        %1265 = vmatprep.subr.mxu0 0.0
        %1266 = vmatpush1.msra.mxu0 0.0
        %1267 = vmatprep.subr.mxu0 0.0
        %1268 = vmatpush1.msra.mxu0 0.0
        %1269 = vmatprep.subr.mxu0 0.0
        %1270 = vmatpush1.msra.mxu0 0.0
        %1271 = vmatprep.subr.mxu0 0.0
        %1272 = vmatpush1.msra.mxu0 0.0
        %1273 = vmatprep.mubr.f32.mxu0 0.0
        %1274 = vmatmul.mubr.f32.gmra.mrb[0].mxu0 %v1207
        %v1275 = vpop.f32.mrb[0].mxu0
        %v1276 = vadd.f32 0.0, %v1275
        %v1277 = vpop.f32.mrb[0].mxu0
        %1278 = vdwg.mxu0
        %v1279 = vadd.f32 %v897, %v1276
        %1280 = vmatprep.subr.mxu0 0.0
        %1281 = vmatpush1.msra.mxu0 %v1052
        %1282 = vmatprep.subr.mxu0 0.0
        %1283 = vmatpush1.msra.mxu0 %v1053
        %1284 = vmatprep.subr.mxu0 0.0
        %1285 = vmatpush1.msra.mxu0 %v1054
        %1286 = vmatprep.subr.mxu0 0.0
        %1287 = vmatpush1.msra.mxu0 %v1055
        %1288 = vmatprep.subr.mxu0 0.0
        %1289 = vmatpush1.msra.mxu0 %v1056
        %1290 = vmatprep.subr.mxu0 0.0
        %1291 = vmatpush1.msra.mxu0 %v1057
        %1292 = vmatprep.subr.mxu0 0.0
        %1293 = vmatpush1.msra.mxu0 %v1058
        %1294 = vmatprep.subr.mxu0 0.0
        %1295 = vmatpush1.msra.mxu0 %v1059
        %1296 = vmatprep.subr.mxu0 0.0
        %1297 = vmatpush1.msra.mxu0 %v1060
        %1298 = vmatprep.subr.mxu0 0.0
        %1299 = vmatpush1.msra.mxu0 %v1061
        %1300 = vmatprep.subr.mxu0 0.0
        %1301 = vmatpush1.msra.mxu0 0.0
        %1302 = vmatprep.subr.mxu0 0.0
        %1303 = vmatpush1.msra.mxu0 0.0
        %1304 = vmatprep.subr.mxu0 0.0
        %1305 = vmatpush1.msra.mxu0 0.0
        %1306 = vmatprep.subr.mxu0 0.0
        %1307 = vmatpush1.msra.mxu0 0.0
        %1308 = vmatprep.subr.mxu0 0.0
        %1309 = vmatpush1.msra.mxu0 0.0
        %1310 = vmatprep.subr.mxu0 0.0
        %1311 = vmatpush1.msra.mxu0 0.0
        %1312 = vmatprep.subr.mxu0 0.0
        %1313 = vmatpush1.msra.mxu0 0.0
        %1314 = vmatprep.subr.mxu0 0.0
        %1315 = vmatpush1.msra.mxu0 0.0
        %1316 = vmatprep.subr.mxu0 0.0
        %1317 = vmatpush1.msra.mxu0 0.0
        %1318 = vmatprep.subr.mxu0 0.0
        %1319 = vmatpush1.msra.mxu0 0.0
        %1320 = vmatprep.subr.mxu0 0.0
        %1321 = vmatpush1.msra.mxu0 0.0
        %1322 = vmatprep.subr.mxu0 0.0
        %1323 = vmatpush1.msra.mxu0 0.0
        %1324 = vmatprep.subr.mxu0 0.0
        %1325 = vmatpush1.msra.mxu0 0.0
        %1326 = vmatprep.subr.mxu0 0.0
        %1327 = vmatpush1.msra.mxu0 0.0
        %1328 = vmatprep.subr.mxu0 0.0
        %1329 = vmatpush1.msra.mxu0 0.0
        %1330 = vmatprep.subr.mxu0 0.0
        %1331 = vmatpush1.msra.mxu0 0.0
        %1332 = vmatprep.subr.mxu0 0.0
        %1333 = vmatpush1.msra.mxu0 0.0
        %1334 = vmatprep.subr.mxu0 0.0
        %1335 = vmatpush1.msra.mxu0 0.0
        %1336 = vmatprep.subr.mxu0 0.0
        %1337 = vmatpush1.msra.mxu0 0.0
        %1338 = vmatprep.subr.mxu0 0.0
        %1339 = vmatpush1.msra.mxu0 0.0
        %1340 = vmatprep.subr.mxu0 0.0
        %1341 = vmatpush1.msra.mxu0 0.0
        %1342 = vmatprep.subr.mxu0 0.0
        %1343 = vmatpush1.msra.mxu0 0.0
        %1344 = vmatprep.mubr.f32.mxu0 0.0
        %1345 = vmatmul.mubr.f32.gmra.mrb[0].mxu0 %v1207
        %v1346 = vpop.f32.mrb[0].mxu0
        %v1347 = vadd.f32 0.0, %v1346
        %v1348 = vpop.f32.mrb[0].mxu0
        %1349 = vdwg.mxu0
        %v1350 = vadd.f32 %v1037, %v1347
        %s1351 = scalar_lea.vmem [#allocation4], 480
        %v1352 = vld [vmem:[%s1351] sm:$0xff]
        %v1353 = vld [vmem:[%s1351 + $0x8] sm:$0xff]
        %v1354 = vld [vmem:[%s1351 + $0x10] sm:$0xff]
        %v1355 = vld [vmem:[%s1351 + $0x18] sm:$0xff]
        %v1356 = vld [vmem:[%s1351 + $0x20] sm:$0xff]
        %v1357 = vld [vmem:[%s1351 + $0x28] sm:$0xff]
        %v1358 = vld [vmem:[%s1351 + $0x30] sm:$0xff]
        %v1359 = vld [vmem:[%s1351 + $0x38] sm:$0xff]
        %v1360 = vld [vmem:[%s1351 + $0x40] sm:$0xff]
        %v1361 = vld [vmem:[%s1351 + $0x48] sm:$0xff]
        %s1362 = scalar_lea.vmem [#allocation4], 560
        %v1363 = vld [vmem:[%s1362] sm:$0xff]
        %v1364 = vld [vmem:[%s1362 + $0x8] sm:$0xff]
        %v1365 = vld [vmem:[%s1362 + $0x10] sm:$0xff]
        %v1366 = vld [vmem:[%s1362 + $0x18] sm:$0xff]
        %v1367 = vld [vmem:[%s1362 + $0x20] sm:$0xff]
        %v1368 = vld [vmem:[%s1362 + $0x28] sm:$0xff]
        %v1369 = vld [vmem:[%s1362 + $0x30] sm:$0xff]
        %v1370 = vld [vmem:[%s1362 + $0x38] sm:$0xff]
        %v1371 = vld [vmem:[%s1362 + $0x40] sm:$0xff]
        %v1372 = vld [vmem:[%s1362 + $0x48] sm:$0xff]
        %1373 = vmatprep.subr.mxu0 0.0
        %1374 = vmatpush1.msra.mxu0 %v1352
        %1375 = vmatprep.subr.mxu0 0.0
        %1376 = vmatpush1.msra.mxu0 %v1353
        %1377 = vmatprep.subr.mxu0 0.0
        %1378 = vmatpush1.msra.mxu0 %v1354
        %1379 = vmatprep.subr.mxu0 0.0
        %1380 = vmatpush1.msra.mxu0 %v1355
        %1381 = vmatprep.subr.mxu0 0.0
        %1382 = vmatpush1.msra.mxu0 %v1356
        %1383 = vmatprep.subr.mxu0 0.0
        %1384 = vmatpush1.msra.mxu0 %v1357
        %1385 = vmatprep.subr.mxu0 0.0
        %1386 = vmatpush1.msra.mxu0 %v1358
        %1387 = vmatprep.subr.mxu0 0.0
        %1388 = vmatpush1.msra.mxu0 %v1359
        %1389 = vmatprep.subr.mxu0 0.0
        %1390 = vmatpush1.msra.mxu0 %v1360
        %1391 = vmatprep.subr.mxu0 0.0
        %1392 = vmatpush1.msra.mxu0 %v1361
        %1393 = vmatprep.subr.mxu0 0.0
        %1394 = vmatpush1.msra.mxu0 0.0
        %1395 = vmatprep.subr.mxu0 0.0
        %1396 = vmatpush1.msra.mxu0 0.0
        %1397 = vmatprep.subr.mxu0 0.0
        %1398 = vmatpush1.msra.mxu0 0.0
        %1399 = vmatprep.subr.mxu0 0.0
        %1400 = vmatpush1.msra.mxu0 0.0
        %1401 = vmatprep.subr.mxu0 0.0
        %1402 = vmatpush1.msra.mxu0 0.0
        %1403 = vmatprep.subr.mxu0 0.0
        %1404 = vmatpush1.msra.mxu0 0.0
        %1405 = vmatprep.subr.mxu0 0.0
        %1406 = vmatpush1.msra.mxu0 0.0
        %1407 = vmatprep.subr.mxu0 0.0
        %1408 = vmatpush1.msra.mxu0 0.0
        %1409 = vmatprep.subr.mxu0 0.0
        %1410 = vmatpush1.msra.mxu0 0.0
        %1411 = vmatprep.subr.mxu0 0.0
        %1412 = vmatpush1.msra.mxu0 0.0
        %1413 = vmatprep.subr.mxu0 0.0
        %1414 = vmatpush1.msra.mxu0 0.0
        %1415 = vmatprep.subr.mxu0 0.0
        %1416 = vmatpush1.msra.mxu0 0.0
        %1417 = vmatprep.subr.mxu0 0.0
        %1418 = vmatpush1.msra.mxu0 0.0
        %1419 = vmatprep.subr.mxu0 0.0
        %1420 = vmatpush1.msra.mxu0 0.0
        %1421 = vmatprep.subr.mxu0 0.0
        %1422 = vmatpush1.msra.mxu0 0.0
        %1423 = vmatprep.subr.mxu0 0.0
        %1424 = vmatpush1.msra.mxu0 0.0
        %1425 = vmatprep.subr.mxu0 0.0
        %1426 = vmatpush1.msra.mxu0 0.0
        %1427 = vmatprep.subr.mxu0 0.0
        %1428 = vmatpush1.msra.mxu0 0.0
        %1429 = vmatprep.subr.mxu0 0.0
        %1430 = vmatpush1.msra.mxu0 0.0
        %1431 = vmatprep.subr.mxu0 0.0
        %1432 = vmatpush1.msra.mxu0 0.0
        %1433 = vmatprep.subr.mxu0 0.0
        %1434 = vmatpush1.msra.mxu0 0.0
        %1435 = vmatprep.subr.mxu0 0.0
        %1436 = vmatpush1.msra.mxu0 0.0
        %1437 = vmatprep.mubr.f32.mxu0 0.0
        %1438 = vmatmul.mubr.f32.gmra.mrb[0].mxu0 %v1207
        %v1439 = vpop.f32.mrb[0].mxu0
        %v1440 = vadd.f32 0.0, %v1439
        %v1441 = vpop.f32.mrb[0].mxu0
        %1442 = vdwg.mxu0
        %v1443 = vadd.f32 %v1132, %v1440
        %1444 = vmatprep.subr.mxu0 0.0
        %1445 = vmatpush1.msra.mxu0 %v1363
        %1446 = vmatprep.subr.mxu0 0.0
        %1447 = vmatpush1.msra.mxu0 %v1364
        %1448 = vmatprep.subr.mxu0 0.0
        %1449 = vmatpush1.msra.mxu0 %v1365
        %1450 = vmatprep.subr.mxu0 0.0
        %1451 = vmatpush1.msra.mxu0 %v1366
        %1452 = vmatprep.subr.mxu0 0.0
        %1453 = vmatpush1.msra.mxu0 %v1367
        %1454 = vmatprep.subr.mxu0 0.0
        %1455 = vmatpush1.msra.mxu0 %v1368
        %1456 = vmatprep.subr.mxu0 0.0
        %1457 = vmatpush1.msra.mxu0 %v1369
        %1458 = vmatprep.subr.mxu0 0.0
        %1459 = vmatpush1.msra.mxu0 %v1370
        %1460 = vmatprep.subr.mxu0 0.0
        %1461 = vmatpush1.msra.mxu0 %v1371
        %1462 = vmatprep.subr.mxu0 0.0
        %1463 = vmatpush1.msra.mxu0 %v1372
        %1464 = vmatprep.subr.mxu0 0.0
        %1465 = vmatpush1.msra.mxu0 0.0
        %1466 = vmatprep.subr.mxu0 0.0
        %1467 = vmatpush1.msra.mxu0 0.0
        %1468 = vmatprep.subr.mxu0 0.0
        %1469 = vmatpush1.msra.mxu0 0.0
        %1470 = vmatprep.subr.mxu0 0.0
        %1471 = vmatpush1.msra.mxu0 0.0
        %1472 = vmatprep.subr.mxu0 0.0
        %1473 = vmatpush1.msra.mxu0 0.0
        %1474 = vmatprep.subr.mxu0 0.0
        %1475 = vmatpush1.msra.mxu0 0.0
        %1476 = vmatprep.subr.mxu0 0.0
        %1477 = vmatpush1.msra.mxu0 0.0
        %1478 = vmatprep.subr.mxu0 0.0
        %1479 = vmatpush1.msra.mxu0 0.0
        %1480 = vmatprep.subr.mxu0 0.0
        %1481 = vmatpush1.msra.mxu0 0.0
        %1482 = vmatprep.subr.mxu0 0.0
        %1483 = vmatpush1.msra.mxu0 0.0
        %1484 = vmatprep.subr.mxu0 0.0
        %1485 = vmatpush1.msra.mxu0 0.0
        %1486 = vmatprep.subr.mxu0 0.0
        %1487 = vmatpush1.msra.mxu0 0.0
        %1488 = vmatprep.subr.mxu0 0.0
        %1489 = vmatpush1.msra.mxu0 0.0
        %1490 = vmatprep.subr.mxu0 0.0
        %1491 = vmatpush1.msra.mxu0 0.0
        %1492 = vmatprep.subr.mxu0 0.0
        %1493 = vmatpush1.msra.mxu0 0.0
        %1494 = vmatprep.subr.mxu0 0.0
        %1495 = vmatpush1.msra.mxu0 0.0
        %1496 = vmatprep.subr.mxu0 0.0
        %1497 = vmatpush1.msra.mxu0 0.0
        %1498 = vmatprep.subr.mxu0 0.0
        %1499 = vmatpush1.msra.mxu0 0.0
        %1500 = vmatprep.subr.mxu0 0.0
        %1501 = vmatpush1.msra.mxu0 0.0
        %1502 = vmatprep.subr.mxu0 0.0
        %1503 = vmatpush1.msra.mxu0 0.0
        %1504 = vmatprep.subr.mxu0 0.0
        %1505 = vmatpush1.msra.mxu0 0.0
        %1506 = vmatprep.subr.mxu0 0.0
        %1507 = vmatpush1.msra.mxu0 0.0
        %1508 = vmatprep.mubr.f32.mxu0 0.0
        %1509 = vmatmul.mubr.f32.gmra.mrb[0].mxu0 %v1207
        %v1510 = vpop.f32.mrb[0].mxu0
        %v1511 = vadd.f32 0.0, %v1510
        %v1512 = vpop.f32.mrb[0].mxu0
        %1513 = vdwg.mxu0
        %v1514 = vadd.f32 %v1203, %v1511
        %s1515 = scalar_lea.vmem [#allocation2], 4
        %v1516 = vld [vmem:[%s1515] ss:$2 sm:$0xff]
        %v1518 = vsel %vm417, %v1516, 0
        %1520 = vmatprep.subr.mxu0 0.0
        %1521 = vmatpush1.msra.mxu0 %v1352
        %1522 = vmatprep.subr.mxu0 0.0
        %1523 = vmatpush1.msra.mxu0 %v1353
        %1524 = vmatprep.subr.mxu0 0.0
        %1525 = vmatpush1.msra.mxu0 %v1354
        %1526 = vmatprep.subr.mxu0 0.0
        %1527 = vmatpush1.msra.mxu0 %v1355
        %1528 = vmatprep.subr.mxu0 0.0
        %1529 = vmatpush1.msra.mxu0 %v1356
        %1530 = vmatprep.subr.mxu0 0.0
        %1531 = vmatpush1.msra.mxu0 %v1357
        %1532 = vmatprep.subr.mxu0 0.0
        %1533 = vmatpush1.msra.mxu0 %v1358
        %1534 = vmatprep.subr.mxu0 0.0
        %1535 = vmatpush1.msra.mxu0 %v1359
        %1536 = vmatprep.subr.mxu0 0.0
        %1537 = vmatpush1.msra.mxu0 %v1360
        %1538 = vmatprep.subr.mxu0 0.0
        %1539 = vmatpush1.msra.mxu0 %v1361
        %1540 = vmatprep.subr.mxu0 0.0
        %1541 = vmatpush1.msra.mxu0 0.0
        %1542 = vmatprep.subr.mxu0 0.0
        %1543 = vmatpush1.msra.mxu0 0.0
        %1544 = vmatprep.subr.mxu0 0.0
        %1545 = vmatpush1.msra.mxu0 0.0
        %1546 = vmatprep.subr.mxu0 0.0
        %1547 = vmatpush1.msra.mxu0 0.0
        %1548 = vmatprep.subr.mxu0 0.0
        %1549 = vmatpush1.msra.mxu0 0.0
        %1550 = vmatprep.subr.mxu0 0.0
        %1551 = vmatpush1.msra.mxu0 0.0
        %1552 = vmatprep.subr.mxu0 0.0
        %1553 = vmatpush1.msra.mxu0 0.0
        %1554 = vmatprep.subr.mxu0 0.0
        %1555 = vmatpush1.msra.mxu0 0.0
        %1556 = vmatprep.subr.mxu0 0.0
        %1557 = vmatpush1.msra.mxu0 0.0
        %1558 = vmatprep.subr.mxu0 0.0
        %1559 = vmatpush1.msra.mxu0 0.0
        %1560 = vmatprep.subr.mxu0 0.0
        %1561 = vmatpush1.msra.mxu0 0.0
        %1562 = vmatprep.subr.mxu0 0.0
        %1563 = vmatpush1.msra.mxu0 0.0
        %1564 = vmatprep.subr.mxu0 0.0
        %1565 = vmatpush1.msra.mxu0 0.0
        %1566 = vmatprep.subr.mxu0 0.0
        %1567 = vmatpush1.msra.mxu0 0.0
        %1568 = vmatprep.subr.mxu0 0.0
        %1569 = vmatpush1.msra.mxu0 0.0
        %1570 = vmatprep.subr.mxu0 0.0
        %1571 = vmatpush1.msra.mxu0 0.0
        %1572 = vmatprep.subr.mxu0 0.0
        %1573 = vmatpush1.msra.mxu0 0.0
        %1574 = vmatprep.subr.mxu0 0.0
        %1575 = vmatpush1.msra.mxu0 0.0
        %1576 = vmatprep.subr.mxu0 0.0
        %1577 = vmatpush1.msra.mxu0 0.0
        %1578 = vmatprep.subr.mxu0 0.0
        %1579 = vmatpush1.msra.mxu0 0.0
        %1580 = vmatprep.subr.mxu0 0.0
        %1581 = vmatpush1.msra.mxu0 0.0
        %1582 = vmatprep.subr.mxu0 0.0
        %1583 = vmatpush1.msra.mxu0 0.0
        %1584 = vmatprep.mubr.f32.mxu0 0.0
        %1585 = vmatmul.mubr.f32.gmra.mrb[0].mxu0 %v1518
        %v1586 = vpop.f32.mrb[0].mxu0
        %v1587 = vadd.f32 0.0, %v1586
        %v1588 = vpop.f32.mrb[0].mxu0
        %1589 = vdwg.mxu0
        %v1590 = vadd.f32 %v1279, %v1587
        %1591 = vmatprep.subr.mxu0 0.0
        %1592 = vmatpush1.msra.mxu0 %v1363
        %1593 = vmatprep.subr.mxu0 0.0
        %1594 = vmatpush1.msra.mxu0 %v1364
        %1595 = vmatprep.subr.mxu0 0.0
        %1596 = vmatpush1.msra.mxu0 %v1365
        %1597 = vmatprep.subr.mxu0 0.0
        %1598 = vmatpush1.msra.mxu0 %v1366
        %1599 = vmatprep.subr.mxu0 0.0
        %1600 = vmatpush1.msra.mxu0 %v1367
        %1601 = vmatprep.subr.mxu0 0.0
        %1602 = vmatpush1.msra.mxu0 %v1368
        %1603 = vmatprep.subr.mxu0 0.0
        %1604 = vmatpush1.msra.mxu0 %v1369
        %1605 = vmatprep.subr.mxu0 0.0
        %1606 = vmatpush1.msra.mxu0 %v1370
        %1607 = vmatprep.subr.mxu0 0.0
        %1608 = vmatpush1.msra.mxu0 %v1371
        %1609 = vmatprep.subr.mxu0 0.0
        %1610 = vmatpush1.msra.mxu0 %v1372
        %1611 = vmatprep.subr.mxu0 0.0
        %1612 = vmatpush1.msra.mxu0 0.0
        %1613 = vmatprep.subr.mxu0 0.0
        %1614 = vmatpush1.msra.mxu0 0.0
        %1615 = vmatprep.subr.mxu0 0.0
        %1616 = vmatpush1.msra.mxu0 0.0
        %1617 = vmatprep.subr.mxu0 0.0
        %1618 = vmatpush1.msra.mxu0 0.0
        %1619 = vmatprep.subr.mxu0 0.0
        %1620 = vmatpush1.msra.mxu0 0.0
        %1621 = vmatprep.subr.mxu0 0.0
        %1622 = vmatpush1.msra.mxu0 0.0
        %1623 = vmatprep.subr.mxu0 0.0
        %1624 = vmatpush1.msra.mxu0 0.0
        %1625 = vmatprep.subr.mxu0 0.0
        %1626 = vmatpush1.msra.mxu0 0.0
        %1627 = vmatprep.subr.mxu0 0.0
        %1628 = vmatpush1.msra.mxu0 0.0
        %1629 = vmatprep.subr.mxu0 0.0
        %1630 = vmatpush1.msra.mxu0 0.0
        %1631 = vmatprep.subr.mxu0 0.0
        %1632 = vmatpush1.msra.mxu0 0.0
        %1633 = vmatprep.subr.mxu0 0.0
        %1634 = vmatpush1.msra.mxu0 0.0
        %1635 = vmatprep.subr.mxu0 0.0
        %1636 = vmatpush1.msra.mxu0 0.0
        %1637 = vmatprep.subr.mxu0 0.0
        %1638 = vmatpush1.msra.mxu0 0.0
        %1639 = vmatprep.subr.mxu0 0.0
        %1640 = vmatpush1.msra.mxu0 0.0
        %1641 = vmatprep.subr.mxu0 0.0
        %1642 = vmatpush1.msra.mxu0 0.0
        %1643 = vmatprep.subr.mxu0 0.0
        %1644 = vmatpush1.msra.mxu0 0.0
        %1645 = vmatprep.subr.mxu0 0.0
        %1646 = vmatpush1.msra.mxu0 0.0
        %1647 = vmatprep.subr.mxu0 0.0
        %1648 = vmatpush1.msra.mxu0 0.0
        %1649 = vmatprep.subr.mxu0 0.0
        %1650 = vmatpush1.msra.mxu0 0.0
        %1651 = vmatprep.subr.mxu0 0.0
        %1652 = vmatpush1.msra.mxu0 0.0
        %1653 = vmatprep.subr.mxu0 0.0
        %1654 = vmatpush1.msra.mxu0 0.0
        %1655 = vmatprep.mubr.f32.mxu0 0.0
        %1656 = vmatmul.mubr.f32.gmra.mrb[0].mxu0 %v1518
        %v1657 = vpop.f32.mrb[0].mxu0
        %v1658 = vadd.f32 0.0, %v1657
        %v1659 = vpop.f32.mrb[0].mxu0
        %1660 = vdwg.mxu0
        %v1661 = vadd.f32 %v1350, %v1658
        %s1662 = scalar_lea.vmem [#allocation4], 640
        %v1663 = vld [vmem:[%s1662] sm:$0xff]
        %v1664 = vld [vmem:[%s1662 + $0x8] sm:$0xff]
        %v1665 = vld [vmem:[%s1662 + $0x10] sm:$0xff]
        %v1666 = vld [vmem:[%s1662 + $0x18] sm:$0xff]
        %v1667 = vld [vmem:[%s1662 + $0x20] sm:$0xff]
        %v1668 = vld [vmem:[%s1662 + $0x28] sm:$0xff]
        %v1669 = vld [vmem:[%s1662 + $0x30] sm:$0xff]
        %v1670 = vld [vmem:[%s1662 + $0x38] sm:$0xff]
        %v1671 = vld [vmem:[%s1662 + $0x40] sm:$0xff]
        %v1672 = vld [vmem:[%s1662 + $0x48] sm:$0xff]
        %s1673 = scalar_lea.vmem [#allocation4], 720
        %v1674 = vld [vmem:[%s1673] sm:$0xff]
        %v1675 = vld [vmem:[%s1673 + $0x8] sm:$0xff]
        %v1676 = vld [vmem:[%s1673 + $0x10] sm:$0xff]
        %v1677 = vld [vmem:[%s1673 + $0x18] sm:$0xff]
        %v1678 = vld [vmem:[%s1673 + $0x20] sm:$0xff]
        %v1679 = vld [vmem:[%s1673 + $0x28] sm:$0xff]
        %v1680 = vld [vmem:[%s1673 + $0x30] sm:$0xff]
        %v1681 = vld [vmem:[%s1673 + $0x38] sm:$0xff]
        %v1682 = vld [vmem:[%s1673 + $0x40] sm:$0xff]
        %v1683 = vld [vmem:[%s1673 + $0x48] sm:$0xff]
        %1684 = vmatprep.subr.mxu0 0.0
        %1685 = vmatpush1.msra.mxu0 %v1663
        %1686 = vmatprep.subr.mxu0 0.0
        %1687 = vmatpush1.msra.mxu0 %v1664
        %1688 = vmatprep.subr.mxu0 0.0
        %1689 = vmatpush1.msra.mxu0 %v1665
        %1690 = vmatprep.subr.mxu0 0.0
        %1691 = vmatpush1.msra.mxu0 %v1666
        %1692 = vmatprep.subr.mxu0 0.0
        %1693 = vmatpush1.msra.mxu0 %v1667
        %1694 = vmatprep.subr.mxu0 0.0
        %1695 = vmatpush1.msra.mxu0 %v1668
        %1696 = vmatprep.subr.mxu0 0.0
        %1697 = vmatpush1.msra.mxu0 %v1669
        %1698 = vmatprep.subr.mxu0 0.0
        %1699 = vmatpush1.msra.mxu0 %v1670
        %1700 = vmatprep.subr.mxu0 0.0
        %1701 = vmatpush1.msra.mxu0 %v1671
        %1702 = vmatprep.subr.mxu0 0.0
        %1703 = vmatpush1.msra.mxu0 %v1672
        %1704 = vmatprep.subr.mxu0 0.0
        %1705 = vmatpush1.msra.mxu0 0.0
        %1706 = vmatprep.subr.mxu0 0.0
        %1707 = vmatpush1.msra.mxu0 0.0
        %1708 = vmatprep.subr.mxu0 0.0
        %1709 = vmatpush1.msra.mxu0 0.0
        %1710 = vmatprep.subr.mxu0 0.0
        %1711 = vmatpush1.msra.mxu0 0.0
        %1712 = vmatprep.subr.mxu0 0.0
        %1713 = vmatpush1.msra.mxu0 0.0
        %1714 = vmatprep.subr.mxu0 0.0
        %1715 = vmatpush1.msra.mxu0 0.0
        %1716 = vmatprep.subr.mxu0 0.0
        %1717 = vmatpush1.msra.mxu0 0.0
        %1718 = vmatprep.subr.mxu0 0.0
        %1719 = vmatpush1.msra.mxu0 0.0
        %1720 = vmatprep.subr.mxu0 0.0
        %1721 = vmatpush1.msra.mxu0 0.0
        %1722 = vmatprep.subr.mxu0 0.0
        %1723 = vmatpush1.msra.mxu0 0.0
        %1724 = vmatprep.subr.mxu0 0.0
        %1725 = vmatpush1.msra.mxu0 0.0
        %1726 = vmatprep.subr.mxu0 0.0
        %1727 = vmatpush1.msra.mxu0 0.0
        %1728 = vmatprep.subr.mxu0 0.0
        %1729 = vmatpush1.msra.mxu0 0.0
        %1730 = vmatprep.subr.mxu0 0.0
        %1731 = vmatpush1.msra.mxu0 0.0
        %1732 = vmatprep.subr.mxu0 0.0
        %1733 = vmatpush1.msra.mxu0 0.0
        %1734 = vmatprep.subr.mxu0 0.0
        %1735 = vmatpush1.msra.mxu0 0.0
        %1736 = vmatprep.subr.mxu0 0.0
        %1737 = vmatpush1.msra.mxu0 0.0
        %1738 = vmatprep.subr.mxu0 0.0
        %1739 = vmatpush1.msra.mxu0 0.0
        %1740 = vmatprep.subr.mxu0 0.0
        %1741 = vmatpush1.msra.mxu0 0.0
        %1742 = vmatprep.subr.mxu0 0.0
        %1743 = vmatpush1.msra.mxu0 0.0
        %1744 = vmatprep.subr.mxu0 0.0
        %1745 = vmatpush1.msra.mxu0 0.0
        %1746 = vmatprep.subr.mxu0 0.0
        %1747 = vmatpush1.msra.mxu0 0.0
        %1748 = vmatprep.mubr.f32.mxu0 0.0
        %1749 = vmatmul.mubr.f32.gmra.mrb[0].mxu0 %v1518
        %v1750 = vpop.f32.mrb[0].mxu0
        %v1751 = vadd.f32 0.0, %v1750
        %v1752 = vpop.f32.mrb[0].mxu0
        %1753 = vdwg.mxu0
        %v1754 = vadd.f32 %v1443, %v1751
        %1755 = vmatprep.subr.mxu0 0.0
        %1756 = vmatpush1.msra.mxu0 %v1674
        %1757 = vmatprep.subr.mxu0 0.0
        %1758 = vmatpush1.msra.mxu0 %v1675
        %1759 = vmatprep.subr.mxu0 0.0
        %1760 = vmatpush1.msra.mxu0 %v1676
        %1761 = vmatprep.subr.mxu0 0.0
        %1762 = vmatpush1.msra.mxu0 %v1677
        %1763 = vmatprep.subr.mxu0 0.0
        %1764 = vmatpush1.msra.mxu0 %v1678
        %1765 = vmatprep.subr.mxu0 0.0
        %1766 = vmatpush1.msra.mxu0 %v1679
        %1767 = vmatprep.subr.mxu0 0.0
        %1768 = vmatpush1.msra.mxu0 %v1680
        %1769 = vmatprep.subr.mxu0 0.0
        %1770 = vmatpush1.msra.mxu0 %v1681
        %1771 = vmatprep.subr.mxu0 0.0
        %1772 = vmatpush1.msra.mxu0 %v1682
        %1773 = vmatprep.subr.mxu0 0.0
        %1774 = vmatpush1.msra.mxu0 %v1683
        %1775 = vmatprep.subr.mxu0 0.0
        %1776 = vmatpush1.msra.mxu0 0.0
        %1777 = vmatprep.subr.mxu0 0.0
        %1778 = vmatpush1.msra.mxu0 0.0
        %1779 = vmatprep.subr.mxu0 0.0
        %1780 = vmatpush1.msra.mxu0 0.0
        %1781 = vmatprep.subr.mxu0 0.0
        %1782 = vmatpush1.msra.mxu0 0.0
        %1783 = vmatprep.subr.mxu0 0.0
        %1784 = vmatpush1.msra.mxu0 0.0
        %1785 = vmatprep.subr.mxu0 0.0
        %1786 = vmatpush1.msra.mxu0 0.0
        %1787 = vmatprep.subr.mxu0 0.0
        %1788 = vmatpush1.msra.mxu0 0.0
        %1789 = vmatprep.subr.mxu0 0.0
        %1790 = vmatpush1.msra.mxu0 0.0
        %1791 = vmatprep.subr.mxu0 0.0
        %1792 = vmatpush1.msra.mxu0 0.0
        %1793 = vmatprep.subr.mxu0 0.0
        %1794 = vmatpush1.msra.mxu0 0.0
        %1795 = vmatprep.subr.mxu0 0.0
        %1796 = vmatpush1.msra.mxu0 0.0
        %1797 = vmatprep.subr.mxu0 0.0
        %1798 = vmatpush1.msra.mxu0 0.0
        %1799 = vmatprep.subr.mxu0 0.0
        %1800 = vmatpush1.msra.mxu0 0.0
        %1801 = vmatprep.subr.mxu0 0.0
        %1802 = vmatpush1.msra.mxu0 0.0
        %1803 = vmatprep.subr.mxu0 0.0
        %1804 = vmatpush1.msra.mxu0 0.0
        %1805 = vmatprep.subr.mxu0 0.0
        %1806 = vmatpush1.msra.mxu0 0.0
        %1807 = vmatprep.subr.mxu0 0.0
        %1808 = vmatpush1.msra.mxu0 0.0
        %1809 = vmatprep.subr.mxu0 0.0
        %1810 = vmatpush1.msra.mxu0 0.0
        %1811 = vmatprep.subr.mxu0 0.0
        %1812 = vmatpush1.msra.mxu0 0.0
        %1813 = vmatprep.subr.mxu0 0.0
        %1814 = vmatpush1.msra.mxu0 0.0
        %1815 = vmatprep.subr.mxu0 0.0
        %1816 = vmatpush1.msra.mxu0 0.0
        %1817 = vmatprep.subr.mxu0 0.0
        %1818 = vmatpush1.msra.mxu0 0.0
        %1819 = vmatprep.mubr.f32.mxu0 0.0
        %1820 = vmatmul.mubr.f32.gmra.mrb[0].mxu0 %v1518
        %v1821 = vpop.f32.mrb[0].mxu0
        %v1822 = vadd.f32 0.0, %v1821
        %v1823 = vpop.f32.mrb[0].mxu0
        %1824 = vdwg.mxu0
        %v1825 = vadd.f32 %v1514, %v1822
        %s1826 = scalar_lea.vmem [#allocation2], 5
        %v1827 = vld [vmem:[%s1826] ss:$2 sm:$0xff]
        %v1829 = vsel %vm417, %v1827, 0
        %1831 = vmatprep.subr.mxu0 0.0
        %1832 = vmatpush1.msra.mxu0 %v1663
        %1833 = vmatprep.subr.mxu0 0.0
        %1834 = vmatpush1.msra.mxu0 %v1664
        %1835 = vmatprep.subr.mxu0 0.0
        %1836 = vmatpush1.msra.mxu0 %v1665
        %1837 = vmatprep.subr.mxu0 0.0
        %1838 = vmatpush1.msra.mxu0 %v1666
        %1839 = vmatprep.subr.mxu0 0.0
        %1840 = vmatpush1.msra.mxu0 %v1667
        %1841 = vmatprep.subr.mxu0 0.0
        %1842 = vmatpush1.msra.mxu0 %v1668
        %1843 = vmatprep.subr.mxu0 0.0
        %1844 = vmatpush1.msra.mxu0 %v1669
        %1845 = vmatprep.subr.mxu0 0.0
        %1846 = vmatpush1.msra.mxu0 %v1670
        %1847 = vmatprep.subr.mxu0 0.0
        %1848 = vmatpush1.msra.mxu0 %v1671
        %1849 = vmatprep.subr.mxu0 0.0
        %1850 = vmatpush1.msra.mxu0 %v1672
        %1851 = vmatprep.subr.mxu0 0.0
        %1852 = vmatpush1.msra.mxu0 0.0
        %1853 = vmatprep.subr.mxu0 0.0
        %1854 = vmatpush1.msra.mxu0 0.0
        %1855 = vmatprep.subr.mxu0 0.0
        %1856 = vmatpush1.msra.mxu0 0.0
        %1857 = vmatprep.subr.mxu0 0.0
        %1858 = vmatpush1.msra.mxu0 0.0
        %1859 = vmatprep.subr.mxu0 0.0
        %1860 = vmatpush1.msra.mxu0 0.0
        %1861 = vmatprep.subr.mxu0 0.0
        %1862 = vmatpush1.msra.mxu0 0.0
        %1863 = vmatprep.subr.mxu0 0.0
        %1864 = vmatpush1.msra.mxu0 0.0
        %1865 = vmatprep.subr.mxu0 0.0
        %1866 = vmatpush1.msra.mxu0 0.0
        %1867 = vmatprep.subr.mxu0 0.0
        %1868 = vmatpush1.msra.mxu0 0.0
        %1869 = vmatprep.subr.mxu0 0.0
        %1870 = vmatpush1.msra.mxu0 0.0
        %1871 = vmatprep.subr.mxu0 0.0
        %1872 = vmatpush1.msra.mxu0 0.0
        %1873 = vmatprep.subr.mxu0 0.0
        %1874 = vmatpush1.msra.mxu0 0.0
        %1875 = vmatprep.subr.mxu0 0.0
        %1876 = vmatpush1.msra.mxu0 0.0
        %1877 = vmatprep.subr.mxu0 0.0
        %1878 = vmatpush1.msra.mxu0 0.0
        %1879 = vmatprep.subr.mxu0 0.0
        %1880 = vmatpush1.msra.mxu0 0.0
        %1881 = vmatprep.subr.mxu0 0.0
        %1882 = vmatpush1.msra.mxu0 0.0
        %1883 = vmatprep.subr.mxu0 0.0
        %1884 = vmatpush1.msra.mxu0 0.0
        %1885 = vmatprep.subr.mxu0 0.0
        %1886 = vmatpush1.msra.mxu0 0.0
        %1887 = vmatprep.subr.mxu0 0.0
        %1888 = vmatpush1.msra.mxu0 0.0
        %1889 = vmatprep.subr.mxu0 0.0
        %1890 = vmatpush1.msra.mxu0 0.0
        %1891 = vmatprep.subr.mxu0 0.0
        %1892 = vmatpush1.msra.mxu0 0.0
        %1893 = vmatprep.subr.mxu0 0.0
        %1894 = vmatpush1.msra.mxu0 0.0
        %1895 = vmatprep.mubr.f32.mxu0 0.0
        %1896 = vmatmul.mubr.f32.gmra.mrb[0].mxu0 %v1829
        %v1897 = vpop.f32.mrb[0].mxu0
        %v1898 = vadd.f32 0.0, %v1897
        %v1899 = vpop.f32.mrb[0].mxu0
        %1900 = vdwg.mxu0
        %v1901 = vadd.f32 %v1590, %v1898
        %1902 = vmatprep.subr.mxu0 0.0
        %1903 = vmatpush1.msra.mxu0 %v1674
        %1904 = vmatprep.subr.mxu0 0.0
        %1905 = vmatpush1.msra.mxu0 %v1675
        %1906 = vmatprep.subr.mxu0 0.0
        %1907 = vmatpush1.msra.mxu0 %v1676
        %1908 = vmatprep.subr.mxu0 0.0
        %1909 = vmatpush1.msra.mxu0 %v1677
        %1910 = vmatprep.subr.mxu0 0.0
        %1911 = vmatpush1.msra.mxu0 %v1678
        %1912 = vmatprep.subr.mxu0 0.0
        %1913 = vmatpush1.msra.mxu0 %v1679
        %1914 = vmatprep.subr.mxu0 0.0
        %1915 = vmatpush1.msra.mxu0 %v1680
        %1916 = vmatprep.subr.mxu0 0.0
        %1917 = vmatpush1.msra.mxu0 %v1681
        %1918 = vmatprep.subr.mxu0 0.0
        %1919 = vmatpush1.msra.mxu0 %v1682
        %1920 = vmatprep.subr.mxu0 0.0
        %1921 = vmatpush1.msra.mxu0 %v1683
        %1922 = vmatprep.subr.mxu0 0.0
        %1923 = vmatpush1.msra.mxu0 0.0
        %1924 = vmatprep.subr.mxu0 0.0
        %1925 = vmatpush1.msra.mxu0 0.0
        %1926 = vmatprep.subr.mxu0 0.0
        %1927 = vmatpush1.msra.mxu0 0.0
        %1928 = vmatprep.subr.mxu0 0.0
        %1929 = vmatpush1.msra.mxu0 0.0
        %1930 = vmatprep.subr.mxu0 0.0
        %1931 = vmatpush1.msra.mxu0 0.0
        %1932 = vmatprep.subr.mxu0 0.0
        %1933 = vmatpush1.msra.mxu0 0.0
        %1934 = vmatprep.subr.mxu0 0.0
        %1935 = vmatpush1.msra.mxu0 0.0
        %1936 = vmatprep.subr.mxu0 0.0
        %1937 = vmatpush1.msra.mxu0 0.0
        %1938 = vmatprep.subr.mxu0 0.0
        %1939 = vmatpush1.msra.mxu0 0.0
        %1940 = vmatprep.subr.mxu0 0.0
        %1941 = vmatpush1.msra.mxu0 0.0
        %1942 = vmatprep.subr.mxu0 0.0
        %1943 = vmatpush1.msra.mxu0 0.0
        %1944 = vmatprep.subr.mxu0 0.0
        %1945 = vmatpush1.msra.mxu0 0.0
        %1946 = vmatprep.subr.mxu0 0.0
        %1947 = vmatpush1.msra.mxu0 0.0
        %1948 = vmatprep.subr.mxu0 0.0
        %1949 = vmatpush1.msra.mxu0 0.0
        %1950 = vmatprep.subr.mxu0 0.0
        %1951 = vmatpush1.msra.mxu0 0.0
        %1952 = vmatprep.subr.mxu0 0.0
        %1953 = vmatpush1.msra.mxu0 0.0
        %1954 = vmatprep.subr.mxu0 0.0
        %1955 = vmatpush1.msra.mxu0 0.0
        %1956 = vmatprep.subr.mxu0 0.0
        %1957 = vmatpush1.msra.mxu0 0.0
        %1958 = vmatprep.subr.mxu0 0.0
        %1959 = vmatpush1.msra.mxu0 0.0
        %1960 = vmatprep.subr.mxu0 0.0
        %1961 = vmatpush1.msra.mxu0 0.0
        %1962 = vmatprep.subr.mxu0 0.0
        %1963 = vmatpush1.msra.mxu0 0.0
        %1964 = vmatprep.subr.mxu0 0.0
        %1965 = vmatpush1.msra.mxu0 0.0
        %1966 = vmatprep.mubr.f32.mxu0 0.0
        %1967 = vmatmul.mubr.f32.gmra.mrb[0].mxu0 %v1829
        %v1968 = vpop.f32.mrb[0].mxu0
        %v1969 = vadd.f32 0.0, %v1968
        %v1970 = vpop.f32.mrb[0].mxu0
        %1971 = vdwg.mxu0
        %v1972 = vadd.f32 %v1661, %v1969
        %v1973 = vmax.f32 %v1754, %v1825
        %v1974 = vmax.f32 %v1901, %v1972
        %v1975 = vmax.f32 %v1973, %v1974
        %v1977 = vlaneseq
        %v1978 = vshrl.u32 %v1977, 7
        %v1979 = vsub.s32 0, %v1978
        %v1980 = vrot.slane %v422, %v1979
        %v1982 = vadd.f32 %v1975, %v1980
        %v1983 = vmax.f32 %v1982, 0.0
        %vm1984 = vcmask 523264
        %1985 = vst.msk [vmem:[#allocation3] sm:$0xff] %vm1984, %v1983
        %v1986 = vld [vmem:[%s4] sm:$0x1]
        %v1987 = vld [vmem:[#allocation7] sm:$0xff]
        %v1988 = vld [vmem:[#allocation7 + $0x8] sm:$0xff]
        %v1989 = vld [vmem:[#allocation7 + $0x10] sm:$0xff]
        %v1990 = vld [vmem:[#allocation7 + $0x18] sm:$0xff]
        %v1991 = vld [vmem:[#allocation7 + $0x20] sm:$0xff]
        %v1992 = vld [vmem:[#allocation7 + $0x28] sm:$0xff]
        %v1993 = vld [vmem:[#allocation7 + $0x30] sm:$0xff]
        %v1994 = vld [vmem:[#allocation7 + $0x38] sm:$0xff]
        %s1995 = scalar_lea.vmem [#allocation7], 64
        %v1996 = vld [vmem:[%s1995] sm:$0xff]
        %v1997 = vld [vmem:[%s1995 + $0x8] sm:$0xff]
        %v1998 = vld [vmem:[%s1995 + $0x10] sm:$0xff]
        %v1999 = vld [vmem:[%s1995 + $0x18] sm:$0xff]
        %v2000 = vld [vmem:[%s1995 + $0x20] sm:$0xff]
        %v2001 = vld [vmem:[%s1995 + $0x28] sm:$0xff]
        %v2002 = vld [vmem:[%s1995 + $0x30] sm:$0xff]
        %v2003 = vld [vmem:[%s1995 + $0x38] sm:$0xff]
        %v2004 = vld [vmem:[#allocation3] ss:$2 sm:$0x3]
        %s2005 = scalar_lea.vmem [#allocation3], 1
        %v2006 = vld [vmem:[%s2005] ss:$2 sm:$0x3]
        %s2007 = scalar_lea.vmem [#allocation7], 128
        %v2008 = vld [vmem:[%s2007] sm:$0xff]
        %v2009 = vld [vmem:[%s2007 + $0x8] sm:$0xff]
        %v2010 = vld [vmem:[%s2007 + $0x10] sm:$0xff]
        %v2011 = vld [vmem:[%s2007 + $0x18] sm:$0xff]
        %v2012 = vld [vmem:[%s2007 + $0x20] sm:$0xff]
        %v2013 = vld [vmem:[%s2007 + $0x28] sm:$0xff]
        %v2014 = vld [vmem:[%s2007 + $0x30] sm:$0xff]
        %v2015 = vld [vmem:[%s2007 + $0x38] sm:$0xff]
        %s2016 = scalar_lea.vmem [#allocation7], 192
        %v2017 = vld [vmem:[%s2016] sm:$0xff]
        %v2018 = vld [vmem:[%s2016 + $0x8] sm:$0xff]
        %v2019 = vld [vmem:[%s2016 + $0x10] sm:$0xff]
        %v2020 = vld [vmem:[%s2016 + $0x18] sm:$0xff]
        %v2021 = vld [vmem:[%s2016 + $0x20] sm:$0xff]
        %v2022 = vld [vmem:[%s2016 + $0x28] sm:$0xff]
        %v2023 = vld [vmem:[%s2016 + $0x30] sm:$0xff]
        %v2024 = vld [vmem:[%s2016 + $0x38] sm:$0xff]
        %v2026 = vsel %vm1984, %v2006, 0
        %2028 = vmatprep.subr.mxu0 0.0
        %2029 = vmatpush1.msra.mxu0 %v2008
        %2030 = vmatprep.subr.mxu0 0.0
        %2031 = vmatpush1.msra.mxu0 %v2009
        %2032 = vmatprep.subr.mxu0 0.0
        %2033 = vmatpush1.msra.mxu0 %v2010
        %2034 = vmatprep.subr.mxu0 0.0
        %2035 = vmatpush1.msra.mxu0 %v2011
        %2036 = vmatprep.subr.mxu0 0.0
        %2037 = vmatpush1.msra.mxu0 %v2012
        %2038 = vmatprep.subr.mxu0 0.0
        %2039 = vmatpush1.msra.mxu0 %v2013
        %2040 = vmatprep.subr.mxu0 0.0
        %2041 = vmatpush1.msra.mxu0 %v2014
        %2042 = vmatprep.subr.mxu0 0.0
        %2043 = vmatpush1.msra.mxu0 %v2015
        %2044 = vmatprep.subr.mxu0 0.0
        %2045 = vmatpush1.msra.mxu0 0.0
        %2046 = vmatprep.subr.mxu0 0.0
        %2047 = vmatpush1.msra.mxu0 0.0
        %2048 = vmatprep.subr.mxu0 0.0
        %2049 = vmatpush1.msra.mxu0 0.0
        %2050 = vmatprep.subr.mxu0 0.0
        %2051 = vmatpush1.msra.mxu0 0.0
        %2052 = vmatprep.subr.mxu0 0.0
        %2053 = vmatpush1.msra.mxu0 0.0
        %2054 = vmatprep.subr.mxu0 0.0
        %2055 = vmatpush1.msra.mxu0 0.0
        %2056 = vmatprep.subr.mxu0 0.0
        %2057 = vmatpush1.msra.mxu0 0.0
        %2058 = vmatprep.subr.mxu0 0.0
        %2059 = vmatpush1.msra.mxu0 0.0
        %2060 = vmatprep.subr.mxu0 0.0
        %2061 = vmatpush1.msra.mxu0 0.0
        %2062 = vmatprep.subr.mxu0 0.0
        %2063 = vmatpush1.msra.mxu0 0.0
        %2064 = vmatprep.subr.mxu0 0.0
        %2065 = vmatpush1.msra.mxu0 0.0
        %2066 = vmatprep.subr.mxu0 0.0
        %2067 = vmatpush1.msra.mxu0 0.0
        %2068 = vmatprep.subr.mxu0 0.0
        %2069 = vmatpush1.msra.mxu0 0.0
        %2070 = vmatprep.subr.mxu0 0.0
        %2071 = vmatpush1.msra.mxu0 0.0
        %2072 = vmatprep.subr.mxu0 0.0
        %2073 = vmatpush1.msra.mxu0 0.0
        %2074 = vmatprep.subr.mxu0 0.0
        %2075 = vmatpush1.msra.mxu0 0.0
        %2076 = vmatprep.subr.mxu0 0.0
        %2077 = vmatpush1.msra.mxu0 0.0
        %2078 = vmatprep.subr.mxu0 0.0
        %2079 = vmatpush1.msra.mxu0 0.0
        %2080 = vmatprep.subr.mxu0 0.0
        %2081 = vmatpush1.msra.mxu0 0.0
        %2082 = vmatprep.subr.mxu0 0.0
        %2083 = vmatpush1.msra.mxu0 0.0
        %2084 = vmatprep.subr.mxu0 0.0
        %2085 = vmatpush1.msra.mxu0 0.0
        %2086 = vmatprep.subr.mxu0 0.0
        %2087 = vmatpush1.msra.mxu0 0.0
        %2088 = vmatprep.subr.mxu0 0.0
        %2089 = vmatpush1.msra.mxu0 0.0
        %2090 = vmatprep.subr.mxu0 0.0
        %2091 = vmatpush1.msra.mxu0 0.0
        %2092 = vmatprep.mubr.f32.mxu0 0.0
        %2093 = vmatmul.mubr.f32.gmra.mrb[0].mxu0 %v2026
        %v2094 = vpop.f32.mrb[0].mxu0
        %v2095 = vadd.f32 0.0, %v2094
        %v2096 = vpop.f32.mrb[0].mxu0
        %2097 = vdwg.mxu0
        %v2099 = vsel %vm1984, %v2004, 0
        %2101 = vmatprep.subr.mxu0 0.0
        %2102 = vmatpush1.msra.mxu0 %v1987
        %2103 = vmatprep.subr.mxu0 0.0
        %2104 = vmatpush1.msra.mxu0 %v1988
        %2105 = vmatprep.subr.mxu0 0.0
        %2106 = vmatpush1.msra.mxu0 %v1989
        %2107 = vmatprep.subr.mxu0 0.0
        %2108 = vmatpush1.msra.mxu0 %v1990
        %2109 = vmatprep.subr.mxu0 0.0
        %2110 = vmatpush1.msra.mxu0 %v1991
        %2111 = vmatprep.subr.mxu0 0.0
        %2112 = vmatpush1.msra.mxu0 %v1992
        %2113 = vmatprep.subr.mxu0 0.0
        %2114 = vmatpush1.msra.mxu0 %v1993
        %2115 = vmatprep.subr.mxu0 0.0
        %2116 = vmatpush1.msra.mxu0 %v1994
        %2117 = vmatprep.subr.mxu0 0.0
        %2118 = vmatpush1.msra.mxu0 0.0
        %2119 = vmatprep.subr.mxu0 0.0
        %2120 = vmatpush1.msra.mxu0 0.0
        %2121 = vmatprep.subr.mxu0 0.0
        %2122 = vmatpush1.msra.mxu0 0.0
        %2123 = vmatprep.subr.mxu0 0.0
        %2124 = vmatpush1.msra.mxu0 0.0
        %2125 = vmatprep.subr.mxu0 0.0
        %2126 = vmatpush1.msra.mxu0 0.0
        %2127 = vmatprep.subr.mxu0 0.0
        %2128 = vmatpush1.msra.mxu0 0.0
        %2129 = vmatprep.subr.mxu0 0.0
        %2130 = vmatpush1.msra.mxu0 0.0
        %2131 = vmatprep.subr.mxu0 0.0
        %2132 = vmatpush1.msra.mxu0 0.0
        %2133 = vmatprep.subr.mxu0 0.0
        %2134 = vmatpush1.msra.mxu0 0.0
        %2135 = vmatprep.subr.mxu0 0.0
        %2136 = vmatpush1.msra.mxu0 0.0
        %2137 = vmatprep.subr.mxu0 0.0
        %2138 = vmatpush1.msra.mxu0 0.0
        %2139 = vmatprep.subr.mxu0 0.0
        %2140 = vmatpush1.msra.mxu0 0.0
        %2141 = vmatprep.subr.mxu0 0.0
        %2142 = vmatpush1.msra.mxu0 0.0
        %2143 = vmatprep.subr.mxu0 0.0
        %2144 = vmatpush1.msra.mxu0 0.0
        %2145 = vmatprep.subr.mxu0 0.0
        %2146 = vmatpush1.msra.mxu0 0.0
        %2147 = vmatprep.subr.mxu0 0.0
        %2148 = vmatpush1.msra.mxu0 0.0
        %2149 = vmatprep.subr.mxu0 0.0
        %2150 = vmatpush1.msra.mxu0 0.0
        %2151 = vmatprep.subr.mxu0 0.0
        %2152 = vmatpush1.msra.mxu0 0.0
        %2153 = vmatprep.subr.mxu0 0.0
        %2154 = vmatpush1.msra.mxu0 0.0
        %2155 = vmatprep.subr.mxu0 0.0
        %2156 = vmatpush1.msra.mxu0 0.0
        %2157 = vmatprep.subr.mxu0 0.0
        %2158 = vmatpush1.msra.mxu0 0.0
        %2159 = vmatprep.subr.mxu0 0.0
        %2160 = vmatpush1.msra.mxu0 0.0
        %2161 = vmatprep.subr.mxu0 0.0
        %2162 = vmatpush1.msra.mxu0 0.0
        %2163 = vmatprep.subr.mxu0 0.0
        %2164 = vmatpush1.msra.mxu0 0.0
        %2165 = vmatprep.mubr.f32.mxu0 0.0
        %2166 = vmatmul.mubr.f32.gmra.mrb[0].mxu0 %v2099
        %v2167 = vpop.f32.mrb[0].mxu0
        %v2168 = vadd.f32 %v2095, %v2167
        %v2169 = vpop.f32.mrb[0].mxu0
        %2170 = vdwg.mxu0
        %2171 = vmatprep.subr.mxu0 0.0
        %2172 = vmatpush1.msra.mxu0 %v2017
        %2173 = vmatprep.subr.mxu0 0.0
        %2174 = vmatpush1.msra.mxu0 %v2018
        %2175 = vmatprep.subr.mxu0 0.0
        %2176 = vmatpush1.msra.mxu0 %v2019
        %2177 = vmatprep.subr.mxu0 0.0
        %2178 = vmatpush1.msra.mxu0 %v2020
        %2179 = vmatprep.subr.mxu0 0.0
        %2180 = vmatpush1.msra.mxu0 %v2021
        %2181 = vmatprep.subr.mxu0 0.0
        %2182 = vmatpush1.msra.mxu0 %v2022
        %2183 = vmatprep.subr.mxu0 0.0
        %2184 = vmatpush1.msra.mxu0 %v2023
        %2185 = vmatprep.subr.mxu0 0.0
        %2186 = vmatpush1.msra.mxu0 %v2024
        %2187 = vmatprep.subr.mxu0 0.0
        %2188 = vmatpush1.msra.mxu0 0.0
        %2189 = vmatprep.subr.mxu0 0.0
        %2190 = vmatpush1.msra.mxu0 0.0
        %2191 = vmatprep.subr.mxu0 0.0
        %2192 = vmatpush1.msra.mxu0 0.0
        %2193 = vmatprep.subr.mxu0 0.0
        %2194 = vmatpush1.msra.mxu0 0.0
        %2195 = vmatprep.subr.mxu0 0.0
        %2196 = vmatpush1.msra.mxu0 0.0
        %2197 = vmatprep.subr.mxu0 0.0
        %2198 = vmatpush1.msra.mxu0 0.0
        %2199 = vmatprep.subr.mxu0 0.0
        %2200 = vmatpush1.msra.mxu0 0.0
        %2201 = vmatprep.subr.mxu0 0.0
        %2202 = vmatpush1.msra.mxu0 0.0
        %2203 = vmatprep.subr.mxu0 0.0
        %2204 = vmatpush1.msra.mxu0 0.0
        %2205 = vmatprep.subr.mxu0 0.0
        %2206 = vmatpush1.msra.mxu0 0.0
        %2207 = vmatprep.subr.mxu0 0.0
        %2208 = vmatpush1.msra.mxu0 0.0
        %2209 = vmatprep.subr.mxu0 0.0
        %2210 = vmatpush1.msra.mxu0 0.0
        %2211 = vmatprep.subr.mxu0 0.0
        %2212 = vmatpush1.msra.mxu0 0.0
        %2213 = vmatprep.subr.mxu0 0.0
        %2214 = vmatpush1.msra.mxu0 0.0
        %2215 = vmatprep.subr.mxu0 0.0
        %2216 = vmatpush1.msra.mxu0 0.0
        %2217 = vmatprep.subr.mxu0 0.0
        %2218 = vmatpush1.msra.mxu0 0.0
        %2219 = vmatprep.subr.mxu0 0.0
        %2220 = vmatpush1.msra.mxu0 0.0
        %2221 = vmatprep.subr.mxu0 0.0
        %2222 = vmatpush1.msra.mxu0 0.0
        %2223 = vmatprep.subr.mxu0 0.0
        %2224 = vmatpush1.msra.mxu0 0.0
        %2225 = vmatprep.subr.mxu0 0.0
        %2226 = vmatpush1.msra.mxu0 0.0
        %2227 = vmatprep.subr.mxu0 0.0
        %2228 = vmatpush1.msra.mxu0 0.0
        %2229 = vmatprep.subr.mxu0 0.0
        %2230 = vmatpush1.msra.mxu0 0.0
        %2231 = vmatprep.subr.mxu0 0.0
        %2232 = vmatpush1.msra.mxu0 0.0
        %2233 = vmatprep.subr.mxu0 0.0
        %2234 = vmatpush1.msra.mxu0 0.0
        %2235 = vmatprep.mubr.f32.mxu0 0.0
        %2236 = vmatmul.mubr.f32.gmra.mrb[0].mxu0 %v2026
        %v2237 = vpop.f32.mrb[0].mxu0
        %v2238 = vadd.f32 0.0, %v2237
        %v2239 = vpop.f32.mrb[0].mxu0
        %2240 = vdwg.mxu0
        %2241 = vmatprep.subr.mxu0 0.0
        %2242 = vmatpush1.msra.mxu0 %v1996
        %2243 = vmatprep.subr.mxu0 0.0
        %2244 = vmatpush1.msra.mxu0 %v1997
        %2245 = vmatprep.subr.mxu0 0.0
        %2246 = vmatpush1.msra.mxu0 %v1998
        %2247 = vmatprep.subr.mxu0 0.0
        %2248 = vmatpush1.msra.mxu0 %v1999
        %2249 = vmatprep.subr.mxu0 0.0
        %2250 = vmatpush1.msra.mxu0 %v2000
        %2251 = vmatprep.subr.mxu0 0.0
        %2252 = vmatpush1.msra.mxu0 %v2001
        %2253 = vmatprep.subr.mxu0 0.0
        %2254 = vmatpush1.msra.mxu0 %v2002
        %2255 = vmatprep.subr.mxu0 0.0
        %2256 = vmatpush1.msra.mxu0 %v2003
        %2257 = vmatprep.subr.mxu0 0.0
        %2258 = vmatpush1.msra.mxu0 0.0
        %2259 = vmatprep.subr.mxu0 0.0
        %2260 = vmatpush1.msra.mxu0 0.0
        %2261 = vmatprep.subr.mxu0 0.0
        %2262 = vmatpush1.msra.mxu0 0.0
        %2263 = vmatprep.subr.mxu0 0.0
        %2264 = vmatpush1.msra.mxu0 0.0
        %2265 = vmatprep.subr.mxu0 0.0
        %2266 = vmatpush1.msra.mxu0 0.0
        %2267 = vmatprep.subr.mxu0 0.0
        %2268 = vmatpush1.msra.mxu0 0.0
        %2269 = vmatprep.subr.mxu0 0.0
        %2270 = vmatpush1.msra.mxu0 0.0
        %2271 = vmatprep.subr.mxu0 0.0
        %2272 = vmatpush1.msra.mxu0 0.0
        %2273 = vmatprep.subr.mxu0 0.0
        %2274 = vmatpush1.msra.mxu0 0.0
        %2275 = vmatprep.subr.mxu0 0.0
        %2276 = vmatpush1.msra.mxu0 0.0
        %2277 = vmatprep.subr.mxu0 0.0
        %2278 = vmatpush1.msra.mxu0 0.0
        %2279 = vmatprep.subr.mxu0 0.0
        %2280 = vmatpush1.msra.mxu0 0.0
        %2281 = vmatprep.subr.mxu0 0.0
        %2282 = vmatpush1.msra.mxu0 0.0
        %2283 = vmatprep.subr.mxu0 0.0
        %2284 = vmatpush1.msra.mxu0 0.0
        %2285 = vmatprep.subr.mxu0 0.0
        %2286 = vmatpush1.msra.mxu0 0.0
        %2287 = vmatprep.subr.mxu0 0.0
        %2288 = vmatpush1.msra.mxu0 0.0
        %2289 = vmatprep.subr.mxu0 0.0
        %2290 = vmatpush1.msra.mxu0 0.0
        %2291 = vmatprep.subr.mxu0 0.0
        %2292 = vmatpush1.msra.mxu0 0.0
        %2293 = vmatprep.subr.mxu0 0.0
        %2294 = vmatpush1.msra.mxu0 0.0
        %2295 = vmatprep.subr.mxu0 0.0
        %2296 = vmatpush1.msra.mxu0 0.0
        %2297 = vmatprep.subr.mxu0 0.0
        %2298 = vmatpush1.msra.mxu0 0.0
        %2299 = vmatprep.subr.mxu0 0.0
        %2300 = vmatpush1.msra.mxu0 0.0
        %2301 = vmatprep.subr.mxu0 0.0
        %2302 = vmatpush1.msra.mxu0 0.0
        %2303 = vmatprep.subr.mxu0 0.0
        %2304 = vmatpush1.msra.mxu0 0.0
        %2305 = vmatprep.mubr.f32.mxu0 0.0
        %2306 = vmatmul.mubr.f32.gmra.mrb[0].mxu0 %v2099
        %v2307 = vpop.f32.mrb[0].mxu0
        %v2308 = vadd.f32 %v2238, %v2307
        %v2309 = vpop.f32.mrb[0].mxu0
        %2310 = vdwg.mxu0
        %s2311 = scalar_lea.vmem [#allocation3], 2
        %v2312 = vld [vmem:[%s2311] ss:$2 sm:$0x3]
        %v2314 = vsel %vm1984, %v2312, 0
        %2316 = vmatprep.subr.mxu0 0.0
        %2317 = vmatpush1.msra.mxu0 %v2008
        %2318 = vmatprep.subr.mxu0 0.0
        %2319 = vmatpush1.msra.mxu0 %v2009
        %2320 = vmatprep.subr.mxu0 0.0
        %2321 = vmatpush1.msra.mxu0 %v2010
        %2322 = vmatprep.subr.mxu0 0.0
        %2323 = vmatpush1.msra.mxu0 %v2011
        %2324 = vmatprep.subr.mxu0 0.0
        %2325 = vmatpush1.msra.mxu0 %v2012
        %2326 = vmatprep.subr.mxu0 0.0
        %2327 = vmatpush1.msra.mxu0 %v2013
        %2328 = vmatprep.subr.mxu0 0.0
        %2329 = vmatpush1.msra.mxu0 %v2014
        %2330 = vmatprep.subr.mxu0 0.0
        %2331 = vmatpush1.msra.mxu0 %v2015
        %2332 = vmatprep.subr.mxu0 0.0
        %2333 = vmatpush1.msra.mxu0 0.0
        %2334 = vmatprep.subr.mxu0 0.0
        %2335 = vmatpush1.msra.mxu0 0.0
        %2336 = vmatprep.subr.mxu0 0.0
        %2337 = vmatpush1.msra.mxu0 0.0
        %2338 = vmatprep.subr.mxu0 0.0
        %2339 = vmatpush1.msra.mxu0 0.0
        %2340 = vmatprep.subr.mxu0 0.0
        %2341 = vmatpush1.msra.mxu0 0.0
        %2342 = vmatprep.subr.mxu0 0.0
        %2343 = vmatpush1.msra.mxu0 0.0
        %2344 = vmatprep.subr.mxu0 0.0
        %2345 = vmatpush1.msra.mxu0 0.0
        %2346 = vmatprep.subr.mxu0 0.0
        %2347 = vmatpush1.msra.mxu0 0.0
        %2348 = vmatprep.subr.mxu0 0.0
        %2349 = vmatpush1.msra.mxu0 0.0
        %2350 = vmatprep.subr.mxu0 0.0
        %2351 = vmatpush1.msra.mxu0 0.0
        %2352 = vmatprep.subr.mxu0 0.0
        %2353 = vmatpush1.msra.mxu0 0.0
        %2354 = vmatprep.subr.mxu0 0.0
        %2355 = vmatpush1.msra.mxu0 0.0
        %2356 = vmatprep.subr.mxu0 0.0
        %2357 = vmatpush1.msra.mxu0 0.0
        %2358 = vmatprep.subr.mxu0 0.0
        %2359 = vmatpush1.msra.mxu0 0.0
        %2360 = vmatprep.subr.mxu0 0.0
        %2361 = vmatpush1.msra.mxu0 0.0
        %2362 = vmatprep.subr.mxu0 0.0
        %2363 = vmatpush1.msra.mxu0 0.0
        %2364 = vmatprep.subr.mxu0 0.0
        %2365 = vmatpush1.msra.mxu0 0.0
        %2366 = vmatprep.subr.mxu0 0.0
        %2367 = vmatpush1.msra.mxu0 0.0
        %2368 = vmatprep.subr.mxu0 0.0
        %2369 = vmatpush1.msra.mxu0 0.0
        %2370 = vmatprep.subr.mxu0 0.0
        %2371 = vmatpush1.msra.mxu0 0.0
        %2372 = vmatprep.subr.mxu0 0.0
        %2373 = vmatpush1.msra.mxu0 0.0
        %2374 = vmatprep.subr.mxu0 0.0
        %2375 = vmatpush1.msra.mxu0 0.0
        %2376 = vmatprep.subr.mxu0 0.0
        %2377 = vmatpush1.msra.mxu0 0.0
        %2378 = vmatprep.subr.mxu0 0.0
        %2379 = vmatpush1.msra.mxu0 0.0
        %2380 = vmatprep.mubr.f32.mxu0 0.0
        %2381 = vmatmul.mubr.f32.gmra.mrb[0].mxu0 %v2314
        %v2382 = vpop.f32.mrb[0].mxu0
        %v2383 = vadd.f32 0.0, %v2382
        %v2384 = vpop.f32.mrb[0].mxu0
        %2385 = vdwg.mxu0
        %2386 = vmatprep.subr.mxu0 0.0
        %2387 = vmatpush1.msra.mxu0 %v1987
        %2388 = vmatprep.subr.mxu0 0.0
        %2389 = vmatpush1.msra.mxu0 %v1988
        %2390 = vmatprep.subr.mxu0 0.0
        %2391 = vmatpush1.msra.mxu0 %v1989
        %2392 = vmatprep.subr.mxu0 0.0
        %2393 = vmatpush1.msra.mxu0 %v1990
        %2394 = vmatprep.subr.mxu0 0.0
        %2395 = vmatpush1.msra.mxu0 %v1991
        %2396 = vmatprep.subr.mxu0 0.0
        %2397 = vmatpush1.msra.mxu0 %v1992
        %2398 = vmatprep.subr.mxu0 0.0
        %2399 = vmatpush1.msra.mxu0 %v1993
        %2400 = vmatprep.subr.mxu0 0.0
        %2401 = vmatpush1.msra.mxu0 %v1994
        %2402 = vmatprep.subr.mxu0 0.0
        %2403 = vmatpush1.msra.mxu0 0.0
        %2404 = vmatprep.subr.mxu0 0.0
        %2405 = vmatpush1.msra.mxu0 0.0
        %2406 = vmatprep.subr.mxu0 0.0
        %2407 = vmatpush1.msra.mxu0 0.0
        %2408 = vmatprep.subr.mxu0 0.0
        %2409 = vmatpush1.msra.mxu0 0.0
        %2410 = vmatprep.subr.mxu0 0.0
        %2411 = vmatpush1.msra.mxu0 0.0
        %2412 = vmatprep.subr.mxu0 0.0
        %2413 = vmatpush1.msra.mxu0 0.0
        %2414 = vmatprep.subr.mxu0 0.0
        %2415 = vmatpush1.msra.mxu0 0.0
        %2416 = vmatprep.subr.mxu0 0.0
        %2417 = vmatpush1.msra.mxu0 0.0
        %2418 = vmatprep.subr.mxu0 0.0
        %2419 = vmatpush1.msra.mxu0 0.0
        %2420 = vmatprep.subr.mxu0 0.0
        %2421 = vmatpush1.msra.mxu0 0.0
        %2422 = vmatprep.subr.mxu0 0.0
        %2423 = vmatpush1.msra.mxu0 0.0
        %2424 = vmatprep.subr.mxu0 0.0
        %2425 = vmatpush1.msra.mxu0 0.0
        %2426 = vmatprep.subr.mxu0 0.0
        %2427 = vmatpush1.msra.mxu0 0.0
        %2428 = vmatprep.subr.mxu0 0.0
        %2429 = vmatpush1.msra.mxu0 0.0
        %2430 = vmatprep.subr.mxu0 0.0
        %2431 = vmatpush1.msra.mxu0 0.0
        %2432 = vmatprep.subr.mxu0 0.0
        %2433 = vmatpush1.msra.mxu0 0.0
        %2434 = vmatprep.subr.mxu0 0.0
        %2435 = vmatpush1.msra.mxu0 0.0
        %2436 = vmatprep.subr.mxu0 0.0
        %2437 = vmatpush1.msra.mxu0 0.0
        %2438 = vmatprep.subr.mxu0 0.0
        %2439 = vmatpush1.msra.mxu0 0.0
        %2440 = vmatprep.subr.mxu0 0.0
        %2441 = vmatpush1.msra.mxu0 0.0
        %2442 = vmatprep.subr.mxu0 0.0
        %2443 = vmatpush1.msra.mxu0 0.0
        %2444 = vmatprep.subr.mxu0 0.0
        %2445 = vmatpush1.msra.mxu0 0.0
        %2446 = vmatprep.subr.mxu0 0.0
        %2447 = vmatpush1.msra.mxu0 0.0
        %2448 = vmatprep.subr.mxu0 0.0
        %2449 = vmatpush1.msra.mxu0 0.0
        %2450 = vmatprep.mubr.f32.mxu0 0.0
        %2451 = vmatmul.mubr.f32.gmra.mrb[0].mxu0 %v2026
        %v2452 = vpop.f32.mrb[0].mxu0
        %v2453 = vadd.f32 %v2383, %v2452
        %v2454 = vpop.f32.mrb[0].mxu0
        %2455 = vdwg.mxu0
        %2456 = vmatprep.subr.mxu0 0.0
        %2457 = vmatpush1.msra.mxu0 %v2017
        %2458 = vmatprep.subr.mxu0 0.0
        %2459 = vmatpush1.msra.mxu0 %v2018
        %2460 = vmatprep.subr.mxu0 0.0
        %2461 = vmatpush1.msra.mxu0 %v2019
        %2462 = vmatprep.subr.mxu0 0.0
        %2463 = vmatpush1.msra.mxu0 %v2020
        %2464 = vmatprep.subr.mxu0 0.0
        %2465 = vmatpush1.msra.mxu0 %v2021
        %2466 = vmatprep.subr.mxu0 0.0
        %2467 = vmatpush1.msra.mxu0 %v2022
        %2468 = vmatprep.subr.mxu0 0.0
        %2469 = vmatpush1.msra.mxu0 %v2023
        %2470 = vmatprep.subr.mxu0 0.0
        %2471 = vmatpush1.msra.mxu0 %v2024
        %2472 = vmatprep.subr.mxu0 0.0
        %2473 = vmatpush1.msra.mxu0 0.0
        %2474 = vmatprep.subr.mxu0 0.0
        %2475 = vmatpush1.msra.mxu0 0.0
        %2476 = vmatprep.subr.mxu0 0.0
        %2477 = vmatpush1.msra.mxu0 0.0
        %2478 = vmatprep.subr.mxu0 0.0
        %2479 = vmatpush1.msra.mxu0 0.0
        %2480 = vmatprep.subr.mxu0 0.0
        %2481 = vmatpush1.msra.mxu0 0.0
        %2482 = vmatprep.subr.mxu0 0.0
        %2483 = vmatpush1.msra.mxu0 0.0
        %2484 = vmatprep.subr.mxu0 0.0
        %2485 = vmatpush1.msra.mxu0 0.0
        %2486 = vmatprep.subr.mxu0 0.0
        %2487 = vmatpush1.msra.mxu0 0.0
        %2488 = vmatprep.subr.mxu0 0.0
        %2489 = vmatpush1.msra.mxu0 0.0
        %2490 = vmatprep.subr.mxu0 0.0
        %2491 = vmatpush1.msra.mxu0 0.0
        %2492 = vmatprep.subr.mxu0 0.0
        %2493 = vmatpush1.msra.mxu0 0.0
        %2494 = vmatprep.subr.mxu0 0.0
        %2495 = vmatpush1.msra.mxu0 0.0
        %2496 = vmatprep.subr.mxu0 0.0
        %2497 = vmatpush1.msra.mxu0 0.0
        %2498 = vmatprep.subr.mxu0 0.0
        %2499 = vmatpush1.msra.mxu0 0.0
        %2500 = vmatprep.subr.mxu0 0.0
        %2501 = vmatpush1.msra.mxu0 0.0
        %2502 = vmatprep.subr.mxu0 0.0
        %2503 = vmatpush1.msra.mxu0 0.0
        %2504 = vmatprep.subr.mxu0 0.0
        %2505 = vmatpush1.msra.mxu0 0.0
        %2506 = vmatprep.subr.mxu0 0.0
        %2507 = vmatpush1.msra.mxu0 0.0
        %2508 = vmatprep.subr.mxu0 0.0
        %2509 = vmatpush1.msra.mxu0 0.0
        %2510 = vmatprep.subr.mxu0 0.0
        %2511 = vmatpush1.msra.mxu0 0.0
        %2512 = vmatprep.subr.mxu0 0.0
        %2513 = vmatpush1.msra.mxu0 0.0
        %2514 = vmatprep.subr.mxu0 0.0
        %2515 = vmatpush1.msra.mxu0 0.0
        %2516 = vmatprep.subr.mxu0 0.0
        %2517 = vmatpush1.msra.mxu0 0.0
        %2518 = vmatprep.subr.mxu0 0.0
        %2519 = vmatpush1.msra.mxu0 0.0
        %2520 = vmatprep.mubr.f32.mxu0 0.0
        %2521 = vmatmul.mubr.f32.gmra.mrb[0].mxu0 %v2314
        %v2522 = vpop.f32.mrb[0].mxu0
        %v2523 = vadd.f32 0.0, %v2522
        %v2524 = vpop.f32.mrb[0].mxu0
        %2525 = vdwg.mxu0
        %2526 = vmatprep.subr.mxu0 0.0
        %2527 = vmatpush1.msra.mxu0 %v1996
        %2528 = vmatprep.subr.mxu0 0.0
        %2529 = vmatpush1.msra.mxu0 %v1997
        %2530 = vmatprep.subr.mxu0 0.0
        %2531 = vmatpush1.msra.mxu0 %v1998
        %2532 = vmatprep.subr.mxu0 0.0
        %2533 = vmatpush1.msra.mxu0 %v1999
        %2534 = vmatprep.subr.mxu0 0.0
        %2535 = vmatpush1.msra.mxu0 %v2000
        %2536 = vmatprep.subr.mxu0 0.0
        %2537 = vmatpush1.msra.mxu0 %v2001
        %2538 = vmatprep.subr.mxu0 0.0
        %2539 = vmatpush1.msra.mxu0 %v2002
        %2540 = vmatprep.subr.mxu0 0.0
        %2541 = vmatpush1.msra.mxu0 %v2003
        %2542 = vmatprep.subr.mxu0 0.0
        %2543 = vmatpush1.msra.mxu0 0.0
        %2544 = vmatprep.subr.mxu0 0.0
        %2545 = vmatpush1.msra.mxu0 0.0
        %2546 = vmatprep.subr.mxu0 0.0
        %2547 = vmatpush1.msra.mxu0 0.0
        %2548 = vmatprep.subr.mxu0 0.0
        %2549 = vmatpush1.msra.mxu0 0.0
        %2550 = vmatprep.subr.mxu0 0.0
        %2551 = vmatpush1.msra.mxu0 0.0
        %2552 = vmatprep.subr.mxu0 0.0
        %2553 = vmatpush1.msra.mxu0 0.0
        %2554 = vmatprep.subr.mxu0 0.0
        %2555 = vmatpush1.msra.mxu0 0.0
        %2556 = vmatprep.subr.mxu0 0.0
        %2557 = vmatpush1.msra.mxu0 0.0
        %2558 = vmatprep.subr.mxu0 0.0
        %2559 = vmatpush1.msra.mxu0 0.0
        %2560 = vmatprep.subr.mxu0 0.0
        %2561 = vmatpush1.msra.mxu0 0.0
        %2562 = vmatprep.subr.mxu0 0.0
        %2563 = vmatpush1.msra.mxu0 0.0
        %2564 = vmatprep.subr.mxu0 0.0
        %2565 = vmatpush1.msra.mxu0 0.0
        %2566 = vmatprep.subr.mxu0 0.0
        %2567 = vmatpush1.msra.mxu0 0.0
        %2568 = vmatprep.subr.mxu0 0.0
        %2569 = vmatpush1.msra.mxu0 0.0
        %2570 = vmatprep.subr.mxu0 0.0
        %2571 = vmatpush1.msra.mxu0 0.0
        %2572 = vmatprep.subr.mxu0 0.0
        %2573 = vmatpush1.msra.mxu0 0.0
        %2574 = vmatprep.subr.mxu0 0.0
        %2575 = vmatpush1.msra.mxu0 0.0
        %2576 = vmatprep.subr.mxu0 0.0
        %2577 = vmatpush1.msra.mxu0 0.0
        %2578 = vmatprep.subr.mxu0 0.0
        %2579 = vmatpush1.msra.mxu0 0.0
        %2580 = vmatprep.subr.mxu0 0.0
        %2581 = vmatpush1.msra.mxu0 0.0
        %2582 = vmatprep.subr.mxu0 0.0
        %2583 = vmatpush1.msra.mxu0 0.0
        %2584 = vmatprep.subr.mxu0 0.0
        %2585 = vmatpush1.msra.mxu0 0.0
        %2586 = vmatprep.subr.mxu0 0.0
        %2587 = vmatpush1.msra.mxu0 0.0
        %2588 = vmatprep.subr.mxu0 0.0
        %2589 = vmatpush1.msra.mxu0 0.0
        %2590 = vmatprep.mubr.f32.mxu0 0.0
        %2591 = vmatmul.mubr.f32.gmra.mrb[0].mxu0 %v2026
        %v2592 = vpop.f32.mrb[0].mxu0
        %v2593 = vadd.f32 %v2523, %v2592
        %v2594 = vpop.f32.mrb[0].mxu0
        %2595 = vdwg.mxu0
        %s2596 = scalar_lea.vmem [#allocation7], 256
        %v2597 = vld [vmem:[%s2596] sm:$0xff]
        %v2598 = vld [vmem:[%s2596 + $0x8] sm:$0xff]
        %v2599 = vld [vmem:[%s2596 + $0x10] sm:$0xff]
        %v2600 = vld [vmem:[%s2596 + $0x18] sm:$0xff]
        %v2601 = vld [vmem:[%s2596 + $0x20] sm:$0xff]
        %v2602 = vld [vmem:[%s2596 + $0x28] sm:$0xff]
        %v2603 = vld [vmem:[%s2596 + $0x30] sm:$0xff]
        %v2604 = vld [vmem:[%s2596 + $0x38] sm:$0xff]
        %s2605 = scalar_lea.vmem [#allocation7], 320
        %v2606 = vld [vmem:[%s2605] sm:$0xff]
        %v2607 = vld [vmem:[%s2605 + $0x8] sm:$0xff]
        %v2608 = vld [vmem:[%s2605 + $0x10] sm:$0xff]
        %v2609 = vld [vmem:[%s2605 + $0x18] sm:$0xff]
        %v2610 = vld [vmem:[%s2605 + $0x20] sm:$0xff]
        %v2611 = vld [vmem:[%s2605 + $0x28] sm:$0xff]
        %v2612 = vld [vmem:[%s2605 + $0x30] sm:$0xff]
        %v2613 = vld [vmem:[%s2605 + $0x38] sm:$0xff]
        %2614 = vmatprep.subr.mxu0 0.0
        %2615 = vmatpush1.msra.mxu0 %v2597
        %2616 = vmatprep.subr.mxu0 0.0
        %2617 = vmatpush1.msra.mxu0 %v2598
        %2618 = vmatprep.subr.mxu0 0.0
        %2619 = vmatpush1.msra.mxu0 %v2599
        %2620 = vmatprep.subr.mxu0 0.0
        %2621 = vmatpush1.msra.mxu0 %v2600
        %2622 = vmatprep.subr.mxu0 0.0
        %2623 = vmatpush1.msra.mxu0 %v2601
        %2624 = vmatprep.subr.mxu0 0.0
        %2625 = vmatpush1.msra.mxu0 %v2602
        %2626 = vmatprep.subr.mxu0 0.0
        %2627 = vmatpush1.msra.mxu0 %v2603
        %2628 = vmatprep.subr.mxu0 0.0
        %2629 = vmatpush1.msra.mxu0 %v2604
        %2630 = vmatprep.subr.mxu0 0.0
        %2631 = vmatpush1.msra.mxu0 0.0
        %2632 = vmatprep.subr.mxu0 0.0
        %2633 = vmatpush1.msra.mxu0 0.0
        %2634 = vmatprep.subr.mxu0 0.0
        %2635 = vmatpush1.msra.mxu0 0.0
        %2636 = vmatprep.subr.mxu0 0.0
        %2637 = vmatpush1.msra.mxu0 0.0
        %2638 = vmatprep.subr.mxu0 0.0
        %2639 = vmatpush1.msra.mxu0 0.0
        %2640 = vmatprep.subr.mxu0 0.0
        %2641 = vmatpush1.msra.mxu0 0.0
        %2642 = vmatprep.subr.mxu0 0.0
        %2643 = vmatpush1.msra.mxu0 0.0
        %2644 = vmatprep.subr.mxu0 0.0
        %2645 = vmatpush1.msra.mxu0 0.0
        %2646 = vmatprep.subr.mxu0 0.0
        %2647 = vmatpush1.msra.mxu0 0.0
        %2648 = vmatprep.subr.mxu0 0.0
        %2649 = vmatpush1.msra.mxu0 0.0
        %2650 = vmatprep.subr.mxu0 0.0
        %2651 = vmatpush1.msra.mxu0 0.0
        %2652 = vmatprep.subr.mxu0 0.0
        %2653 = vmatpush1.msra.mxu0 0.0
        %2654 = vmatprep.subr.mxu0 0.0
        %2655 = vmatpush1.msra.mxu0 0.0
        %2656 = vmatprep.subr.mxu0 0.0
        %2657 = vmatpush1.msra.mxu0 0.0
        %2658 = vmatprep.subr.mxu0 0.0
        %2659 = vmatpush1.msra.mxu0 0.0
        %2660 = vmatprep.subr.mxu0 0.0
        %2661 = vmatpush1.msra.mxu0 0.0
        %2662 = vmatprep.subr.mxu0 0.0
        %2663 = vmatpush1.msra.mxu0 0.0
        %2664 = vmatprep.subr.mxu0 0.0
        %2665 = vmatpush1.msra.mxu0 0.0
        %2666 = vmatprep.subr.mxu0 0.0
        %2667 = vmatpush1.msra.mxu0 0.0
        %2668 = vmatprep.subr.mxu0 0.0
        %2669 = vmatpush1.msra.mxu0 0.0
        %2670 = vmatprep.subr.mxu0 0.0
        %2671 = vmatpush1.msra.mxu0 0.0
        %2672 = vmatprep.subr.mxu0 0.0
        %2673 = vmatpush1.msra.mxu0 0.0
        %2674 = vmatprep.subr.mxu0 0.0
        %2675 = vmatpush1.msra.mxu0 0.0
        %2676 = vmatprep.subr.mxu0 0.0
        %2677 = vmatpush1.msra.mxu0 0.0
        %2678 = vmatprep.mubr.f32.mxu0 0.0
        %2679 = vmatmul.mubr.f32.gmra.mrb[0].mxu0 %v2314
        %v2680 = vpop.f32.mrb[0].mxu0
        %v2681 = vadd.f32 0.0, %v2680
        %v2682 = vpop.f32.mrb[0].mxu0
        %2683 = vdwg.mxu0
        %v2684 = vadd.f32 %v2168, %v2681
        %2685 = vmatprep.subr.mxu0 0.0
        %2686 = vmatpush1.msra.mxu0 %v2606
        %2687 = vmatprep.subr.mxu0 0.0
        %2688 = vmatpush1.msra.mxu0 %v2607
        %2689 = vmatprep.subr.mxu0 0.0
        %2690 = vmatpush1.msra.mxu0 %v2608
        %2691 = vmatprep.subr.mxu0 0.0
        %2692 = vmatpush1.msra.mxu0 %v2609
        %2693 = vmatprep.subr.mxu0 0.0
        %2694 = vmatpush1.msra.mxu0 %v2610
        %2695 = vmatprep.subr.mxu0 0.0
        %2696 = vmatpush1.msra.mxu0 %v2611
        %2697 = vmatprep.subr.mxu0 0.0
        %2698 = vmatpush1.msra.mxu0 %v2612
        %2699 = vmatprep.subr.mxu0 0.0
        %2700 = vmatpush1.msra.mxu0 %v2613
        %2701 = vmatprep.subr.mxu0 0.0
        %2702 = vmatpush1.msra.mxu0 0.0
        %2703 = vmatprep.subr.mxu0 0.0
        %2704 = vmatpush1.msra.mxu0 0.0
        %2705 = vmatprep.subr.mxu0 0.0
        %2706 = vmatpush1.msra.mxu0 0.0
        %2707 = vmatprep.subr.mxu0 0.0
        %2708 = vmatpush1.msra.mxu0 0.0
        %2709 = vmatprep.subr.mxu0 0.0
        %2710 = vmatpush1.msra.mxu0 0.0
        %2711 = vmatprep.subr.mxu0 0.0
        %2712 = vmatpush1.msra.mxu0 0.0
        %2713 = vmatprep.subr.mxu0 0.0
        %2714 = vmatpush1.msra.mxu0 0.0
        %2715 = vmatprep.subr.mxu0 0.0
        %2716 = vmatpush1.msra.mxu0 0.0
        %2717 = vmatprep.subr.mxu0 0.0
        %2718 = vmatpush1.msra.mxu0 0.0
        %2719 = vmatprep.subr.mxu0 0.0
        %2720 = vmatpush1.msra.mxu0 0.0
        %2721 = vmatprep.subr.mxu0 0.0
        %2722 = vmatpush1.msra.mxu0 0.0
        %2723 = vmatprep.subr.mxu0 0.0
        %2724 = vmatpush1.msra.mxu0 0.0
        %2725 = vmatprep.subr.mxu0 0.0
        %2726 = vmatpush1.msra.mxu0 0.0
        %2727 = vmatprep.subr.mxu0 0.0
        %2728 = vmatpush1.msra.mxu0 0.0
        %2729 = vmatprep.subr.mxu0 0.0
        %2730 = vmatpush1.msra.mxu0 0.0
        %2731 = vmatprep.subr.mxu0 0.0
        %2732 = vmatpush1.msra.mxu0 0.0
        %2733 = vmatprep.subr.mxu0 0.0
        %2734 = vmatpush1.msra.mxu0 0.0
        %2735 = vmatprep.subr.mxu0 0.0
        %2736 = vmatpush1.msra.mxu0 0.0
        %2737 = vmatprep.subr.mxu0 0.0
        %2738 = vmatpush1.msra.mxu0 0.0
        %2739 = vmatprep.subr.mxu0 0.0
        %2740 = vmatpush1.msra.mxu0 0.0
        %2741 = vmatprep.subr.mxu0 0.0
        %2742 = vmatpush1.msra.mxu0 0.0
        %2743 = vmatprep.subr.mxu0 0.0
        %2744 = vmatpush1.msra.mxu0 0.0
        %2745 = vmatprep.subr.mxu0 0.0
        %2746 = vmatpush1.msra.mxu0 0.0
        %2747 = vmatprep.subr.mxu0 0.0
        %2748 = vmatpush1.msra.mxu0 0.0
        %2749 = vmatprep.mubr.f32.mxu0 0.0
        %2750 = vmatmul.mubr.f32.gmra.mrb[0].mxu0 %v2314
        %v2751 = vpop.f32.mrb[0].mxu0
        %v2752 = vadd.f32 0.0, %v2751
        %v2753 = vpop.f32.mrb[0].mxu0
        %2754 = vdwg.mxu0
        %v2755 = vadd.f32 %v2308, %v2752
        %s2756 = scalar_lea.vmem [#allocation3], 3
        %v2757 = vld [vmem:[%s2756] ss:$2 sm:$0x3]
        %v2759 = vsel %vm1984, %v2757, 0
        %2761 = vmatprep.subr.mxu0 0.0
        %2762 = vmatpush1.msra.mxu0 %v2597
        %2763 = vmatprep.subr.mxu0 0.0
        %2764 = vmatpush1.msra.mxu0 %v2598
        %2765 = vmatprep.subr.mxu0 0.0
        %2766 = vmatpush1.msra.mxu0 %v2599
        %2767 = vmatprep.subr.mxu0 0.0
        %2768 = vmatpush1.msra.mxu0 %v2600
        %2769 = vmatprep.subr.mxu0 0.0
        %2770 = vmatpush1.msra.mxu0 %v2601
        %2771 = vmatprep.subr.mxu0 0.0
        %2772 = vmatpush1.msra.mxu0 %v2602
        %2773 = vmatprep.subr.mxu0 0.0
        %2774 = vmatpush1.msra.mxu0 %v2603
        %2775 = vmatprep.subr.mxu0 0.0
        %2776 = vmatpush1.msra.mxu0 %v2604
        %2777 = vmatprep.subr.mxu0 0.0
        %2778 = vmatpush1.msra.mxu0 0.0
        %2779 = vmatprep.subr.mxu0 0.0
        %2780 = vmatpush1.msra.mxu0 0.0
        %2781 = vmatprep.subr.mxu0 0.0
        %2782 = vmatpush1.msra.mxu0 0.0
        %2783 = vmatprep.subr.mxu0 0.0
        %2784 = vmatpush1.msra.mxu0 0.0
        %2785 = vmatprep.subr.mxu0 0.0
        %2786 = vmatpush1.msra.mxu0 0.0
        %2787 = vmatprep.subr.mxu0 0.0
        %2788 = vmatpush1.msra.mxu0 0.0
        %2789 = vmatprep.subr.mxu0 0.0
        %2790 = vmatpush1.msra.mxu0 0.0
        %2791 = vmatprep.subr.mxu0 0.0
        %2792 = vmatpush1.msra.mxu0 0.0
        %2793 = vmatprep.subr.mxu0 0.0
        %2794 = vmatpush1.msra.mxu0 0.0
        %2795 = vmatprep.subr.mxu0 0.0
        %2796 = vmatpush1.msra.mxu0 0.0
        %2797 = vmatprep.subr.mxu0 0.0
        %2798 = vmatpush1.msra.mxu0 0.0
        %2799 = vmatprep.subr.mxu0 0.0
        %2800 = vmatpush1.msra.mxu0 0.0
        %2801 = vmatprep.subr.mxu0 0.0
        %2802 = vmatpush1.msra.mxu0 0.0
        %2803 = vmatprep.subr.mxu0 0.0
        %2804 = vmatpush1.msra.mxu0 0.0
        %2805 = vmatprep.subr.mxu0 0.0
        %2806 = vmatpush1.msra.mxu0 0.0
        %2807 = vmatprep.subr.mxu0 0.0
        %2808 = vmatpush1.msra.mxu0 0.0
        %2809 = vmatprep.subr.mxu0 0.0
        %2810 = vmatpush1.msra.mxu0 0.0
        %2811 = vmatprep.subr.mxu0 0.0
        %2812 = vmatpush1.msra.mxu0 0.0
        %2813 = vmatprep.subr.mxu0 0.0
        %2814 = vmatpush1.msra.mxu0 0.0
        %2815 = vmatprep.subr.mxu0 0.0
        %2816 = vmatpush1.msra.mxu0 0.0
        %2817 = vmatprep.subr.mxu0 0.0
        %2818 = vmatpush1.msra.mxu0 0.0
        %2819 = vmatprep.subr.mxu0 0.0
        %2820 = vmatpush1.msra.mxu0 0.0
        %2821 = vmatprep.subr.mxu0 0.0
        %2822 = vmatpush1.msra.mxu0 0.0
        %2823 = vmatprep.subr.mxu0 0.0
        %2824 = vmatpush1.msra.mxu0 0.0
        %2825 = vmatprep.mubr.f32.mxu0 0.0
        %2826 = vmatmul.mubr.f32.gmra.mrb[0].mxu0 %v2759
        %v2827 = vpop.f32.mrb[0].mxu0
        %v2828 = vadd.f32 0.0, %v2827
        %v2829 = vpop.f32.mrb[0].mxu0
        %2830 = vdwg.mxu0
        %v2831 = vadd.f32 %v2453, %v2828
        %2832 = vmatprep.subr.mxu0 0.0
        %2833 = vmatpush1.msra.mxu0 %v2606
        %2834 = vmatprep.subr.mxu0 0.0
        %2835 = vmatpush1.msra.mxu0 %v2607
        %2836 = vmatprep.subr.mxu0 0.0
        %2837 = vmatpush1.msra.mxu0 %v2608
        %2838 = vmatprep.subr.mxu0 0.0
        %2839 = vmatpush1.msra.mxu0 %v2609
        %2840 = vmatprep.subr.mxu0 0.0
        %2841 = vmatpush1.msra.mxu0 %v2610
        %2842 = vmatprep.subr.mxu0 0.0
        %2843 = vmatpush1.msra.mxu0 %v2611
        %2844 = vmatprep.subr.mxu0 0.0
        %2845 = vmatpush1.msra.mxu0 %v2612
        %2846 = vmatprep.subr.mxu0 0.0
        %2847 = vmatpush1.msra.mxu0 %v2613
        %2848 = vmatprep.subr.mxu0 0.0
        %2849 = vmatpush1.msra.mxu0 0.0
        %2850 = vmatprep.subr.mxu0 0.0
        %2851 = vmatpush1.msra.mxu0 0.0
        %2852 = vmatprep.subr.mxu0 0.0
        %2853 = vmatpush1.msra.mxu0 0.0
        %2854 = vmatprep.subr.mxu0 0.0
        %2855 = vmatpush1.msra.mxu0 0.0
        %2856 = vmatprep.subr.mxu0 0.0
        %2857 = vmatpush1.msra.mxu0 0.0
        %2858 = vmatprep.subr.mxu0 0.0
        %2859 = vmatpush1.msra.mxu0 0.0
        %2860 = vmatprep.subr.mxu0 0.0
        %2861 = vmatpush1.msra.mxu0 0.0
        %2862 = vmatprep.subr.mxu0 0.0
        %2863 = vmatpush1.msra.mxu0 0.0
        %2864 = vmatprep.subr.mxu0 0.0
        %2865 = vmatpush1.msra.mxu0 0.0
        %2866 = vmatprep.subr.mxu0 0.0
        %2867 = vmatpush1.msra.mxu0 0.0
        %2868 = vmatprep.subr.mxu0 0.0
        %2869 = vmatpush1.msra.mxu0 0.0
        %2870 = vmatprep.subr.mxu0 0.0
        %2871 = vmatpush1.msra.mxu0 0.0
        %2872 = vmatprep.subr.mxu0 0.0
        %2873 = vmatpush1.msra.mxu0 0.0
        %2874 = vmatprep.subr.mxu0 0.0
        %2875 = vmatpush1.msra.mxu0 0.0
        %2876 = vmatprep.subr.mxu0 0.0
        %2877 = vmatpush1.msra.mxu0 0.0
        %2878 = vmatprep.subr.mxu0 0.0
        %2879 = vmatpush1.msra.mxu0 0.0
        %2880 = vmatprep.subr.mxu0 0.0
        %2881 = vmatpush1.msra.mxu0 0.0
        %2882 = vmatprep.subr.mxu0 0.0
        %2883 = vmatpush1.msra.mxu0 0.0
        %2884 = vmatprep.subr.mxu0 0.0
        %2885 = vmatpush1.msra.mxu0 0.0
        %2886 = vmatprep.subr.mxu0 0.0
        %2887 = vmatpush1.msra.mxu0 0.0
        %2888 = vmatprep.subr.mxu0 0.0
        %2889 = vmatpush1.msra.mxu0 0.0
        %2890 = vmatprep.subr.mxu0 0.0
        %2891 = vmatpush1.msra.mxu0 0.0
        %2892 = vmatprep.subr.mxu0 0.0
        %2893 = vmatpush1.msra.mxu0 0.0
        %2894 = vmatprep.subr.mxu0 0.0
        %2895 = vmatpush1.msra.mxu0 0.0
        %2896 = vmatprep.mubr.f32.mxu0 0.0
        %2897 = vmatmul.mubr.f32.gmra.mrb[0].mxu0 %v2759
        %v2898 = vpop.f32.mrb[0].mxu0
        %v2899 = vadd.f32 0.0, %v2898
        %v2900 = vpop.f32.mrb[0].mxu0
        %2901 = vdwg.mxu0
        %v2902 = vadd.f32 %v2593, %v2899
        %s2903 = scalar_lea.vmem [#allocation7], 384
        %v2904 = vld [vmem:[%s2903] sm:$0xff]
        %v2905 = vld [vmem:[%s2903 + $0x8] sm:$0xff]
        %v2906 = vld [vmem:[%s2903 + $0x10] sm:$0xff]
        %v2907 = vld [vmem:[%s2903 + $0x18] sm:$0xff]
        %v2908 = vld [vmem:[%s2903 + $0x20] sm:$0xff]
        %v2909 = vld [vmem:[%s2903 + $0x28] sm:$0xff]
        %v2910 = vld [vmem:[%s2903 + $0x30] sm:$0xff]
        %v2911 = vld [vmem:[%s2903 + $0x38] sm:$0xff]
        %s2912 = scalar_lea.vmem [#allocation7], 448
        %v2913 = vld [vmem:[%s2912] sm:$0xff]
        %v2914 = vld [vmem:[%s2912 + $0x8] sm:$0xff]
        %v2915 = vld [vmem:[%s2912 + $0x10] sm:$0xff]
        %v2916 = vld [vmem:[%s2912 + $0x18] sm:$0xff]
        %v2917 = vld [vmem:[%s2912 + $0x20] sm:$0xff]
        %v2918 = vld [vmem:[%s2912 + $0x28] sm:$0xff]
        %v2919 = vld [vmem:[%s2912 + $0x30] sm:$0xff]
        %v2920 = vld [vmem:[%s2912 + $0x38] sm:$0xff]
        %2921 = vmatprep.subr.mxu0 0.0
        %2922 = vmatpush1.msra.mxu0 %v2904
        %2923 = vmatprep.subr.mxu0 0.0
        %2924 = vmatpush1.msra.mxu0 %v2905
        %2925 = vmatprep.subr.mxu0 0.0
        %2926 = vmatpush1.msra.mxu0 %v2906
        %2927 = vmatprep.subr.mxu0 0.0
        %2928 = vmatpush1.msra.mxu0 %v2907
        %2929 = vmatprep.subr.mxu0 0.0
        %2930 = vmatpush1.msra.mxu0 %v2908
        %2931 = vmatprep.subr.mxu0 0.0
        %2932 = vmatpush1.msra.mxu0 %v2909
        %2933 = vmatprep.subr.mxu0 0.0
        %2934 = vmatpush1.msra.mxu0 %v2910
        %2935 = vmatprep.subr.mxu0 0.0
        %2936 = vmatpush1.msra.mxu0 %v2911
        %2937 = vmatprep.subr.mxu0 0.0
        %2938 = vmatpush1.msra.mxu0 0.0
        %2939 = vmatprep.subr.mxu0 0.0
        %2940 = vmatpush1.msra.mxu0 0.0
        %2941 = vmatprep.subr.mxu0 0.0
        %2942 = vmatpush1.msra.mxu0 0.0
        %2943 = vmatprep.subr.mxu0 0.0
        %2944 = vmatpush1.msra.mxu0 0.0
        %2945 = vmatprep.subr.mxu0 0.0
        %2946 = vmatpush1.msra.mxu0 0.0
        %2947 = vmatprep.subr.mxu0 0.0
        %2948 = vmatpush1.msra.mxu0 0.0
        %2949 = vmatprep.subr.mxu0 0.0
        %2950 = vmatpush1.msra.mxu0 0.0
        %2951 = vmatprep.subr.mxu0 0.0
        %2952 = vmatpush1.msra.mxu0 0.0
        %2953 = vmatprep.subr.mxu0 0.0
        %2954 = vmatpush1.msra.mxu0 0.0
        %2955 = vmatprep.subr.mxu0 0.0
        %2956 = vmatpush1.msra.mxu0 0.0
        %2957 = vmatprep.subr.mxu0 0.0
        %2958 = vmatpush1.msra.mxu0 0.0
        %2959 = vmatprep.subr.mxu0 0.0
        %2960 = vmatpush1.msra.mxu0 0.0
        %2961 = vmatprep.subr.mxu0 0.0
        %2962 = vmatpush1.msra.mxu0 0.0
        %2963 = vmatprep.subr.mxu0 0.0
        %2964 = vmatpush1.msra.mxu0 0.0
        %2965 = vmatprep.subr.mxu0 0.0
        %2966 = vmatpush1.msra.mxu0 0.0
        %2967 = vmatprep.subr.mxu0 0.0
        %2968 = vmatpush1.msra.mxu0 0.0
        %2969 = vmatprep.subr.mxu0 0.0
        %2970 = vmatpush1.msra.mxu0 0.0
        %2971 = vmatprep.subr.mxu0 0.0
        %2972 = vmatpush1.msra.mxu0 0.0
        %2973 = vmatprep.subr.mxu0 0.0
        %2974 = vmatpush1.msra.mxu0 0.0
        %2975 = vmatprep.subr.mxu0 0.0
        %2976 = vmatpush1.msra.mxu0 0.0
        %2977 = vmatprep.subr.mxu0 0.0
        %2978 = vmatpush1.msra.mxu0 0.0
        %2979 = vmatprep.subr.mxu0 0.0
        %2980 = vmatpush1.msra.mxu0 0.0
        %2981 = vmatprep.subr.mxu0 0.0
        %2982 = vmatpush1.msra.mxu0 0.0
        %2983 = vmatprep.subr.mxu0 0.0
        %2984 = vmatpush1.msra.mxu0 0.0
        %2985 = vmatprep.mubr.f32.mxu0 0.0
        %2986 = vmatmul.mubr.f32.gmra.mrb[0].mxu0 %v2759
        %v2987 = vpop.f32.mrb[0].mxu0
        %v2988 = vadd.f32 0.0, %v2987
        %v2989 = vpop.f32.mrb[0].mxu0
        %2990 = vdwg.mxu0
        %v2991 = vadd.f32 %v2684, %v2988
        %2992 = vmatprep.subr.mxu0 0.0
        %2993 = vmatpush1.msra.mxu0 %v2913
        %2994 = vmatprep.subr.mxu0 0.0
        %2995 = vmatpush1.msra.mxu0 %v2914
        %2996 = vmatprep.subr.mxu0 0.0
        %2997 = vmatpush1.msra.mxu0 %v2915
        %2998 = vmatprep.subr.mxu0 0.0
        %2999 = vmatpush1.msra.mxu0 %v2916
        %3000 = vmatprep.subr.mxu0 0.0
        %3001 = vmatpush1.msra.mxu0 %v2917
        %3002 = vmatprep.subr.mxu0 0.0
        %3003 = vmatpush1.msra.mxu0 %v2918
        %3004 = vmatprep.subr.mxu0 0.0
        %3005 = vmatpush1.msra.mxu0 %v2919
        %3006 = vmatprep.subr.mxu0 0.0
        %3007 = vmatpush1.msra.mxu0 %v2920
        %3008 = vmatprep.subr.mxu0 0.0
        %3009 = vmatpush1.msra.mxu0 0.0
        %3010 = vmatprep.subr.mxu0 0.0
        %3011 = vmatpush1.msra.mxu0 0.0
        %3012 = vmatprep.subr.mxu0 0.0
        %3013 = vmatpush1.msra.mxu0 0.0
        %3014 = vmatprep.subr.mxu0 0.0
        %3015 = vmatpush1.msra.mxu0 0.0
        %3016 = vmatprep.subr.mxu0 0.0
        %3017 = vmatpush1.msra.mxu0 0.0
        %3018 = vmatprep.subr.mxu0 0.0
        %3019 = vmatpush1.msra.mxu0 0.0
        %3020 = vmatprep.subr.mxu0 0.0
        %3021 = vmatpush1.msra.mxu0 0.0
        %3022 = vmatprep.subr.mxu0 0.0
        %3023 = vmatpush1.msra.mxu0 0.0
        %3024 = vmatprep.subr.mxu0 0.0
        %3025 = vmatpush1.msra.mxu0 0.0
        %3026 = vmatprep.subr.mxu0 0.0
        %3027 = vmatpush1.msra.mxu0 0.0
        %3028 = vmatprep.subr.mxu0 0.0
        %3029 = vmatpush1.msra.mxu0 0.0
        %3030 = vmatprep.subr.mxu0 0.0
        %3031 = vmatpush1.msra.mxu0 0.0
        %3032 = vmatprep.subr.mxu0 0.0
        %3033 = vmatpush1.msra.mxu0 0.0
        %3034 = vmatprep.subr.mxu0 0.0
        %3035 = vmatpush1.msra.mxu0 0.0
        %3036 = vmatprep.subr.mxu0 0.0
        %3037 = vmatpush1.msra.mxu0 0.0
        %3038 = vmatprep.subr.mxu0 0.0
        %3039 = vmatpush1.msra.mxu0 0.0
        %3040 = vmatprep.subr.mxu0 0.0
        %3041 = vmatpush1.msra.mxu0 0.0
        %3042 = vmatprep.subr.mxu0 0.0
        %3043 = vmatpush1.msra.mxu0 0.0
        %3044 = vmatprep.subr.mxu0 0.0
        %3045 = vmatpush1.msra.mxu0 0.0
        %3046 = vmatprep.subr.mxu0 0.0
        %3047 = vmatpush1.msra.mxu0 0.0
        %3048 = vmatprep.subr.mxu0 0.0
        %3049 = vmatpush1.msra.mxu0 0.0
        %3050 = vmatprep.subr.mxu0 0.0
        %3051 = vmatpush1.msra.mxu0 0.0
        %3052 = vmatprep.subr.mxu0 0.0
        %3053 = vmatpush1.msra.mxu0 0.0
        %3054 = vmatprep.subr.mxu0 0.0
        %3055 = vmatpush1.msra.mxu0 0.0
        %3056 = vmatprep.mubr.f32.mxu0 0.0
        %3057 = vmatmul.mubr.f32.gmra.mrb[0].mxu0 %v2759
        %v3058 = vpop.f32.mrb[0].mxu0
        %v3059 = vadd.f32 0.0, %v3058
        %v3060 = vpop.f32.mrb[0].mxu0
        %3061 = vdwg.mxu0
        %v3062 = vadd.f32 %v2755, %v3059
        %s3063 = scalar_lea.vmem [#allocation3], 4
        %v3064 = vld [vmem:[%s3063] ss:$2 sm:$0x3]
        %v3066 = vsel %vm1984, %v3064, 0
        %3068 = vmatprep.subr.mxu0 0.0
        %3069 = vmatpush1.msra.mxu0 %v2904
        %3070 = vmatprep.subr.mxu0 0.0
        %3071 = vmatpush1.msra.mxu0 %v2905
        %3072 = vmatprep.subr.mxu0 0.0
        %3073 = vmatpush1.msra.mxu0 %v2906
        %3074 = vmatprep.subr.mxu0 0.0
        %3075 = vmatpush1.msra.mxu0 %v2907
        %3076 = vmatprep.subr.mxu0 0.0
        %3077 = vmatpush1.msra.mxu0 %v2908
        %3078 = vmatprep.subr.mxu0 0.0
        %3079 = vmatpush1.msra.mxu0 %v2909
        %3080 = vmatprep.subr.mxu0 0.0
        %3081 = vmatpush1.msra.mxu0 %v2910
        %3082 = vmatprep.subr.mxu0 0.0
        %3083 = vmatpush1.msra.mxu0 %v2911
        %3084 = vmatprep.subr.mxu0 0.0
        %3085 = vmatpush1.msra.mxu0 0.0
        %3086 = vmatprep.subr.mxu0 0.0
        %3087 = vmatpush1.msra.mxu0 0.0
        %3088 = vmatprep.subr.mxu0 0.0
        %3089 = vmatpush1.msra.mxu0 0.0
        %3090 = vmatprep.subr.mxu0 0.0
        %3091 = vmatpush1.msra.mxu0 0.0
        %3092 = vmatprep.subr.mxu0 0.0
        %3093 = vmatpush1.msra.mxu0 0.0
        %3094 = vmatprep.subr.mxu0 0.0
        %3095 = vmatpush1.msra.mxu0 0.0
        %3096 = vmatprep.subr.mxu0 0.0
        %3097 = vmatpush1.msra.mxu0 0.0
        %3098 = vmatprep.subr.mxu0 0.0
        %3099 = vmatpush1.msra.mxu0 0.0
        %3100 = vmatprep.subr.mxu0 0.0
        %3101 = vmatpush1.msra.mxu0 0.0
        %3102 = vmatprep.subr.mxu0 0.0
        %3103 = vmatpush1.msra.mxu0 0.0
        %3104 = vmatprep.subr.mxu0 0.0
        %3105 = vmatpush1.msra.mxu0 0.0
        %3106 = vmatprep.subr.mxu0 0.0
        %3107 = vmatpush1.msra.mxu0 0.0
        %3108 = vmatprep.subr.mxu0 0.0
        %3109 = vmatpush1.msra.mxu0 0.0
        %3110 = vmatprep.subr.mxu0 0.0
        %3111 = vmatpush1.msra.mxu0 0.0
        %3112 = vmatprep.subr.mxu0 0.0
        %3113 = vmatpush1.msra.mxu0 0.0
        %3114 = vmatprep.subr.mxu0 0.0
        %3115 = vmatpush1.msra.mxu0 0.0
        %3116 = vmatprep.subr.mxu0 0.0
        %3117 = vmatpush1.msra.mxu0 0.0
        %3118 = vmatprep.subr.mxu0 0.0
        %3119 = vmatpush1.msra.mxu0 0.0
        %3120 = vmatprep.subr.mxu0 0.0
        %3121 = vmatpush1.msra.mxu0 0.0
        %3122 = vmatprep.subr.mxu0 0.0
        %3123 = vmatpush1.msra.mxu0 0.0
        %3124 = vmatprep.subr.mxu0 0.0
        %3125 = vmatpush1.msra.mxu0 0.0
        %3126 = vmatprep.subr.mxu0 0.0
        %3127 = vmatpush1.msra.mxu0 0.0
        %3128 = vmatprep.subr.mxu0 0.0
        %3129 = vmatpush1.msra.mxu0 0.0
        %3130 = vmatprep.subr.mxu0 0.0
        %3131 = vmatpush1.msra.mxu0 0.0
        %3132 = vmatprep.mubr.f32.mxu0 0.0
        %3133 = vmatmul.mubr.f32.gmra.mrb[0].mxu0 %v3066
        %v3134 = vpop.f32.mrb[0].mxu0
        %v3135 = vadd.f32 0.0, %v3134
        %v3136 = vpop.f32.mrb[0].mxu0
        %3137 = vdwg.mxu0
        %v3138 = vadd.f32 %v2831, %v3135
        %3139 = vmatprep.subr.mxu0 0.0
        %3140 = vmatpush1.msra.mxu0 %v2913
        %3141 = vmatprep.subr.mxu0 0.0
        %3142 = vmatpush1.msra.mxu0 %v2914
        %3143 = vmatprep.subr.mxu0 0.0
        %3144 = vmatpush1.msra.mxu0 %v2915
        %3145 = vmatprep.subr.mxu0 0.0
        %3146 = vmatpush1.msra.mxu0 %v2916
        %3147 = vmatprep.subr.mxu0 0.0
        %3148 = vmatpush1.msra.mxu0 %v2917
        %3149 = vmatprep.subr.mxu0 0.0
        %3150 = vmatpush1.msra.mxu0 %v2918
        %3151 = vmatprep.subr.mxu0 0.0
        %3152 = vmatpush1.msra.mxu0 %v2919
        %3153 = vmatprep.subr.mxu0 0.0
        %3154 = vmatpush1.msra.mxu0 %v2920
        %3155 = vmatprep.subr.mxu0 0.0
        %3156 = vmatpush1.msra.mxu0 0.0
        %3157 = vmatprep.subr.mxu0 0.0
        %3158 = vmatpush1.msra.mxu0 0.0
        %3159 = vmatprep.subr.mxu0 0.0
        %3160 = vmatpush1.msra.mxu0 0.0
        %3161 = vmatprep.subr.mxu0 0.0
        %3162 = vmatpush1.msra.mxu0 0.0
        %3163 = vmatprep.subr.mxu0 0.0
        %3164 = vmatpush1.msra.mxu0 0.0
        %3165 = vmatprep.subr.mxu0 0.0
        %3166 = vmatpush1.msra.mxu0 0.0
        %3167 = vmatprep.subr.mxu0 0.0
        %3168 = vmatpush1.msra.mxu0 0.0
        %3169 = vmatprep.subr.mxu0 0.0
        %3170 = vmatpush1.msra.mxu0 0.0
        %3171 = vmatprep.subr.mxu0 0.0
        %3172 = vmatpush1.msra.mxu0 0.0
        %3173 = vmatprep.subr.mxu0 0.0
        %3174 = vmatpush1.msra.mxu0 0.0
        %3175 = vmatprep.subr.mxu0 0.0
        %3176 = vmatpush1.msra.mxu0 0.0
        %3177 = vmatprep.subr.mxu0 0.0
        %3178 = vmatpush1.msra.mxu0 0.0
        %3179 = vmatprep.subr.mxu0 0.0
        %3180 = vmatpush1.msra.mxu0 0.0
        %3181 = vmatprep.subr.mxu0 0.0
        %3182 = vmatpush1.msra.mxu0 0.0
        %3183 = vmatprep.subr.mxu0 0.0
        %3184 = vmatpush1.msra.mxu0 0.0
        %3185 = vmatprep.subr.mxu0 0.0
        %3186 = vmatpush1.msra.mxu0 0.0
        %3187 = vmatprep.subr.mxu0 0.0
        %3188 = vmatpush1.msra.mxu0 0.0
        %3189 = vmatprep.subr.mxu0 0.0
        %3190 = vmatpush1.msra.mxu0 0.0
        %3191 = vmatprep.subr.mxu0 0.0
        %3192 = vmatpush1.msra.mxu0 0.0
        %3193 = vmatprep.subr.mxu0 0.0
        %3194 = vmatpush1.msra.mxu0 0.0
        %3195 = vmatprep.subr.mxu0 0.0
        %3196 = vmatpush1.msra.mxu0 0.0
        %3197 = vmatprep.subr.mxu0 0.0
        %3198 = vmatpush1.msra.mxu0 0.0
        %3199 = vmatprep.subr.mxu0 0.0
        %3200 = vmatpush1.msra.mxu0 0.0
        %3201 = vmatprep.subr.mxu0 0.0
        %3202 = vmatpush1.msra.mxu0 0.0
        %3203 = vmatprep.mubr.f32.mxu0 0.0
        %3204 = vmatmul.mubr.f32.gmra.mrb[0].mxu0 %v3066
        %v3205 = vpop.f32.mrb[0].mxu0
        %v3206 = vadd.f32 0.0, %v3205
        %v3207 = vpop.f32.mrb[0].mxu0
        %3208 = vdwg.mxu0
        %v3209 = vadd.f32 %v2902, %v3206
        %s3210 = scalar_lea.vmem [#allocation7], 512
        %v3211 = vld [vmem:[%s3210] sm:$0xff]
        %v3212 = vld [vmem:[%s3210 + $0x8] sm:$0xff]
        %v3213 = vld [vmem:[%s3210 + $0x10] sm:$0xff]
        %v3214 = vld [vmem:[%s3210 + $0x18] sm:$0xff]
        %v3215 = vld [vmem:[%s3210 + $0x20] sm:$0xff]
        %v3216 = vld [vmem:[%s3210 + $0x28] sm:$0xff]
        %v3217 = vld [vmem:[%s3210 + $0x30] sm:$0xff]
        %v3218 = vld [vmem:[%s3210 + $0x38] sm:$0xff]
        %s3219 = scalar_lea.vmem [#allocation7], 576
        %v3220 = vld [vmem:[%s3219] sm:$0xff]
        %v3221 = vld [vmem:[%s3219 + $0x8] sm:$0xff]
        %v3222 = vld [vmem:[%s3219 + $0x10] sm:$0xff]
        %v3223 = vld [vmem:[%s3219 + $0x18] sm:$0xff]
        %v3224 = vld [vmem:[%s3219 + $0x20] sm:$0xff]
        %v3225 = vld [vmem:[%s3219 + $0x28] sm:$0xff]
        %v3226 = vld [vmem:[%s3219 + $0x30] sm:$0xff]
        %v3227 = vld [vmem:[%s3219 + $0x38] sm:$0xff]
        %3228 = vmatprep.subr.mxu0 0.0
        %3229 = vmatpush1.msra.mxu0 %v3211
        %3230 = vmatprep.subr.mxu0 0.0
        %3231 = vmatpush1.msra.mxu0 %v3212
        %3232 = vmatprep.subr.mxu0 0.0
        %3233 = vmatpush1.msra.mxu0 %v3213
        %3234 = vmatprep.subr.mxu0 0.0
        %3235 = vmatpush1.msra.mxu0 %v3214
        %3236 = vmatprep.subr.mxu0 0.0
        %3237 = vmatpush1.msra.mxu0 %v3215
        %3238 = vmatprep.subr.mxu0 0.0
        %3239 = vmatpush1.msra.mxu0 %v3216
        %3240 = vmatprep.subr.mxu0 0.0
        %3241 = vmatpush1.msra.mxu0 %v3217
        %3242 = vmatprep.subr.mxu0 0.0
        %3243 = vmatpush1.msra.mxu0 %v3218
        %3244 = vmatprep.subr.mxu0 0.0
        %3245 = vmatpush1.msra.mxu0 0.0
        %3246 = vmatprep.subr.mxu0 0.0
        %3247 = vmatpush1.msra.mxu0 0.0
        %3248 = vmatprep.subr.mxu0 0.0
        %3249 = vmatpush1.msra.mxu0 0.0
        %3250 = vmatprep.subr.mxu0 0.0
        %3251 = vmatpush1.msra.mxu0 0.0
        %3252 = vmatprep.subr.mxu0 0.0
        %3253 = vmatpush1.msra.mxu0 0.0
        %3254 = vmatprep.subr.mxu0 0.0
        %3255 = vmatpush1.msra.mxu0 0.0
        %3256 = vmatprep.subr.mxu0 0.0
        %3257 = vmatpush1.msra.mxu0 0.0
        %3258 = vmatprep.subr.mxu0 0.0
        %3259 = vmatpush1.msra.mxu0 0.0
        %3260 = vmatprep.subr.mxu0 0.0
        %3261 = vmatpush1.msra.mxu0 0.0
        %3262 = vmatprep.subr.mxu0 0.0
        %3263 = vmatpush1.msra.mxu0 0.0
        %3264 = vmatprep.subr.mxu0 0.0
        %3265 = vmatpush1.msra.mxu0 0.0
        %3266 = vmatprep.subr.mxu0 0.0
        %3267 = vmatpush1.msra.mxu0 0.0
        %3268 = vmatprep.subr.mxu0 0.0
        %3269 = vmatpush1.msra.mxu0 0.0
        %3270 = vmatprep.subr.mxu0 0.0
        %3271 = vmatpush1.msra.mxu0 0.0
        %3272 = vmatprep.subr.mxu0 0.0
        %3273 = vmatpush1.msra.mxu0 0.0
        %3274 = vmatprep.subr.mxu0 0.0
        %3275 = vmatpush1.msra.mxu0 0.0
        %3276 = vmatprep.subr.mxu0 0.0
        %3277 = vmatpush1.msra.mxu0 0.0
        %3278 = vmatprep.subr.mxu0 0.0
        %3279 = vmatpush1.msra.mxu0 0.0
        %3280 = vmatprep.subr.mxu0 0.0
        %3281 = vmatpush1.msra.mxu0 0.0
        %3282 = vmatprep.subr.mxu0 0.0
        %3283 = vmatpush1.msra.mxu0 0.0
        %3284 = vmatprep.subr.mxu0 0.0
        %3285 = vmatpush1.msra.mxu0 0.0
        %3286 = vmatprep.subr.mxu0 0.0
        %3287 = vmatpush1.msra.mxu0 0.0
        %3288 = vmatprep.subr.mxu0 0.0
        %3289 = vmatpush1.msra.mxu0 0.0
        %3290 = vmatprep.subr.mxu0 0.0
        %3291 = vmatpush1.msra.mxu0 0.0
        %3292 = vmatprep.mubr.f32.mxu0 0.0
        %3293 = vmatmul.mubr.f32.gmra.mrb[0].mxu0 %v3066
        %v3294 = vpop.f32.mrb[0].mxu0
        %v3295 = vadd.f32 0.0, %v3294
        %v3296 = vpop.f32.mrb[0].mxu0
        %3297 = vdwg.mxu0
        %v3298 = vadd.f32 %v2991, %v3295
        %3299 = vmatprep.subr.mxu0 0.0
        %3300 = vmatpush1.msra.mxu0 %v3220
        %3301 = vmatprep.subr.mxu0 0.0
        %3302 = vmatpush1.msra.mxu0 %v3221
        %3303 = vmatprep.subr.mxu0 0.0
        %3304 = vmatpush1.msra.mxu0 %v3222
        %3305 = vmatprep.subr.mxu0 0.0
        %3306 = vmatpush1.msra.mxu0 %v3223
        %3307 = vmatprep.subr.mxu0 0.0
        %3308 = vmatpush1.msra.mxu0 %v3224
        %3309 = vmatprep.subr.mxu0 0.0
        %3310 = vmatpush1.msra.mxu0 %v3225
        %3311 = vmatprep.subr.mxu0 0.0
        %3312 = vmatpush1.msra.mxu0 %v3226
        %3313 = vmatprep.subr.mxu0 0.0
        %3314 = vmatpush1.msra.mxu0 %v3227
        %3315 = vmatprep.subr.mxu0 0.0
        %3316 = vmatpush1.msra.mxu0 0.0
        %3317 = vmatprep.subr.mxu0 0.0
        %3318 = vmatpush1.msra.mxu0 0.0
        %3319 = vmatprep.subr.mxu0 0.0
        %3320 = vmatpush1.msra.mxu0 0.0
        %3321 = vmatprep.subr.mxu0 0.0
        %3322 = vmatpush1.msra.mxu0 0.0
        %3323 = vmatprep.subr.mxu0 0.0
        %3324 = vmatpush1.msra.mxu0 0.0
        %3325 = vmatprep.subr.mxu0 0.0
        %3326 = vmatpush1.msra.mxu0 0.0
        %3327 = vmatprep.subr.mxu0 0.0
        %3328 = vmatpush1.msra.mxu0 0.0
        %3329 = vmatprep.subr.mxu0 0.0
        %3330 = vmatpush1.msra.mxu0 0.0
        %3331 = vmatprep.subr.mxu0 0.0
        %3332 = vmatpush1.msra.mxu0 0.0
        %3333 = vmatprep.subr.mxu0 0.0
        %3334 = vmatpush1.msra.mxu0 0.0
        %3335 = vmatprep.subr.mxu0 0.0
        %3336 = vmatpush1.msra.mxu0 0.0
        %3337 = vmatprep.subr.mxu0 0.0
        %3338 = vmatpush1.msra.mxu0 0.0
        %3339 = vmatprep.subr.mxu0 0.0
        %3340 = vmatpush1.msra.mxu0 0.0
        %3341 = vmatprep.subr.mxu0 0.0
        %3342 = vmatpush1.msra.mxu0 0.0
        %3343 = vmatprep.subr.mxu0 0.0
        %3344 = vmatpush1.msra.mxu0 0.0
        %3345 = vmatprep.subr.mxu0 0.0
        %3346 = vmatpush1.msra.mxu0 0.0
        %3347 = vmatprep.subr.mxu0 0.0
        %3348 = vmatpush1.msra.mxu0 0.0
        %3349 = vmatprep.subr.mxu0 0.0
        %3350 = vmatpush1.msra.mxu0 0.0
        %3351 = vmatprep.subr.mxu0 0.0
        %3352 = vmatpush1.msra.mxu0 0.0
        %3353 = vmatprep.subr.mxu0 0.0
        %3354 = vmatpush1.msra.mxu0 0.0
        %3355 = vmatprep.subr.mxu0 0.0
        %3356 = vmatpush1.msra.mxu0 0.0
        %3357 = vmatprep.subr.mxu0 0.0
        %3358 = vmatpush1.msra.mxu0 0.0
        %3359 = vmatprep.subr.mxu0 0.0
        %3360 = vmatpush1.msra.mxu0 0.0
        %3361 = vmatprep.subr.mxu0 0.0
        %3362 = vmatpush1.msra.mxu0 0.0
        %3363 = vmatprep.mubr.f32.mxu0 0.0
        %3364 = vmatmul.mubr.f32.gmra.mrb[0].mxu0 %v3066
        %v3365 = vpop.f32.mrb[0].mxu0
        %v3366 = vadd.f32 0.0, %v3365
        %v3367 = vpop.f32.mrb[0].mxu0
        %3368 = vdwg.mxu0
        %v3369 = vadd.f32 %v3062, %v3366
        %s3370 = scalar_lea.vmem [#allocation3], 5
        %v3371 = vld [vmem:[%s3370] ss:$2 sm:$0x3]
        %v3373 = vsel %vm1984, %v3371, 0
        %3375 = vmatprep.subr.mxu0 0.0
        %3376 = vmatpush1.msra.mxu0 %v3211
        %3377 = vmatprep.subr.mxu0 0.0
        %3378 = vmatpush1.msra.mxu0 %v3212
        %3379 = vmatprep.subr.mxu0 0.0
        %3380 = vmatpush1.msra.mxu0 %v3213
        %3381 = vmatprep.subr.mxu0 0.0
        %3382 = vmatpush1.msra.mxu0 %v3214
        %3383 = vmatprep.subr.mxu0 0.0
        %3384 = vmatpush1.msra.mxu0 %v3215
        %3385 = vmatprep.subr.mxu0 0.0
        %3386 = vmatpush1.msra.mxu0 %v3216
        %3387 = vmatprep.subr.mxu0 0.0
        %3388 = vmatpush1.msra.mxu0 %v3217
        %3389 = vmatprep.subr.mxu0 0.0
        %3390 = vmatpush1.msra.mxu0 %v3218
        %3391 = vmatprep.subr.mxu0 0.0
        %3392 = vmatpush1.msra.mxu0 0.0
        %3393 = vmatprep.subr.mxu0 0.0
        %3394 = vmatpush1.msra.mxu0 0.0
        %3395 = vmatprep.subr.mxu0 0.0
        %3396 = vmatpush1.msra.mxu0 0.0
        %3397 = vmatprep.subr.mxu0 0.0
        %3398 = vmatpush1.msra.mxu0 0.0
        %3399 = vmatprep.subr.mxu0 0.0
        %3400 = vmatpush1.msra.mxu0 0.0
        %3401 = vmatprep.subr.mxu0 0.0
        %3402 = vmatpush1.msra.mxu0 0.0
        %3403 = vmatprep.subr.mxu0 0.0
        %3404 = vmatpush1.msra.mxu0 0.0
        %3405 = vmatprep.subr.mxu0 0.0
        %3406 = vmatpush1.msra.mxu0 0.0
        %3407 = vmatprep.subr.mxu0 0.0
        %3408 = vmatpush1.msra.mxu0 0.0
        %3409 = vmatprep.subr.mxu0 0.0
        %3410 = vmatpush1.msra.mxu0 0.0
        %3411 = vmatprep.subr.mxu0 0.0
        %3412 = vmatpush1.msra.mxu0 0.0
        %3413 = vmatprep.subr.mxu0 0.0
        %3414 = vmatpush1.msra.mxu0 0.0
        %3415 = vmatprep.subr.mxu0 0.0
        %3416 = vmatpush1.msra.mxu0 0.0
        %3417 = vmatprep.subr.mxu0 0.0
        %3418 = vmatpush1.msra.mxu0 0.0
        %3419 = vmatprep.subr.mxu0 0.0
        %3420 = vmatpush1.msra.mxu0 0.0
        %3421 = vmatprep.subr.mxu0 0.0
        %3422 = vmatpush1.msra.mxu0 0.0
        %3423 = vmatprep.subr.mxu0 0.0
        %3424 = vmatpush1.msra.mxu0 0.0
        %3425 = vmatprep.subr.mxu0 0.0
        %3426 = vmatpush1.msra.mxu0 0.0
        %3427 = vmatprep.subr.mxu0 0.0
        %3428 = vmatpush1.msra.mxu0 0.0
        %3429 = vmatprep.subr.mxu0 0.0
        %3430 = vmatpush1.msra.mxu0 0.0
        %3431 = vmatprep.subr.mxu0 0.0
        %3432 = vmatpush1.msra.mxu0 0.0
        %3433 = vmatprep.subr.mxu0 0.0
        %3434 = vmatpush1.msra.mxu0 0.0
        %3435 = vmatprep.subr.mxu0 0.0
        %3436 = vmatpush1.msra.mxu0 0.0
        %3437 = vmatprep.subr.mxu0 0.0
        %3438 = vmatpush1.msra.mxu0 0.0
        %3439 = vmatprep.mubr.f32.mxu0 0.0
        %3440 = vmatmul.mubr.f32.gmra.mrb[0].mxu0 %v3373
        %v3441 = vpop.f32.mrb[0].mxu0
        %v3442 = vadd.f32 0.0, %v3441
        %v3443 = vpop.f32.mrb[0].mxu0
        %3444 = vdwg.mxu0
        %v3445 = vadd.f32 %v3138, %v3442
        %3446 = vmatprep.subr.mxu0 0.0
        %3447 = vmatpush1.msra.mxu0 %v3220
        %3448 = vmatprep.subr.mxu0 0.0
        %3449 = vmatpush1.msra.mxu0 %v3221
        %3450 = vmatprep.subr.mxu0 0.0
        %3451 = vmatpush1.msra.mxu0 %v3222
        %3452 = vmatprep.subr.mxu0 0.0
        %3453 = vmatpush1.msra.mxu0 %v3223
        %3454 = vmatprep.subr.mxu0 0.0
        %3455 = vmatpush1.msra.mxu0 %v3224
        %3456 = vmatprep.subr.mxu0 0.0
        %3457 = vmatpush1.msra.mxu0 %v3225
        %3458 = vmatprep.subr.mxu0 0.0
        %3459 = vmatpush1.msra.mxu0 %v3226
        %3460 = vmatprep.subr.mxu0 0.0
        %3461 = vmatpush1.msra.mxu0 %v3227
        %3462 = vmatprep.subr.mxu0 0.0
        %3463 = vmatpush1.msra.mxu0 0.0
        %3464 = vmatprep.subr.mxu0 0.0
        %3465 = vmatpush1.msra.mxu0 0.0
        %3466 = vmatprep.subr.mxu0 0.0
        %3467 = vmatpush1.msra.mxu0 0.0
        %3468 = vmatprep.subr.mxu0 0.0
        %3469 = vmatpush1.msra.mxu0 0.0
        %3470 = vmatprep.subr.mxu0 0.0
        %3471 = vmatpush1.msra.mxu0 0.0
        %3472 = vmatprep.subr.mxu0 0.0
        %3473 = vmatpush1.msra.mxu0 0.0
        %3474 = vmatprep.subr.mxu0 0.0
        %3475 = vmatpush1.msra.mxu0 0.0
        %3476 = vmatprep.subr.mxu0 0.0
        %3477 = vmatpush1.msra.mxu0 0.0
        %3478 = vmatprep.subr.mxu0 0.0
        %3479 = vmatpush1.msra.mxu0 0.0
        %3480 = vmatprep.subr.mxu0 0.0
        %3481 = vmatpush1.msra.mxu0 0.0
        %3482 = vmatprep.subr.mxu0 0.0
        %3483 = vmatpush1.msra.mxu0 0.0
        %3484 = vmatprep.subr.mxu0 0.0
        %3485 = vmatpush1.msra.mxu0 0.0
        %3486 = vmatprep.subr.mxu0 0.0
        %3487 = vmatpush1.msra.mxu0 0.0
        %3488 = vmatprep.subr.mxu0 0.0
        %3489 = vmatpush1.msra.mxu0 0.0
        %3490 = vmatprep.subr.mxu0 0.0
        %3491 = vmatpush1.msra.mxu0 0.0
        %3492 = vmatprep.subr.mxu0 0.0
        %3493 = vmatpush1.msra.mxu0 0.0
        %3494 = vmatprep.subr.mxu0 0.0
        %3495 = vmatpush1.msra.mxu0 0.0
        %3496 = vmatprep.subr.mxu0 0.0
        %3497 = vmatpush1.msra.mxu0 0.0
        %3498 = vmatprep.subr.mxu0 0.0
        %3499 = vmatpush1.msra.mxu0 0.0
        %3500 = vmatprep.subr.mxu0 0.0
        %3501 = vmatpush1.msra.mxu0 0.0
        %3502 = vmatprep.subr.mxu0 0.0
        %3503 = vmatpush1.msra.mxu0 0.0
        %3504 = vmatprep.subr.mxu0 0.0
        %3505 = vmatpush1.msra.mxu0 0.0
        %3506 = vmatprep.subr.mxu0 0.0
        %3507 = vmatpush1.msra.mxu0 0.0
        %3508 = vmatprep.subr.mxu0 0.0
        %3509 = vmatpush1.msra.mxu0 0.0
        %3510 = vmatprep.mubr.f32.mxu0 0.0
        %3511 = vmatmul.mubr.f32.gmra.mrb[0].mxu0 %v3373
        %v3512 = vpop.f32.mrb[0].mxu0
        %v3513 = vadd.f32 0.0, %v3512
        %v3514 = vpop.f32.mrb[0].mxu0
        %3515 = vdwg.mxu0
        %v3516 = vadd.f32 %v3209, %v3513
        %v3517 = vmax.f32 %v3298, %v3369
        %v3518 = vmax.f32 %v3445, %v3516
        %v3519 = vmax.f32 %v3517, %v3518
        %v3521 = vlaneseq
        %v3522 = vshrl.u32 %v3521, 7
        %v3523 = vsub.s32 0, %v3522
        %v3524 = vrot.slane %v1986, %v3523
        %v3526 = vadd.f32 %v3519, %v3524
        %v3527 = vmax.f32 %v3526, 0.0
        %v3528 = vld [vmem:[%s5] sm:$0xff]
        %v3529 = vld [vmem:[%s5 + $0x8] sm:$0xff]
        %v3530 = vld [vmem:[%s5 + $0x10] sm:$0xff]
        %v3531 = vld [vmem:[%s5 + $0x18] sm:$0xff]
        %s3532 = scalar_lea.vmem %s5, 32
        %v3533 = vld [vmem:[%s3532] sm:$0xff]
        %v3534 = vld [vmem:[%s3532 + $0x8] sm:$0xff]
        %v3535 = vld [vmem:[%s3532 + $0x10] sm:$0xff]
        %v3536 = vld [vmem:[%s3532 + $0x18] sm:$0xff]
        %v3538 = vrot.slane %v3527, 1
        %vm3539 = vcmask 261120
        %v3540 = vsel %vm3539, %v3538, 0
        %3542 = vmatprep.subr.mxu0 0.0
        %3543 = vmatpush1.msra.mxu0 %v3533
        %3544 = vmatprep.subr.mxu0 0.0
        %3545 = vmatpush1.msra.mxu0 %v3534
        %3546 = vmatprep.subr.mxu0 0.0
        %3547 = vmatpush1.msra.mxu0 %v3535
        %3548 = vmatprep.subr.mxu0 0.0
        %3549 = vmatpush1.msra.mxu0 %v3536
        %3550 = vmatprep.subr.mxu0 0.0
        %3551 = vmatpush1.msra.mxu0 0.0
        %3552 = vmatprep.subr.mxu0 0.0
        %3553 = vmatpush1.msra.mxu0 0.0
        %3554 = vmatprep.subr.mxu0 0.0
        %3555 = vmatpush1.msra.mxu0 0.0
        %3556 = vmatprep.subr.mxu0 0.0
        %3557 = vmatpush1.msra.mxu0 0.0
        %3558 = vmatprep.subr.mxu0 0.0
        %3559 = vmatpush1.msra.mxu0 0.0
        %3560 = vmatprep.subr.mxu0 0.0
        %3561 = vmatpush1.msra.mxu0 0.0
        %3562 = vmatprep.subr.mxu0 0.0
        %3563 = vmatpush1.msra.mxu0 0.0
        %3564 = vmatprep.subr.mxu0 0.0
        %3565 = vmatpush1.msra.mxu0 0.0
        %3566 = vmatprep.subr.mxu0 0.0
        %3567 = vmatpush1.msra.mxu0 0.0
        %3568 = vmatprep.subr.mxu0 0.0
        %3569 = vmatpush1.msra.mxu0 0.0
        %3570 = vmatprep.subr.mxu0 0.0
        %3571 = vmatpush1.msra.mxu0 0.0
        %3572 = vmatprep.subr.mxu0 0.0
        %3573 = vmatpush1.msra.mxu0 0.0
        %3574 = vmatprep.subr.mxu0 0.0
        %3575 = vmatpush1.msra.mxu0 0.0
        %3576 = vmatprep.subr.mxu0 0.0
        %3577 = vmatpush1.msra.mxu0 0.0
        %3578 = vmatprep.subr.mxu0 0.0
        %3579 = vmatpush1.msra.mxu0 0.0
        %3580 = vmatprep.subr.mxu0 0.0
        %3581 = vmatpush1.msra.mxu0 0.0
        %3582 = vmatprep.subr.mxu0 0.0
        %3583 = vmatpush1.msra.mxu0 0.0
        %3584 = vmatprep.subr.mxu0 0.0
        %3585 = vmatpush1.msra.mxu0 0.0
        %3586 = vmatprep.subr.mxu0 0.0
        %3587 = vmatpush1.msra.mxu0 0.0
        %3588 = vmatprep.subr.mxu0 0.0
        %3589 = vmatpush1.msra.mxu0 0.0
        %3590 = vmatprep.subr.mxu0 0.0
        %3591 = vmatpush1.msra.mxu0 0.0
        %3592 = vmatprep.subr.mxu0 0.0
        %3593 = vmatpush1.msra.mxu0 0.0
        %3594 = vmatprep.subr.mxu0 0.0
        %3595 = vmatpush1.msra.mxu0 0.0
        %3596 = vmatprep.subr.mxu0 0.0
        %3597 = vmatpush1.msra.mxu0 0.0
        %3598 = vmatprep.subr.mxu0 0.0
        %3599 = vmatpush1.msra.mxu0 0.0
        %3600 = vmatprep.subr.mxu0 0.0
        %3601 = vmatpush1.msra.mxu0 0.0
        %3602 = vmatprep.subr.mxu0 0.0
        %3603 = vmatpush1.msra.mxu0 0.0
        %3604 = vmatprep.subr.mxu0 0.0
        %3605 = vmatpush1.msra.mxu0 0.0
        %3606 = vmatprep.mubr.f32.mxu0 0.0
        %3607 = vmatmul.mubr.f32.gmra.mrb[0].mxu0 %v3540
        %v3608 = vpop.f32.mrb[0].mxu0
        %v3609 = vadd.f32 0.0, %v3608
        %v3610 = vpop.f32.mrb[0].mxu0
        %3611 = vdwg.mxu0
        %v3612 = vsel %vm3539, %v3527, 0
        %3614 = vmatprep.subr.mxu0 0.0
        %3615 = vmatpush1.msra.mxu0 %v3528
        %3616 = vmatprep.subr.mxu0 0.0
        %3617 = vmatpush1.msra.mxu0 %v3529
        %3618 = vmatprep.subr.mxu0 0.0
        %3619 = vmatpush1.msra.mxu0 %v3530
        %3620 = vmatprep.subr.mxu0 0.0
        %3621 = vmatpush1.msra.mxu0 %v3531
        %3622 = vmatprep.subr.mxu0 0.0
        %3623 = vmatpush1.msra.mxu0 0.0
        %3624 = vmatprep.subr.mxu0 0.0
        %3625 = vmatpush1.msra.mxu0 0.0
        %3626 = vmatprep.subr.mxu0 0.0
        %3627 = vmatpush1.msra.mxu0 0.0
        %3628 = vmatprep.subr.mxu0 0.0
        %3629 = vmatpush1.msra.mxu0 0.0
        %3630 = vmatprep.subr.mxu0 0.0
        %3631 = vmatpush1.msra.mxu0 0.0
        %3632 = vmatprep.subr.mxu0 0.0
        %3633 = vmatpush1.msra.mxu0 0.0
        %3634 = vmatprep.subr.mxu0 0.0
        %3635 = vmatpush1.msra.mxu0 0.0
        %3636 = vmatprep.subr.mxu0 0.0
        %3637 = vmatpush1.msra.mxu0 0.0
        %3638 = vmatprep.subr.mxu0 0.0
        %3639 = vmatpush1.msra.mxu0 0.0
        %3640 = vmatprep.subr.mxu0 0.0
        %3641 = vmatpush1.msra.mxu0 0.0
        %3642 = vmatprep.subr.mxu0 0.0
        %3643 = vmatpush1.msra.mxu0 0.0
        %3644 = vmatprep.subr.mxu0 0.0
        %3645 = vmatpush1.msra.mxu0 0.0
        %3646 = vmatprep.subr.mxu0 0.0
        %3647 = vmatpush1.msra.mxu0 0.0
        %3648 = vmatprep.subr.mxu0 0.0
        %3649 = vmatpush1.msra.mxu0 0.0
        %3650 = vmatprep.subr.mxu0 0.0
        %3651 = vmatpush1.msra.mxu0 0.0
        %3652 = vmatprep.subr.mxu0 0.0
        %3653 = vmatpush1.msra.mxu0 0.0
        %3654 = vmatprep.subr.mxu0 0.0
        %3655 = vmatpush1.msra.mxu0 0.0
        %3656 = vmatprep.subr.mxu0 0.0
        %3657 = vmatpush1.msra.mxu0 0.0
        %3658 = vmatprep.subr.mxu0 0.0
        %3659 = vmatpush1.msra.mxu0 0.0
        %3660 = vmatprep.subr.mxu0 0.0
        %3661 = vmatpush1.msra.mxu0 0.0
        %3662 = vmatprep.subr.mxu0 0.0
        %3663 = vmatpush1.msra.mxu0 0.0
        %3664 = vmatprep.subr.mxu0 0.0
        %3665 = vmatpush1.msra.mxu0 0.0
        %3666 = vmatprep.subr.mxu0 0.0
        %3667 = vmatpush1.msra.mxu0 0.0
        %3668 = vmatprep.subr.mxu0 0.0
        %3669 = vmatpush1.msra.mxu0 0.0
        %3670 = vmatprep.subr.mxu0 0.0
        %3671 = vmatpush1.msra.mxu0 0.0
        %3672 = vmatprep.subr.mxu0 0.0
        %3673 = vmatpush1.msra.mxu0 0.0
        %3674 = vmatprep.subr.mxu0 0.0
        %3675 = vmatpush1.msra.mxu0 0.0
        %3676 = vmatprep.subr.mxu0 0.0
        %3677 = vmatpush1.msra.mxu0 0.0
        %3678 = vmatprep.mubr.f32.mxu0 0.0
        %3679 = vmatmul.mubr.f32.gmra.mrb[0].mxu0 %v3612
        %v3680 = vpop.f32.mrb[0].mxu0
        %v3681 = vadd.f32 %v3609, %v3680
        %v3682 = vpop.f32.mrb[0].mxu0
        %3683 = vdwg.mxu0
        %v3684 = vld [vmem:[%s6] sm:$0x1]
        %v3685 = vadd.f32 %v3681, %v3684
        %v3686 = vmax.f32 %v3685, 0.0
        %v3687 = vld [vmem:[%s7] sm:$0xff]
        %v3688 = vld [vmem:[%s7 + $0x8] sm:$0xff]
        %v3689 = vld [vmem:[%s7 + $0x10] sm:$0xff]
        %v3690 = vld [vmem:[%s7 + $0x18] sm:$0xff]
        %v3691 = vld [vmem:[%s8] sm:$0x1]
        %v3693 = vsel %vm3539, %v3686, 0
        %3695 = vmatprep.subr.mxu0 0.0
        %3696 = vmatpush1.msra.mxu0 %v3687
        %3697 = vmatprep.subr.mxu0 0.0
        %3698 = vmatpush1.msra.mxu0 %v3688
        %3699 = vmatprep.subr.mxu0 0.0
        %3700 = vmatpush1.msra.mxu0 %v3689
        %3701 = vmatprep.subr.mxu0 0.0
        %3702 = vmatpush1.msra.mxu0 %v3690
        %3703 = vmatprep.subr.mxu0 0.0
        %3704 = vmatpush1.msra.mxu0 0.0
        %3705 = vmatprep.subr.mxu0 0.0
        %3706 = vmatpush1.msra.mxu0 0.0
        %3707 = vmatprep.subr.mxu0 0.0
        %3708 = vmatpush1.msra.mxu0 0.0
        %3709 = vmatprep.subr.mxu0 0.0
        %3710 = vmatpush1.msra.mxu0 0.0
        %3711 = vmatprep.subr.mxu0 0.0
        %3712 = vmatpush1.msra.mxu0 0.0
        %3713 = vmatprep.subr.mxu0 0.0
        %3714 = vmatpush1.msra.mxu0 0.0
        %3715 = vmatprep.subr.mxu0 0.0
        %3716 = vmatpush1.msra.mxu0 0.0
        %3717 = vmatprep.subr.mxu0 0.0
        %3718 = vmatpush1.msra.mxu0 0.0
        %3719 = vmatprep.subr.mxu0 0.0
        %3720 = vmatpush1.msra.mxu0 0.0
        %3721 = vmatprep.subr.mxu0 0.0
        %3722 = vmatpush1.msra.mxu0 0.0
        %3723 = vmatprep.subr.mxu0 0.0
        %3724 = vmatpush1.msra.mxu0 0.0
        %3725 = vmatprep.subr.mxu0 0.0
        %3726 = vmatpush1.msra.mxu0 0.0
        %3727 = vmatprep.subr.mxu0 0.0
        %3728 = vmatpush1.msra.mxu0 0.0
        %3729 = vmatprep.subr.mxu0 0.0
        %3730 = vmatpush1.msra.mxu0 0.0
        %3731 = vmatprep.subr.mxu0 0.0
        %3732 = vmatpush1.msra.mxu0 0.0
        %3733 = vmatprep.subr.mxu0 0.0
        %3734 = vmatpush1.msra.mxu0 0.0
        %3735 = vmatprep.subr.mxu0 0.0
        %3736 = vmatpush1.msra.mxu0 0.0
        %3737 = vmatprep.subr.mxu0 0.0
        %3738 = vmatpush1.msra.mxu0 0.0
        %3739 = vmatprep.subr.mxu0 0.0
        %3740 = vmatpush1.msra.mxu0 0.0
        %3741 = vmatprep.subr.mxu0 0.0
        %3742 = vmatpush1.msra.mxu0 0.0
        %3743 = vmatprep.subr.mxu0 0.0
        %3744 = vmatpush1.msra.mxu0 0.0
        %3745 = vmatprep.subr.mxu0 0.0
        %3746 = vmatpush1.msra.mxu0 0.0
        %3747 = vmatprep.subr.mxu0 0.0
        %3748 = vmatpush1.msra.mxu0 0.0
        %3749 = vmatprep.subr.mxu0 0.0
        %3750 = vmatpush1.msra.mxu0 0.0
        %3751 = vmatprep.subr.mxu0 0.0
        %3752 = vmatpush1.msra.mxu0 0.0
        %3753 = vmatprep.subr.mxu0 0.0
        %3754 = vmatpush1.msra.mxu0 0.0
        %3755 = vmatprep.subr.mxu0 0.0
        %3756 = vmatpush1.msra.mxu0 0.0
        %3757 = vmatprep.subr.mxu0 0.0
        %3758 = vmatpush1.msra.mxu0 0.0
        %3759 = vmatprep.mubr.f32.mxu0 0.0
        %3760 = vmatmul.mubr.f32.gmra.mrb[0].mxu0 %v3693
        %v3761 = vpop.f32.mrb[0].mxu0
        %v3762 = vadd.f32 %v3691, %v3761
        %v3763 = vpop.f32.mrb[0].mxu0
        %3764 = vdwg.mxu0
        %v3765 = vmax.f32 %v3762, 0.0
        %v3766 = vld [vmem:[%s9] sm:$0xff]
        %v3767 = vld [vmem:[%s9 + $0x8] sm:$0xff]
        %v3768 = vld [vmem:[%s10] sm:$0x1]
        %vm3769 = vcmask 130048
        %v3771 = vsel %vm3769, %v3765, 0
        %3773 = vmatprep.subr.mxu0 0.0
        %3774 = vmatpush1.msra.mxu0 %v3766
        %3775 = vmatprep.subr.mxu0 0.0
        %3776 = vmatpush1.msra.mxu0 %v3767
        %3777 = vmatprep.subr.mxu0 0.0
        %3778 = vmatpush1.msra.mxu0 0.0
        %3779 = vmatprep.subr.mxu0 0.0
        %3780 = vmatpush1.msra.mxu0 0.0
        %3781 = vmatprep.subr.mxu0 0.0
        %3782 = vmatpush1.msra.mxu0 0.0
        %3783 = vmatprep.subr.mxu0 0.0
        %3784 = vmatpush1.msra.mxu0 0.0
        %3785 = vmatprep.subr.mxu0 0.0
        %3786 = vmatpush1.msra.mxu0 0.0
        %3787 = vmatprep.subr.mxu0 0.0
        %3788 = vmatpush1.msra.mxu0 0.0
        %3789 = vmatprep.subr.mxu0 0.0
        %3790 = vmatpush1.msra.mxu0 0.0
        %3791 = vmatprep.subr.mxu0 0.0
        %3792 = vmatpush1.msra.mxu0 0.0
        %3793 = vmatprep.subr.mxu0 0.0
        %3794 = vmatpush1.msra.mxu0 0.0
        %3795 = vmatprep.subr.mxu0 0.0
        %3796 = vmatpush1.msra.mxu0 0.0
        %3797 = vmatprep.subr.mxu0 0.0
        %3798 = vmatpush1.msra.mxu0 0.0
        %3799 = vmatprep.subr.mxu0 0.0
        %3800 = vmatpush1.msra.mxu0 0.0
        %3801 = vmatprep.subr.mxu0 0.0
        %3802 = vmatpush1.msra.mxu0 0.0
        %3803 = vmatprep.subr.mxu0 0.0
        %3804 = vmatpush1.msra.mxu0 0.0
        %3805 = vmatprep.subr.mxu0 0.0
        %3806 = vmatpush1.msra.mxu0 0.0
        %3807 = vmatprep.subr.mxu0 0.0
        %3808 = vmatpush1.msra.mxu0 0.0
        %3809 = vmatprep.subr.mxu0 0.0
        %3810 = vmatpush1.msra.mxu0 0.0
        %3811 = vmatprep.subr.mxu0 0.0
        %3812 = vmatpush1.msra.mxu0 0.0
        %3813 = vmatprep.subr.mxu0 0.0
        %3814 = vmatpush1.msra.mxu0 0.0
        %3815 = vmatprep.subr.mxu0 0.0
        %3816 = vmatpush1.msra.mxu0 0.0
        %3817 = vmatprep.subr.mxu0 0.0
        %3818 = vmatpush1.msra.mxu0 0.0
        %3819 = vmatprep.subr.mxu0 0.0
        %3820 = vmatpush1.msra.mxu0 0.0
        %3821 = vmatprep.subr.mxu0 0.0
        %3822 = vmatpush1.msra.mxu0 0.0
        %3823 = vmatprep.subr.mxu0 0.0
        %3824 = vmatpush1.msra.mxu0 0.0
        %3825 = vmatprep.subr.mxu0 0.0
        %3826 = vmatpush1.msra.mxu0 0.0
        %3827 = vmatprep.subr.mxu0 0.0
        %3828 = vmatpush1.msra.mxu0 0.0
        %3829 = vmatprep.subr.mxu0 0.0
        %3830 = vmatpush1.msra.mxu0 0.0
        %3831 = vmatprep.subr.mxu0 0.0
        %3832 = vmatpush1.msra.mxu0 0.0
        %3833 = vmatprep.subr.mxu0 0.0
        %3834 = vmatpush1.msra.mxu0 0.0
        %3835 = vmatprep.subr.mxu0 0.0
        %3836 = vmatpush1.msra.mxu0 0.0
        %3837 = vmatprep.mubr.f32.mxu0 0.0
        %3838 = vmatmul.mubr.f32.gmra.mrb[0].mxu0 %v3771
        %v3839 = vpop.f32.mrb[0].mxu0
        %v3840 = vadd.f32 %v3768, %v3839
        %v3841 = vpop.f32.mrb[0].mxu0
        %3842 = vdwg.mxu0
        %vm3843 = vcmask 73728
        %3844 = vst.msk [vmem:[%s408] sm:$0x1] %vm3843, %v3840
        %s3845 = sand.u32 %s271, 1
        %s3846 = scalar_lea.sflag [#allocation6], %s3845
        %s3847 = sand.u32 %s271, 1
        %s3848 = scalar_lea.vmem [#allocation9], %s3847
        // Predicated region
        $region73: #{cnn_dynamic_forward.1} parent=63 // pred_check
          %p3849 = pneg %p281
        $region74: #{cnn_dynamic_forward.1} parent=63 // pred_check_branch
          %3851 = sbr.rel (%p3849) target = $region76
        $region75: #{cnn_dynamic_forward.1} parent=63 // pred_region
          %s3853 = ssub.s32 16, 16
          %3854 = vsyncadd %s3846, %s3853
          %s3855 = smul.addr %s27, 16
          %s3856 = scalar_lea.hbm %s11, %s3855
          %s3858 = sshll.u32 %s3848, 4
          %s3859 = int_to_ptr.vmem [resolvable:$true] %s3858
          %3861 = dma.vmem_to_hbm [thread:$0]  %s3859, 16, %s3856, %s3846
        $region76: #{cnn_dynamic_forward.1} parent=63 // pred_fallthru
          _
      $region64: #{cnn_dynamic_forward.1} parent=5 // pred_fallthru
        _
      %p3862 = scmp.le.s32.totalorder 2, %s22
      // Predicated region
      $region77: #{cnn_dynamic_forward.1} parent=5 // pred_check
        %p3863 = pneg %p3862
      $region78: #{cnn_dynamic_forward.1} parent=5 // pred_check_branch
        %3865 = sbr.rel (%p3863) target = $region80
      $region79: #{cnn_dynamic_forward.1} parent=5 // pred_region
        %s3866 = ssub.s32 %s22, 2
        // Predicated region
        $region81: #{cnn_dynamic_forward.1} parent=79 // pred_check
          %p3867 = pneg %p287
        $region82: #{cnn_dynamic_forward.1} parent=79 // pred_check_branch
          %3869 = sbr.rel (%p3867) target = $region84
        $region83: #{cnn_dynamic_forward.1} parent=79 // pred_region
          %s3870 = sand.u32 %s272, 1
          %s3871 = scalar_lea.sflag [#allocation6], %s3870
          %s3872 = sand.u32 %s272, 1
          %s3873 = scalar_lea.vmem [#allocation9], %s3872
          %3874 = dma.done %s3871, 16
        $region84: #{cnn_dynamic_forward.1} parent=79 // pred_fallthru
          _
      $region80: #{cnn_dynamic_forward.1} parent=5 // pred_fallthru
        _
    $region6: #{cnn_dynamic_forward.1} parent=1 // loop_footer
      %s26 = sadd.s32 1, %s22
    $region7: #{cnn_dynamic_forward.1} parent=1 // loop_footer_branch
      %21 = sbr.rel target = $region3
    $region8: #{cnn_dynamic_forward.1} parent=1 // loop_exit
      _
    %3875 = vsyncpa [#allocation5], 1
    %s3876 = scalar_lea.sflag [#allocation5], 1
    %3877 = vsyncpa %s3876, 1
    %3878 = vsyncpa [#allocation8], 1
    %3879 = vsyncpa [#allocation6], 1
    %s3880 = scalar_lea.sflag [#allocation6], 1
    %3881 = vsyncpa %s3880, 1

</llo_original>
